<compile_context>
chip_gen: v6e
topology: v6e:2x2x1
jax: 0.10.0
libtpu: 0.0.40
codegen_flags: <defaults>
</compile_context>

<pallas_src>
import jax
import jax.numpy as jnp
import numpy as np
from jax.experimental import pallas as pl
from jax.experimental.pallas import tpu as pltpu

# Module channel sizes (from __init__)
C0, C1, C2, C3, C4 = 2, 8, 16, 32, 4
KH = KW = 3
H = W = 16   # small synthetic spatial size
B = 2        # small synthetic batch

# Packed parameter buffer layout (rows x lanes):
_PARAM_ROWS = 64
_BIAS_COL = 288     # lane column holding per-channel biases
_MASK_ROW = 60      # sublane row holding the (1, P) interior mask
_LAYERS = (         # (cin_pad, cout, row offset of this layer's weights/bias)
    (8, C1, 0),
    (8, C2, 8),
    (16, C3, 24),
    (32, C4, 56),
)
_OUT_ROWS = 8       # C4 padded to a full sublane tile for unmasked stores


def _round_up(n, m):
    return ((n + m - 1) // m) * m


def _make_kernel(w_halo, n_pos):
    """Fused 4x(conv3x3 + ReLU) + channel-softmax kernel for fixed layout."""

    def kernel(x_ref, p_ref, out_ref, patches_ref):
        # (1, P) interior mask: 1 at real in-image pixels, 0 at halo/pad columns.
        interior = p_ref[pl.ds(_MASK_ROW, 1), :]

        def conv3x3_relu(act, cin, cout, r0, rezero_halo):
            k = KH * KW * cin
            # im2col: 9 lane rolls (XLU) streamed straight into the VMEM scratch
            # (no concatenate -> no 144-vreg live range, no spill/fill).
            for ky in range(KH):
                for kx in range(KW):
                    off = (ky - 1) * w_halo + (kx - 1)
                    shifted = act if off == 0 else pltpu.roll(
                        act, shift=(-off) % n_pos, axis=1)
                    tap = ky * KW + kx
                    patches_ref[pl.ds(tap * cin, cin), :] = shifted
            w = p_ref[pl.ds(r0, cout), pl.ds(0, k)]            # (cout, k)
            b = p_ref[pl.ds(r0, cout), pl.ds(_BIAS_COL, 1)]    # (cout, 1)
            y = jnp.dot(w, patches_ref[pl.ds(0, k), :],
                        preferred_element_type=jnp.float32)    # (cout, P)
            y = jnp.maximum(y + b, 0.0)
            if rezero_halo:
                # Re-zero halo/pad columns once per layer so the next layer's
                # rolls pull exact zeros (replaces 9 per-tap mask multiplies).
                y = y * interior
            return y

        a = x_ref[...]                                         # (8, P), padded C0
        n_layers = len(_LAYERS)
        for idx, (cin, cout, r0) in enumerate(_LAYERS):
            a = conv3x3_relu(a, cin, cout, r0,
                             rezero_halo=(idx < n_layers - 1))

        # Softmax over channels (sublane axis == NCHW dim 1); columns are
        # independent, so garbage halo columns never affect interior pixels.
        m = jnp.max(a, axis=0, keepdims=True)
        e = jnp.exp(a - m)
        s = jnp.sum(e, axis=0, keepdims=True)
        res = e * pl.reciprocal(s, approx=False)               # (C4, P)
        pad = jnp.zeros((_OUT_ROWS - res.shape[0], n_pos), jnp.float32)
        out_ref[...] = jnp.concatenate([res, pad], axis=0)     # unmasked (8, P) store

    return kernel


def _interior_mask(b, hp, wp, h, w, n_pos):
    """(n_pos,) f32: 1 at real interior pixels, 0 at halo / lane-pad columns."""
    pos = np.arange(n_pos)
    p_real = b * hp * wp
    rr = (pos % (hp * wp)) // wp
    cc = pos % wp
    interior = (pos < p_real) & (rr >= 1) & (rr <= h) & (cc >= 1) & (cc <= w)
    return jnp.asarray(interior.astype(np.float32))


def _pack_params(params, n_pos):
    """Pack all conv weights + biases into one (64, n_pos) f32 buffer (1 DMA)."""
    pbuf = jnp.zeros((_PARAM_ROWS, n_pos), jnp.float32)
    for (wgt, bias), (cin_pad, cout, r0) in zip(params, _LAYERS):
        cin = wgt.shape[1]
        w_p = jnp.pad(wgt.astype(jnp.float32),
                      ((0, 0), (0, cin_pad - cin), (0, 0), (0, 0)))
        # OIHW -> (cout, 9*cin_pad); column order (ky, kx, ci) matches im2col rows.
        w2d = jnp.transpose(w_p, (0, 2, 3, 1)).reshape(cout, KH * KW * cin_pad)
        pbuf = pbuf.at[r0:r0 + cout, 0:KH * KW * cin_pad].set(w2d)
        pbuf = pbuf.at[r0:r0 + cout, _BIAS_COL].set(bias.astype(jnp.float32))
    return pbuf


def perceptual_laserscan_conv_forward(x, params):
    """x: (B, C0, H, W) NCHW.  params: list of 4 (w_OIHW, bias_(cout,)) tuples."""
    x = x.astype(jnp.float32)            # mirrors x.float() in the PyTorch forward
    b, c0, h, w = x.shape
    hp, wp = h + 2, w + 2
    p_real = b * hp * wp
    n_pos = _round_up(p_real, 128)

    # ---- host-side layout plumbing (free) ----
    # channel-pad to 8, add explicit zero halo, flatten (B, Hp, Wp) onto lanes.
    c0_pad = _LAYERS[0][0]
    x_p = jnp.pad(x, ((0, 0), (0, c0_pad - c0), (1, 1), (1, 1)))
    x2d = jnp.transpose(x_p, (1, 0, 2, 3)).reshape(c0_pad, p_real)
    x2d = jnp.pad(x2d, ((0, 0), (0, n_pos - p_real)))                   # (8, P)

    pbuf = _pack_params(params, n_pos)                                  # (64, P)
    pbuf = pbuf.at[_MASK_ROW, :].set(_interior_mask(b, hp, wp, h, w, n_pos))

    flops = 2 * n_pos * sum(KH * KW * ci * co for ci, co, _ in _LAYERS)
    bytes_accessed = 4 * (x2d.size + pbuf.size + _OUT_ROWS * n_pos)

    out2d = pl.pallas_call(
        _make_kernel(wp, n_pos),
        out_shape=jax.ShapeDtypeStruct((_OUT_ROWS, n_pos), jnp.float32),
        in_specs=[pl.BlockSpec(memory_space=pltpu.MemorySpace.VMEM)] * 2,
        out_specs=pl.BlockSpec(memory_space=pltpu.MemorySpace.VMEM),
        scratch_shapes=[
            pltpu.VMEM((KH * KW * _LAYERS[-1][0], n_pos), jnp.float32)],
        cost_estimate=pl.CostEstimate(
            flops=flops,
            transcendentals=C4 * n_pos,
            bytes_accessed=bytes_accessed),
    )(x2d, pbuf)

    # (8, P) -> strip channel pad, lane pad and halo -> (B, C4, H, W)
    out = out2d[:C4, :p_real].reshape(C4, b, hp, wp)[:, :, 1:h + 1, 1:w + 1]
    return jnp.transpose(out, (1, 0, 2, 3))


def _init_params(key):
    """Deterministic init mimicking nn.Conv2d default (uniform +/- 1/sqrt(fan_in))."""
    sizes = [(C0, C1), (C1, C2), (C2, C3), (C3, C4)]
    params = []
    keys = jax.random.split(key, 2 * len(sizes))
    for idx, (cin, cout) in enumerate(sizes):
        bound = 1.0 / np.sqrt(cin * KH * KW)
        wk, bk = keys[2 * idx], keys[2 * idx + 1]
        wgt = jax.random.uniform(wk, (cout, cin, KH, KW), jnp.float32, -bound, bound)
        bias = jax.random.uniform(bk, (cout,), jnp.float32, -bound, bound)
        params.append((wgt, bias))
    return params


def _reference_forward(x, params):
    """Pure-JAX NCHW reference for correctness checking."""
    a = x.astype(jnp.float32)
    for wgt, bias in params:
        a = jax.lax.conv_general_dilated(
            a, wgt, window_strides=(1, 1), padding=[(1, 1), (1, 1)],
            dimension_numbers=("NCHW", "OIHW", "NCHW"))
        a = jnp.maximum(a + bias.reshape(1, -1, 1, 1), 0.0)
    return jax.nn.softmax(a, axis=1)   # F.softmax(x) on a 4D NCHW tensor -> dim=1


if __name__ == "__main__":
    key = jax.random.PRNGKey(0)
    kx, kp = jax.random.split(key)
    x = jax.random.normal(kx, (B, C0, H, W), dtype=jnp.float32)
    params = _init_params(kp)

    forward = jax.jit(perceptual_laserscan_conv_forward)
    out = jax.block_until_ready(forward(x, params))

    ref = jax.block_until_ready(_reference_forward(x, params))
    np.testing.assert_allclose(np.asarray(out), np.asarray(ref),
                               rtol=1e-4, atol=1e-5)

    print("KERNEL_OK")
</pallas_src>

<mosaic_0001>
module attributes {stable_mosaic.version = 11 : i64} {
  func.func @kernel(%arg0: memref<8x768xf32, #tpu.memory_space<vmem>>, %arg1: memref<64x768xf32, #tpu.memory_space<vmem>>, %arg2: memref<8x768xf32, #tpu.memory_space<vmem>>, %arg3: memref<288x768xf32, #tpu.memory_space<vmem>>) attributes {dimension_semantics = [], scalar_prefetch = 0 : i64, scratch_operands = 1 : i64, tpu.core_type = #tpu.core_type<tc>} {
    %c60 = arith.constant 60 : index
    %c0 = arith.constant 0 : index
    %0 = vector.load %arg1[%c60, %c0] : memref<64x768xf32, #tpu.memory_space<vmem>>, vector<1x768xf32>
    %c0_0 = arith.constant 0 : index
    %c0_1 = arith.constant 0 : index
    %1 = vector.load %arg0[%c0_0, %c0_1] : memref<8x768xf32, #tpu.memory_space<vmem>>, vector<8x768xf32>
    %c19_i32 = arith.constant 19 : i32
    %2 = tpu.dynamic_rotate %1 by %c19_i32 dim 1 : vector<8x768xf32>, i32 -> vector<8x768xf32>
    %c0_2 = arith.constant 0 : index
    %c0_3 = arith.constant 0 : index
    %3 = vector.load %arg3[%c0_2, %c0_3] : memref<288x768xf32, #tpu.memory_space<vmem>>, vector<8x768xf32>
    tpu.vector_store %arg3[%c0_2, %c0_3], %2 {strides = array<i32>} : memref<288x768xf32, #tpu.memory_space<vmem>>, vector<8x768xf32>,
    %c18_i32 = arith.constant 18 : i32
    %4 = tpu.dynamic_rotate %1 by %c18_i32 dim 1 : vector<8x768xf32>, i32 -> vector<8x768xf32>
    %c8 = arith.constant 8 : index
    %c0_4 = arith.constant 0 : index
    %5 = vector.load %arg3[%c8, %c0_4] : memref<288x768xf32, #tpu.memory_space<vmem>>, vector<8x768xf32>
    tpu.vector_store %arg3[%c8, %c0_4], %4 {strides = array<i32>} : memref<288x768xf32, #tpu.memory_space<vmem>>, vector<8x768xf32>,
    %c17_i32 = arith.constant 17 : i32
    %6 = tpu.dynamic_rotate %1 by %c17_i32 dim 1 : vector<8x768xf32>, i32 -> vector<8x768xf32>
    %c16 = arith.constant 16 : index
    %c0_5 = arith.constant 0 : index
    %7 = vector.load %arg3[%c16, %c0_5] : memref<288x768xf32, #tpu.memory_space<vmem>>, vector<8x768xf32>
    tpu.vector_store %arg3[%c16, %c0_5], %6 {strides = array<i32>} : memref<288x768xf32, #tpu.memory_space<vmem>>, vector<8x768xf32>,
    %c1_i32 = arith.constant 1 : i32
    %8 = tpu.dynamic_rotate %1 by %c1_i32 dim 1 : vector<8x768xf32>, i32 -> vector<8x768xf32>
    %c24 = arith.constant 24 : index
    %c0_6 = arith.constant 0 : index
    %9 = vector.load %arg3[%c24, %c0_6] : memref<288x768xf32, #tpu.memory_space<vmem>>, vector<8x768xf32>
    tpu.vector_store %arg3[%c24, %c0_6], %8 {strides = array<i32>} : memref<288x768xf32, #tpu.memory_space<vmem>>, vector<8x768xf32>,
    %c32 = arith.constant 32 : index
    %c0_7 = arith.constant 0 : index
    %10 = vector.load %arg3[%c32, %c0_7] : memref<288x768xf32, #tpu.memory_space<vmem>>, vector<8x768xf32>
    tpu.vector_store %arg3[%c32, %c0_7], %1 {strides = array<i32>} : memref<288x768xf32, #tpu.memory_space<vmem>>, vector<8x768xf32>,
    %c767_i32 = arith.constant 767 : i32
    %11 = tpu.dynamic_rotate %1 by %c767_i32 dim 1 : vector<8x768xf32>, i32 -> vector<8x768xf32>
    %c40 = arith.constant 40 : index
    %c0_8 = arith.constant 0 : index
    %12 = vector.load %arg3[%c40, %c0_8] : memref<288x768xf32, #tpu.memory_space<vmem>>, vector<8x768xf32>
    tpu.vector_store %arg3[%c40, %c0_8], %11 {strides = array<i32>} : memref<288x768xf32, #tpu.memory_space<vmem>>, vector<8x768xf32>,
    %c751_i32 = arith.constant 751 : i32
    %13 = tpu.dynamic_rotate %1 by %c751_i32 dim 1 : vector<8x768xf32>, i32 -> vector<8x768xf32>
    %c48 = arith.constant 48 : index
    %c0_9 = arith.constant 0 : index
    %14 = vector.load %arg3[%c48, %c0_9] : memref<288x768xf32, #tpu.memory_space<vmem>>, vector<8x768xf32>
    tpu.vector_store %arg3[%c48, %c0_9], %13 {strides = array<i32>} : memref<288x768xf32, #tpu.memory_space<vmem>>, vector<8x768xf32>,
    %c750_i32 = arith.constant 750 : i32
    %15 = tpu.dynamic_rotate %1 by %c750_i32 dim 1 : vector<8x768xf32>, i32 -> vector<8x768xf32>
    %c56 = arith.constant 56 : index
    %c0_10 = arith.constant 0 : index
    %16 = vector.load %arg3[%c56, %c0_10] : memref<288x768xf32, #tpu.memory_space<vmem>>, vector<8x768xf32>
    tpu.vector_store %arg3[%c56, %c0_10], %15 {strides = array<i32>} : memref<288x768xf32, #tpu.memory_space<vmem>>, vector<8x768xf32>,
    %c749_i32 = arith.constant 749 : i32
    %17 = tpu.dynamic_rotate %1 by %c749_i32 dim 1 : vector<8x768xf32>, i32 -> vector<8x768xf32>
    %c64 = arith.constant 64 : index
    %c0_11 = arith.constant 0 : index
    %18 = vector.load %arg3[%c64, %c0_11] : memref<288x768xf32, #tpu.memory_space<vmem>>, vector<8x768xf32>
    tpu.vector_store %arg3[%c64, %c0_11], %17 {strides = array<i32>} : memref<288x768xf32, #tpu.memory_space<vmem>>, vector<8x768xf32>,
    %c0_12 = arith.constant 0 : index
    %c0_13 = arith.constant 0 : index
    %19 = vector.load %arg1[%c0_12, %c0_13] : memref<64x768xf32, #tpu.memory_space<vmem>>, vector<8x72xf32>
    %c0_14 = arith.constant 0 : index
    %c288 = arith.constant 288 : index
    %20 = vector.load %arg1[%c0_14, %c288] : memref<64x768xf32, #tpu.memory_space<vmem>>, vector<8x1xf32>
    %c0_15 = arith.constant 0 : index
    %c0_16 = arith.constant 0 : index
    %21 = vector.load %arg3[%c0_15, %c0_16] : memref<288x768xf32, #tpu.memory_space<vmem>>, vector<72x768xf32>
    %cst = arith.constant dense<0.000000e+00> : vector<8x768xf32>
    %22 = tpu.matmul %19, %21, %cst {dimension_numbers = #tpu.dot_dimension_numbers<[1], [0], [0], [1], [0, 0, 1, 1], [], []>} : vector<8x72xf32>, vector<72x768xf32>, vector<8x768xf32> -> vector<8x768xf32>
    %23 = vector.broadcast %20 : vector<8x1xf32> to vector<8x768xf32>
    %24 = arith.addf %22, %23 : vector<8x768xf32>
    %cst_17 = arith.constant 0.000000e+00 : f32
    %25 = vector.broadcast %cst_17 : f32 to vector<8x768xf32>
    %26 = arith.maximumf %24, %25 : vector<8x768xf32>
    %27 = vector.broadcast %0 : vector<1x768xf32> to vector<8x768xf32>
    %28 = arith.mulf %26, %27 : vector<8x768xf32>
    %c19_i32_18 = arith.constant 19 : i32
    %29 = tpu.dynamic_rotate %28 by %c19_i32_18 dim 1 : vector<8x768xf32>, i32 -> vector<8x768xf32>
    %c0_19 = arith.constant 0 : index
    %c0_20 = arith.constant 0 : index
    %30 = vector.load %arg3[%c0_19, %c0_20] : memref<288x768xf32, #tpu.memory_space<vmem>>, vector<8x768xf32>
    tpu.vector_store %arg3[%c0_19, %c0_20], %29 {strides = array<i32>} : memref<288x768xf32, #tpu.memory_space<vmem>>, vector<8x768xf32>,
    %c18_i32_21 = arith.constant 18 : i32
    %31 = tpu.dynamic_rotate %28 by %c18_i32_21 dim 1 : vector<8x768xf32>, i32 -> vector<8x768xf32>
    %c8_22 = arith.constant 8 : index
    %c0_23 = arith.constant 0 : index
    %32 = vector.load %arg3[%c8_22, %c0_23] : memref<288x768xf32, #tpu.memory_space<vmem>>, vector<8x768xf32>
    tpu.vector_store %arg3[%c8_22, %c0_23], %31 {strides = array<i32>} : memref<288x768xf32, #tpu.memory_space<vmem>>, vector<8x768xf32>,
    %c17_i32_24 = arith.constant 17 : i32
    %33 = tpu.dynamic_rotate %28 by %c17_i32_24 dim 1 : vector<8x768xf32>, i32 -> vector<8x768xf32>
    %c16_25 = arith.constant 16 : index
    %c0_26 = arith.constant 0 : index
    %34 = vector.load %arg3[%c16_25, %c0_26] : memref<288x768xf32, #tpu.memory_space<vmem>>, vector<8x768xf32>
    tpu.vector_store %arg3[%c16_25, %c0_26], %33 {strides = array<i32>} : memref<288x768xf32, #tpu.memory_space<vmem>>, vector<8x768xf32>,
    %c1_i32_27 = arith.constant 1 : i32
    %35 = tpu.dynamic_rotate %28 by %c1_i32_27 dim 1 : vector<8x768xf32>, i32 -> vector<8x768xf32>
    %c24_28 = arith.constant 24 : index
    %c0_29 = arith.constant 0 : index
    %36 = vector.load %arg3[%c24_28, %c0_29] : memref<288x768xf32, #tpu.memory_space<vmem>>, vector<8x768xf32>
    tpu.vector_store %arg3[%c24_28, %c0_29], %35 {strides = array<i32>} : memref<288x768xf32, #tpu.memory_space<vmem>>, vector<8x768xf32>,
    %c32_30 = arith.constant 32 : index
    %c0_31 = arith.constant 0 : index
    %37 = vector.load %arg3[%c32_30, %c0_31] : memref<288x768xf32, #tpu.memory_space<vmem>>, vector<8x768xf32>
    tpu.vector_store %arg3[%c32_30, %c0_31], %28 {strides = array<i32>} : memref<288x768xf32, #tpu.memory_space<vmem>>, vector<8x768xf32>,
    %c767_i32_32 = arith.constant 767 : i32
    %38 = tpu.dynamic_rotate %28 by %c767_i32_32 dim 1 : vector<8x768xf32>, i32 -> vector<8x768xf32>
    %c40_33 = arith.constant 40 : index
    %c0_34 = arith.constant 0 : index
    %39 = vector.load %arg3[%c40_33, %c0_34] : memref<288x768xf32, #tpu.memory_space<vmem>>, vector<8x768xf32>
    tpu.vector_store %arg3[%c40_33, %c0_34], %38 {strides = array<i32>} : memref<288x768xf32, #tpu.memory_space<vmem>>, vector<8x768xf32>,
    %c751_i32_35 = arith.constant 751 : i32
    %40 = tpu.dynamic_rotate %28 by %c751_i32_35 dim 1 : vector<8x768xf32>, i32 -> vector<8x768xf32>
    %c48_36 = arith.constant 48 : index
    %c0_37 = arith.constant 0 : index
    %41 = vector.load %arg3[%c48_36, %c0_37] : memref<288x768xf32, #tpu.memory_space<vmem>>, vector<8x768xf32>
    tpu.vector_store %arg3[%c48_36, %c0_37], %40 {strides = array<i32>} : memref<288x768xf32, #tpu.memory_space<vmem>>, vector<8x768xf32>,
    %c750_i32_38 = arith.constant 750 : i32
    %42 = tpu.dynamic_rotate %28 by %c750_i32_38 dim 1 : vector<8x768xf32>, i32 -> vector<8x768xf32>
    %c56_39 = arith.constant 56 : index
    %c0_40 = arith.constant 0 : index
    %43 = vector.load %arg3[%c56_39, %c0_40] : memref<288x768xf32, #tpu.memory_space<vmem>>, vector<8x768xf32>
    tpu.vector_store %arg3[%c56_39, %c0_40], %42 {strides = array<i32>} : memref<288x768xf32, #tpu.memory_space<vmem>>, vector<8x768xf32>,
    %c749_i32_41 = arith.constant 749 : i32
    %44 = tpu.dynamic_rotate %28 by %c749_i32_41 dim 1 : vector<8x768xf32>, i32 -> vector<8x768xf32>
    %c64_42 = arith.constant 64 : index
    %c0_43 = arith.constant 0 : index
    %45 = vector.load %arg3[%c64_42, %c0_43] : memref<288x768xf32, #tpu.memory_space<vmem>>, vector<8x768xf32>
    tpu.vector_store %arg3[%c64_42, %c0_43], %44 {strides = array<i32>} : memref<288x768xf32, #tpu.memory_space<vmem>>, vector<8x768xf32>,
    %c8_44 = arith.constant 8 : index
    %c0_45 = arith.constant 0 : index
    %46 = vector.load %arg1[%c8_44, %c0_45] : memref<64x768xf32, #tpu.memory_space<vmem>>, vector<16x72xf32>
    %c8_46 = arith.constant 8 : index
    %c288_47 = arith.constant 288 : index
    %47 = vector.load %arg1[%c8_46, %c288_47] : memref<64x768xf32, #tpu.memory_space<vmem>>, vector<16x1xf32>
    %c0_48 = arith.constant 0 : index
    %c0_49 = arith.constant 0 : index
    %48 = vector.load %arg3[%c0_48, %c0_49] : memref<288x768xf32, #tpu.memory_space<vmem>>, vector<72x768xf32>
    %cst_50 = arith.constant dense<0.000000e+00> : vector<16x768xf32>
    %49 = tpu.matmul %46, %48, %cst_50 {dimension_numbers = #tpu.dot_dimension_numbers<[1], [0], [0], [1], [0, 0, 1, 1], [], []>} : vector<16x72xf32>, vector<72x768xf32>, vector<16x768xf32> -> vector<16x768xf32>
    %50 = vector.broadcast %47 : vector<16x1xf32> to vector<16x768xf32>
    %51 = arith.addf %49, %50 : vector<16x768xf32>
    %cst_51 = arith.constant 0.000000e+00 : f32
    %52 = vector.broadcast %cst_51 : f32 to vector<16x768xf32>
    %53 = arith.maximumf %51, %52 : vector<16x768xf32>
    %54 = vector.broadcast %0 : vector<1x768xf32> to vector<16x768xf32>
    %55 = arith.mulf %53, %54 : vector<16x768xf32>
    %c19_i32_52 = arith.constant 19 : i32
    %56 = tpu.dynamic_rotate %55 by %c19_i32_52 dim 1 : vector<16x768xf32>, i32 -> vector<16x768xf32>
    %c0_53 = arith.constant 0 : index
    %c0_54 = arith.constant 0 : index
    %57 = vector.load %arg3[%c0_53, %c0_54] : memref<288x768xf32, #tpu.memory_space<vmem>>, vector<16x768xf32>
    tpu.vector_store %arg3[%c0_53, %c0_54], %56 {strides = array<i32>} : memref<288x768xf32, #tpu.memory_space<vmem>>, vector<16x768xf32>,
    %c18_i32_55 = arith.constant 18 : i32
    %58 = tpu.dynamic_rotate %55 by %c18_i32_55 dim 1 : vector<16x768xf32>, i32 -> vector<16x768xf32>
    %c16_56 = arith.constant 16 : index
    %c0_57 = arith.constant 0 : index
    %59 = vector.load %arg3[%c16_56, %c0_57] : memref<288x768xf32, #tpu.memory_space<vmem>>, vector<16x768xf32>
    tpu.vector_store %arg3[%c16_56, %c0_57], %58 {strides = array<i32>} : memref<288x768xf32, #tpu.memory_space<vmem>>, vector<16x768xf32>,
    %c17_i32_58 = arith.constant 17 : i32
    %60 = tpu.dynamic_rotate %55 by %c17_i32_58 dim 1 : vector<16x768xf32>, i32 -> vector<16x768xf32>
    %c32_59 = arith.constant 32 : index
    %c0_60 = arith.constant 0 : index
    %61 = vector.load %arg3[%c32_59, %c0_60] : memref<288x768xf32, #tpu.memory_space<vmem>>, vector<16x768xf32>
    tpu.vector_store %arg3[%c32_59, %c0_60], %60 {strides = array<i32>} : memref<288x768xf32, #tpu.memory_space<vmem>>, vector<16x768xf32>,
    %c1_i32_61 = arith.constant 1 : i32
    %62 = tpu.dynamic_rotate %55 by %c1_i32_61 dim 1 : vector<16x768xf32>, i32 -> vector<16x768xf32>
    %c48_62 = arith.constant 48 : index
    %c0_63 = arith.constant 0 : index
    %63 = vector.load %arg3[%c48_62, %c0_63] : memref<288x768xf32, #tpu.memory_space<vmem>>, vector<16x768xf32>
    tpu.vector_store %arg3[%c48_62, %c0_63], %62 {strides = array<i32>} : memref<288x768xf32, #tpu.memory_space<vmem>>, vector<16x768xf32>,
    %c64_64 = arith.constant 64 : index
    %c0_65 = arith.constant 0 : index
    %64 = vector.load %arg3[%c64_64, %c0_65] : memref<288x768xf32, #tpu.memory_space<vmem>>, vector<16x768xf32>
    tpu.vector_store %arg3[%c64_64, %c0_65], %55 {strides = array<i32>} : memref<288x768xf32, #tpu.memory_space<vmem>>, vector<16x768xf32>,
    %c767_i32_66 = arith.constant 767 : i32
    %65 = tpu.dynamic_rotate %55 by %c767_i32_66 dim 1 : vector<16x768xf32>, i32 -> vector<16x768xf32>
    %c80 = arith.constant 80 : index
    %c0_67 = arith.constant 0 : index
    %66 = vector.load %arg3[%c80, %c0_67] : memref<288x768xf32, #tpu.memory_space<vmem>>, vector<16x768xf32>
    tpu.vector_store %arg3[%c80, %c0_67], %65 {strides = array<i32>} : memref<288x768xf32, #tpu.memory_space<vmem>>, vector<16x768xf32>,
    %c751_i32_68 = arith.constant 751 : i32
    %67 = tpu.dynamic_rotate %55 by %c751_i32_68 dim 1 : vector<16x768xf32>, i32 -> vector<16x768xf32>
    %c96 = arith.constant 96 : index
    %c0_69 = arith.constant 0 : index
    %68 = vector.load %arg3[%c96, %c0_69] : memref<288x768xf32, #tpu.memory_space<vmem>>, vector<16x768xf32>
    tpu.vector_store %arg3[%c96, %c0_69], %67 {strides = array<i32>} : memref<288x768xf32, #tpu.memory_space<vmem>>, vector<16x768xf32>,
    %c750_i32_70 = arith.constant 750 : i32
    %69 = tpu.dynamic_rotate %55 by %c750_i32_70 dim 1 : vector<16x768xf32>, i32 -> vector<16x768xf32>
    %c112 = arith.constant 112 : index
    %c0_71 = arith.constant 0 : index
    %70 = vector.load %arg3[%c112, %c0_71] : memref<288x768xf32, #tpu.memory_space<vmem>>, vector<16x768xf32>
    tpu.vector_store %arg3[%c112, %c0_71], %69 {strides = array<i32>} : memref<288x768xf32, #tpu.memory_space<vmem>>, vector<16x768xf32>,
    %c749_i32_72 = arith.constant 749 : i32
    %71 = tpu.dynamic_rotate %55 by %c749_i32_72 dim 1 : vector<16x768xf32>, i32 -> vector<16x768xf32>
    %c128 = arith.constant 128 : index
    %c0_73 = arith.constant 0 : index
    %72 = vector.load %arg3[%c128, %c0_73] : memref<288x768xf32, #tpu.memory_space<vmem>>, vector<16x768xf32>
    tpu.vector_store %arg3[%c128, %c0_73], %71 {strides = array<i32>} : memref<288x768xf32, #tpu.memory_space<vmem>>, vector<16x768xf32>,
    %c24_74 = arith.constant 24 : index
    %c0_75 = arith.constant 0 : index
    %73 = vector.load %arg1[%c24_74, %c0_75] : memref<64x768xf32, #tpu.memory_space<vmem>>, vector<32x144xf32>
    %c24_76 = arith.constant 24 : index
    %c288_77 = arith.constant 288 : index
    %74 = vector.load %arg1[%c24_76, %c288_77] : memref<64x768xf32, #tpu.memory_space<vmem>>, vector<32x1xf32>
    %c0_78 = arith.constant 0 : index
    %c0_79 = arith.constant 0 : index
    %75 = vector.load %arg3[%c0_78, %c0_79] : memref<288x768xf32, #tpu.memory_space<vmem>>, vector<144x768xf32>
    %cst_80 = arith.constant dense<0.000000e+00> : vector<32x768xf32>
    %76 = tpu.matmul %73, %75, %cst_80 {dimension_numbers = #tpu.dot_dimension_numbers<[1], [0], [0], [1], [0, 0, 1, 1], [], []>} : vector<32x144xf32>, vector<144x768xf32>, vector<32x768xf32> -> vector<32x768xf32>
    %77 = vector.broadcast %74 : vector<32x1xf32> to vector<32x768xf32>
    %78 = arith.addf %76, %77 : vector<32x768xf32>
    %cst_81 = arith.constant 0.000000e+00 : f32
    %79 = vector.broadcast %cst_81 : f32 to vector<32x768xf32>
    %80 = arith.maximumf %78, %79 : vector<32x768xf32>
    %81 = vector.broadcast %0 : vector<1x768xf32> to vector<32x768xf32>
    %82 = arith.mulf %80, %81 : vector<32x768xf32>
    %c19_i32_82 = arith.constant 19 : i32
    %83 = tpu.dynamic_rotate %82 by %c19_i32_82 dim 1 : vector<32x768xf32>, i32 -> vector<32x768xf32>
    %c0_83 = arith.constant 0 : index
    %c0_84 = arith.constant 0 : index
    %84 = vector.load %arg3[%c0_83, %c0_84] : memref<288x768xf32, #tpu.memory_space<vmem>>, vector<32x768xf32>
    tpu.vector_store %arg3[%c0_83, %c0_84], %83 {strides = array<i32>} : memref<288x768xf32, #tpu.memory_space<vmem>>, vector<32x768xf32>,
    %c18_i32_85 = arith.constant 18 : i32
    %85 = tpu.dynamic_rotate %82 by %c18_i32_85 dim 1 : vector<32x768xf32>, i32 -> vector<32x768xf32>
    %c32_86 = arith.constant 32 : index
    %c0_87 = arith.constant 0 : index
    %86 = vector.load %arg3[%c32_86, %c0_87] : memref<288x768xf32, #tpu.memory_space<vmem>>, vector<32x768xf32>
    tpu.vector_store %arg3[%c32_86, %c0_87], %85 {strides = array<i32>} : memref<288x768xf32, #tpu.memory_space<vmem>>, vector<32x768xf32>,
    %c17_i32_88 = arith.constant 17 : i32
    %87 = tpu.dynamic_rotate %82 by %c17_i32_88 dim 1 : vector<32x768xf32>, i32 -> vector<32x768xf32>
    %c64_89 = arith.constant 64 : index
    %c0_90 = arith.constant 0 : index
    %88 = vector.load %arg3[%c64_89, %c0_90] : memref<288x768xf32, #tpu.memory_space<vmem>>, vector<32x768xf32>
    tpu.vector_store %arg3[%c64_89, %c0_90], %87 {strides = array<i32>} : memref<288x768xf32, #tpu.memory_space<vmem>>, vector<32x768xf32>,
    %c1_i32_91 = arith.constant 1 : i32
    %89 = tpu.dynamic_rotate %82 by %c1_i32_91 dim 1 : vector<32x768xf32>, i32 -> vector<32x768xf32>
    %c96_92 = arith.constant 96 : index
    %c0_93 = arith.constant 0 : index
    %90 = vector.load %arg3[%c96_92, %c0_93] : memref<288x768xf32, #tpu.memory_space<vmem>>, vector<32x768xf32>
    tpu.vector_store %arg3[%c96_92, %c0_93], %89 {strides = array<i32>} : memref<288x768xf32, #tpu.memory_space<vmem>>, vector<32x768xf32>,
    %c128_94 = arith.constant 128 : index
    %c0_95 = arith.constant 0 : index
    %91 = vector.load %arg3[%c128_94, %c0_95] : memref<288x768xf32, #tpu.memory_space<vmem>>, vector<32x768xf32>
    tpu.vector_store %arg3[%c128_94, %c0_95], %82 {strides = array<i32>} : memref<288x768xf32, #tpu.memory_space<vmem>>, vector<32x768xf32>,
    %c767_i32_96 = arith.constant 767 : i32
    %92 = tpu.dynamic_rotate %82 by %c767_i32_96 dim 1 : vector<32x768xf32>, i32 -> vector<32x768xf32>
    %c160 = arith.constant 160 : index
    %c0_97 = arith.constant 0 : index
    %93 = vector.load %arg3[%c160, %c0_97] : memref<288x768xf32, #tpu.memory_space<vmem>>, vector<32x768xf32>
    tpu.vector_store %arg3[%c160, %c0_97], %92 {strides = array<i32>} : memref<288x768xf32, #tpu.memory_space<vmem>>, vector<32x768xf32>,
    %c751_i32_98 = arith.constant 751 : i32
    %94 = tpu.dynamic_rotate %82 by %c751_i32_98 dim 1 : vector<32x768xf32>, i32 -> vector<32x768xf32>
    %c192 = arith.constant 192 : index
    %c0_99 = arith.constant 0 : index
    %95 = vector.load %arg3[%c192, %c0_99] : memref<288x768xf32, #tpu.memory_space<vmem>>, vector<32x768xf32>
    tpu.vector_store %arg3[%c192, %c0_99], %94 {strides = array<i32>} : memref<288x768xf32, #tpu.memory_space<vmem>>, vector<32x768xf32>,
    %c750_i32_100 = arith.constant 750 : i32
    %96 = tpu.dynamic_rotate %82 by %c750_i32_100 dim 1 : vector<32x768xf32>, i32 -> vector<32x768xf32>
    %c224 = arith.constant 224 : index
    %c0_101 = arith.constant 0 : index
    %97 = vector.load %arg3[%c224, %c0_101] : memref<288x768xf32, #tpu.memory_space<vmem>>, vector<32x768xf32>
    tpu.vector_store %arg3[%c224, %c0_101], %96 {strides = array<i32>} : memref<288x768xf32, #tpu.memory_space<vmem>>, vector<32x768xf32>,
    %c749_i32_102 = arith.constant 749 : i32
    %98 = tpu.dynamic_rotate %82 by %c749_i32_102 dim 1 : vector<32x768xf32>, i32 -> vector<32x768xf32>
    %c256 = arith.constant 256 : index
    %c0_103 = arith.constant 0 : index
    %99 = vector.load %arg3[%c256, %c0_103] : memref<288x768xf32, #tpu.memory_space<vmem>>, vector<32x768xf32>
    tpu.vector_store %arg3[%c256, %c0_103], %98 {strides = array<i32>} : memref<288x768xf32, #tpu.memory_space<vmem>>, vector<32x768xf32>,
    %c56_104 = arith.constant 56 : index
    %c0_105 = arith.constant 0 : index
    %100 = vector.load %arg1[%c56_104, %c0_105] : memref<64x768xf32, #tpu.memory_space<vmem>>, vector<4x288xf32>
    %c56_106 = arith.constant 56 : index
    %c288_107 = arith.constant 288 : index
    %101 = vector.load %arg1[%c56_106, %c288_107] : memref<64x768xf32, #tpu.memory_space<vmem>>, vector<4x1xf32>
    %c0_108 = arith.constant 0 : index
    %c0_109 = arith.constant 0 : index
    %102 = vector.load %arg3[%c0_108, %c0_109] : memref<288x768xf32, #tpu.memory_space<vmem>>, vector<288x768xf32>
    %cst_110 = arith.constant dense<0.000000e+00> : vector<4x768xf32>
    %103 = tpu.matmul %100, %102, %cst_110 {dimension_numbers = #tpu.dot_dimension_numbers<[1], [0], [0], [1], [0, 0, 1, 1], [], []>} : vector<4x288xf32>, vector<288x768xf32>, vector<4x768xf32> -> vector<4x768xf32>
    %104 = vector.broadcast %101 : vector<4x1xf32> to vector<4x768xf32>
    %105 = arith.addf %103, %104 : vector<4x768xf32>
    %cst_111 = arith.constant 0.000000e+00 : f32
    %106 = vector.broadcast %cst_111 : f32 to vector<4x768xf32>
    %107 = arith.maximumf %105, %106 : vector<4x768xf32>
    %cst_112 = arith.constant dense<0xFF800000> : vector<768xf32>
    %108 = vector.multi_reduction <maximumf>, %107, %cst_112 [0] : vector<4x768xf32> to vector<768xf32>
    %109 = vector.shape_cast %108 : vector<768xf32> to vector<1x768xf32>
    %110 = vector.broadcast %109 : vector<1x768xf32> to vector<4x768xf32>
    %111 = arith.subf %107, %110 : vector<4x768xf32>
    %112 = math.exp %111 : vector<4x768xf32>
    %cst_113 = arith.constant dense<0.000000e+00> : vector<768xf32>
    %113 = vector.multi_reduction <add>, %112, %cst_113 [0] : vector<4x768xf32> to vector<768xf32>
    %114 = vector.shape_cast %113 : vector<768xf32> to vector<1x768xf32>
    %115 = tpu.reciprocal %114 : vector<1x768xf32> -> vector<1x768xf32>
    %116 = vector.broadcast %115 : vector<1x768xf32> to vector<4x768xf32>
    %117 = arith.mulf %112, %116 : vector<4x768xf32>
    %cst_114 = arith.constant 0.000000e+00 : f32
    %118 = vector.broadcast %cst_114 : f32 to vector<4x768xf32>
    %119 = tpu.concatenate %117, %118 in 0 : vector<4x768xf32>, vector<4x768xf32> -> vector<8x768xf32>
    %c0_115 = arith.constant 0 : index
    %c0_116 = arith.constant 0 : index
    %120 = vector.load %arg2[%c0_115, %c0_116] : memref<8x768xf32, #tpu.memory_space<vmem>>, vector<8x768xf32>
    tpu.vector_store %arg2[%c0_115, %c0_116], %119 {strides = array<i32>} : memref<8x768xf32, #tpu.memory_space<vmem>>, vector<8x768xf32>,
    return
  }
}

</mosaic_0001>

<llo_original>
// kernel: perceptual_laserscan_conv_forward.1
$region0: #{perceptual_laserscan_conv_forward.1}
  #allocation0 [shape = 'u32[]', space=smem, size = 0x4, offset = 0x4, fixed_abs, tag = 'smem constant byte address 0x4 - core index']
  #allocation1 [shape = 'u32[144,128]{1,0:T(1,128)}', space=vmem, size = 0x12000, scoped, tag = 'internal scratch']
  #allocation2 [shape = 'f32[288,768]{1,0:T(8,128)}', space=vmem, size = 0xd8000, scoped, tag = 'scratch operand']
  %s0 = inlined_call_operand.vmem [shape: f32[8,768], index: 0, kind: input, shape index: {}]
  %s1 = inlined_call_operand.vmem [shape: f32[64,768], index: 1, kind: input, shape index: {}]
  %s2 = inlined_call_operand.vmem [shape: f32[8,768], index: 2, kind: output, shape index: {}]
  %s3 = sld [smem:[#allocation0]]
  $region18: #{perceptual_laserscan_conv_forward.1} parent=0
    _
  %s5 = ssub.s32 1, %s3
  %s6 = scalar_select 0, %s5, %s3
  // Predicated region
  $region2: #{perceptual_laserscan_conv_forward.1} parent=0 // pred_check
    _
  $region3: #{perceptual_laserscan_conv_forward.1} parent=0 // pred_check_branch
    %8 = sbr.rel (0) target = $region5
  $region4: #{perceptual_laserscan_conv_forward.1} parent=0 // pred_region
    _
  $region5: #{perceptual_laserscan_conv_forward.1} parent=0 // pred_fallthru
    _
  // Predicated region
  $region6: #{perceptual_laserscan_conv_forward.1} parent=0 // pred_check
    _
  $region7: #{perceptual_laserscan_conv_forward.1} parent=0 // pred_check_branch
    %10 = sbr.rel (0) target = $region9
  $region8: #{perceptual_laserscan_conv_forward.1} parent=0 // pred_region
    _
  $region9: #{perceptual_laserscan_conv_forward.1} parent=0 // pred_fallthru
    _
  %s11 = scalar_lea.vmem %s1, 340
  %v12 = vld [vmem:[%s11] ss:$8 sm:$0xf]
  %v13 = vld [vmem:[%s11] ss:$8 sm:$0x30]
  %v14 = vor.u32 %v12, %v13
  %v15 = vld [vmem:[%s0] sm:$0xff]
  %v16 = vld [vmem:[%s0 + $0x8] sm:$0xff]
  %v17 = vld [vmem:[%s0 + $0x10] sm:$0xff]
  %v18 = vld [vmem:[%s0 + $0x18] sm:$0xff]
  %v19 = vld [vmem:[%s0 + $0x20] sm:$0xff]
  %v20 = vld [vmem:[%s0 + $0x28] sm:$0xff]
  %21 = vrot.lane.b32.xlu0 %v15, 19
  %v22 = vpop.permute.xlu0 %21
  %23 = vrot.lane.b32.xlu0 %v16, 19
  %v24 = vpop.permute.xlu0 %23
  %25 = vrot.lane.b32.xlu0 %v17, 19
  %v26 = vpop.permute.xlu0 %25
  %27 = vrot.lane.b32.xlu0 %v18, 19
  %v28 = vpop.permute.xlu0 %27
  %29 = vrot.lane.b32.xlu0 %v19, 19
  %v30 = vpop.permute.xlu0 %29
  %31 = vrot.lane.b32.xlu0 %v20, 19
  %v32 = vpop.permute.xlu0 %31
  %v33 = vlaneseq
  %v34 = vand.u32 %v33, 127
  %vm35 = vcmp.lt.s32.totalorder %v34, 19
  %v36 = vsel %vm35, %v30, %v32
  %v37 = vsel %vm35, %v28, %v30
  %v38 = vsel %vm35, %v26, %v28
  %v39 = vsel %vm35, %v24, %v26
  %v40 = vsel %vm35, %v22, %v24
  %v41 = vsel %vm35, %v32, %v22
  %42 = vst [vmem:[#allocation2] sm:$0xff] %v41
  %43 = vst [vmem:[#allocation2 + $0x8] sm:$0xff] %v40
  %44 = vst [vmem:[#allocation2 + $0x10] sm:$0xff] %v39
  %45 = vst [vmem:[#allocation2 + $0x18] sm:$0xff] %v38
  %46 = vst [vmem:[#allocation2 + $0x20] sm:$0xff] %v37
  %47 = vst [vmem:[#allocation2 + $0x28] sm:$0xff] %v36
  %48 = vrot.lane.b32.xlu0 %v15, 18
  %v49 = vpop.permute.xlu0 %48
  %50 = vrot.lane.b32.xlu0 %v16, 18
  %v51 = vpop.permute.xlu0 %50
  %52 = vrot.lane.b32.xlu0 %v17, 18
  %v53 = vpop.permute.xlu0 %52
  %54 = vrot.lane.b32.xlu0 %v18, 18
  %v55 = vpop.permute.xlu0 %54
  %56 = vrot.lane.b32.xlu0 %v19, 18
  %v57 = vpop.permute.xlu0 %56
  %58 = vrot.lane.b32.xlu0 %v20, 18
  %v59 = vpop.permute.xlu0 %58
  %vm60 = vcmp.lt.s32.totalorder %v34, 18
  %v61 = vsel %vm60, %v57, %v59
  %v62 = vsel %vm60, %v55, %v57
  %v63 = vsel %vm60, %v53, %v55
  %v64 = vsel %vm60, %v51, %v53
  %v65 = vsel %vm60, %v49, %v51
  %v66 = vsel %vm60, %v59, %v49
  %67 = vst [vmem:[#allocation2 + $0x30] sm:$0xff] %v66
  %68 = vst [vmem:[#allocation2 + $0x38] sm:$0xff] %v65
  %69 = vst [vmem:[#allocation2 + $0x40] sm:$0xff] %v64
  %70 = vst [vmem:[#allocation2 + $0x48] sm:$0xff] %v63
  %71 = vst [vmem:[#allocation2 + $0x50] sm:$0xff] %v62
  %72 = vst [vmem:[#allocation2 + $0x58] sm:$0xff] %v61
  %73 = vrot.lane.b32.xlu0 %v15, 17
  %v74 = vpop.permute.xlu0 %73
  %75 = vrot.lane.b32.xlu0 %v16, 17
  %v76 = vpop.permute.xlu0 %75
  %77 = vrot.lane.b32.xlu0 %v17, 17
  %v78 = vpop.permute.xlu0 %77
  %79 = vrot.lane.b32.xlu0 %v18, 17
  %v80 = vpop.permute.xlu0 %79
  %81 = vrot.lane.b32.xlu0 %v19, 17
  %v82 = vpop.permute.xlu0 %81
  %83 = vrot.lane.b32.xlu0 %v20, 17
  %v84 = vpop.permute.xlu0 %83
  %vm85 = vcmp.lt.s32.totalorder %v34, 17
  %v86 = vsel %vm85, %v82, %v84
  %v87 = vsel %vm85, %v80, %v82
  %v88 = vsel %vm85, %v78, %v80
  %v89 = vsel %vm85, %v76, %v78
  %v90 = vsel %vm85, %v74, %v76
  %v91 = vsel %vm85, %v84, %v74
  %92 = vst [vmem:[#allocation2 + $0x60] sm:$0xff] %v91
  %93 = vst [vmem:[#allocation2 + $0x68] sm:$0xff] %v90
  %94 = vst [vmem:[#allocation2 + $0x70] sm:$0xff] %v89
  %95 = vst [vmem:[#allocation2 + $0x78] sm:$0xff] %v88
  %96 = vst [vmem:[#allocation2 + $0x80] sm:$0xff] %v87
  %97 = vst [vmem:[#allocation2 + $0x88] sm:$0xff] %v86
  %98 = vrot.lane.b32.xlu0 %v15, 1
  %v99 = vpop.permute.xlu0 %98
  %100 = vrot.lane.b32.xlu0 %v16, 1
  %v101 = vpop.permute.xlu0 %100
  %102 = vrot.lane.b32.xlu0 %v17, 1
  %v103 = vpop.permute.xlu0 %102
  %104 = vrot.lane.b32.xlu0 %v18, 1
  %v105 = vpop.permute.xlu0 %104
  %106 = vrot.lane.b32.xlu0 %v19, 1
  %v107 = vpop.permute.xlu0 %106
  %108 = vrot.lane.b32.xlu0 %v20, 1
  %v109 = vpop.permute.xlu0 %108
  %vm110 = vcmp.lt.s32.totalorder %v34, 1
  %v111 = vsel %vm110, %v107, %v109
  %v112 = vsel %vm110, %v105, %v107
  %v113 = vsel %vm110, %v103, %v105
  %v114 = vsel %vm110, %v101, %v103
  %v115 = vsel %vm110, %v99, %v101
  %v116 = vsel %vm110, %v109, %v99
  %117 = vst [vmem:[#allocation2 + $0x90] sm:$0xff] %v116
  %118 = vst [vmem:[#allocation2 + $0x98] sm:$0xff] %v115
  %119 = vst [vmem:[#allocation2 + $0xa0] sm:$0xff] %v114
  %120 = vst [vmem:[#allocation2 + $0xa8] sm:$0xff] %v113
  %121 = vst [vmem:[#allocation2 + $0xb0] sm:$0xff] %v112
  %122 = vst [vmem:[#allocation2 + $0xb8] sm:$0xff] %v111
  %123 = vst [vmem:[#allocation2 + $0xc0] sm:$0xff] %v15
  %124 = vst [vmem:[#allocation2 + $0xc8] sm:$0xff] %v16
  %125 = vst [vmem:[#allocation2 + $0xd0] sm:$0xff] %v17
  %126 = vst [vmem:[#allocation2 + $0xd8] sm:$0xff] %v18
  %127 = vst [vmem:[#allocation2 + $0xe0] sm:$0xff] %v19
  %128 = vst [vmem:[#allocation2 + $0xe8] sm:$0xff] %v20
  %129 = vrot.lane.b32.xlu0 %v15, 127
  %v130 = vpop.permute.xlu0 %129
  %131 = vrot.lane.b32.xlu0 %v16, 127
  %v132 = vpop.permute.xlu0 %131
  %133 = vrot.lane.b32.xlu0 %v17, 127
  %v134 = vpop.permute.xlu0 %133
  %135 = vrot.lane.b32.xlu0 %v18, 127
  %v136 = vpop.permute.xlu0 %135
  %137 = vrot.lane.b32.xlu0 %v19, 127
  %v138 = vpop.permute.xlu0 %137
  %139 = vrot.lane.b32.xlu0 %v20, 127
  %v140 = vpop.permute.xlu0 %139
  %vm141 = vcmp.lt.s32.totalorder %v34, 127
  %v142 = vsel %vm141, %v138, %v140
  %v143 = vsel %vm141, %v136, %v138
  %v144 = vsel %vm141, %v134, %v136
  %v145 = vsel %vm141, %v132, %v134
  %v146 = vsel %vm141, %v130, %v132
  %v147 = vsel %vm141, %v140, %v130
  %148 = vst [vmem:[#allocation2 + $0xf0] sm:$0xff] %v146
  %149 = vst [vmem:[#allocation2 + $0xf8] sm:$0xff] %v145
  %150 = vst [vmem:[#allocation2 + $0x100] sm:$0xff] %v144
  %151 = vst [vmem:[#allocation2 + $0x108] sm:$0xff] %v143
  %152 = vst [vmem:[#allocation2 + $0x110] sm:$0xff] %v142
  %153 = vst [vmem:[#allocation2 + $0x118] sm:$0xff] %v147
  %154 = vrot.lane.b32.xlu0 %v15, 111
  %v155 = vpop.permute.xlu0 %154
  %156 = vrot.lane.b32.xlu0 %v16, 111
  %v157 = vpop.permute.xlu0 %156
  %158 = vrot.lane.b32.xlu0 %v17, 111
  %v159 = vpop.permute.xlu0 %158
  %160 = vrot.lane.b32.xlu0 %v18, 111
  %v161 = vpop.permute.xlu0 %160
  %162 = vrot.lane.b32.xlu0 %v19, 111
  %v163 = vpop.permute.xlu0 %162
  %164 = vrot.lane.b32.xlu0 %v20, 111
  %v165 = vpop.permute.xlu0 %164
  %vm166 = vcmp.lt.s32.totalorder %v34, 111
  %v167 = vsel %vm166, %v163, %v165
  %v168 = vsel %vm166, %v161, %v163
  %v169 = vsel %vm166, %v159, %v161
  %v170 = vsel %vm166, %v157, %v159
  %v171 = vsel %vm166, %v155, %v157
  %v172 = vsel %vm166, %v165, %v155
  %173 = vst [vmem:[#allocation2 + $0x120] sm:$0xff] %v171
  %174 = vst [vmem:[#allocation2 + $0x128] sm:$0xff] %v170
  %175 = vst [vmem:[#allocation2 + $0x130] sm:$0xff] %v169
  %176 = vst [vmem:[#allocation2 + $0x138] sm:$0xff] %v168
  %177 = vst [vmem:[#allocation2 + $0x140] sm:$0xff] %v167
  %178 = vst [vmem:[#allocation2 + $0x148] sm:$0xff] %v172
  %179 = vrot.lane.b32.xlu0 %v15, 110
  %v180 = vpop.permute.xlu0 %179
  %181 = vrot.lane.b32.xlu0 %v16, 110
  %v182 = vpop.permute.xlu0 %181
  %183 = vrot.lane.b32.xlu0 %v17, 110
  %v184 = vpop.permute.xlu0 %183
  %185 = vrot.lane.b32.xlu0 %v18, 110
  %v186 = vpop.permute.xlu0 %185
  %187 = vrot.lane.b32.xlu0 %v19, 110
  %v188 = vpop.permute.xlu0 %187
  %189 = vrot.lane.b32.xlu0 %v20, 110
  %v190 = vpop.permute.xlu0 %189
  %vm191 = vcmp.lt.s32.totalorder %v34, 110
  %v192 = vsel %vm191, %v188, %v190
  %v193 = vsel %vm191, %v186, %v188
  %v194 = vsel %vm191, %v184, %v186
  %v195 = vsel %vm191, %v182, %v184
  %v196 = vsel %vm191, %v180, %v182
  %v197 = vsel %vm191, %v190, %v180
  %198 = vst [vmem:[#allocation2 + $0x150] sm:$0xff] %v196
  %199 = vst [vmem:[#allocation2 + $0x158] sm:$0xff] %v195
  %200 = vst [vmem:[#allocation2 + $0x160] sm:$0xff] %v194
  %201 = vst [vmem:[#allocation2 + $0x168] sm:$0xff] %v193
  %202 = vst [vmem:[#allocation2 + $0x170] sm:$0xff] %v192
  %203 = vst [vmem:[#allocation2 + $0x178] sm:$0xff] %v197
  %204 = vrot.lane.b32.xlu0 %v15, 109
  %v205 = vpop.permute.xlu0 %204
  %206 = vrot.lane.b32.xlu0 %v16, 109
  %v207 = vpop.permute.xlu0 %206
  %208 = vrot.lane.b32.xlu0 %v17, 109
  %v209 = vpop.permute.xlu0 %208
  %210 = vrot.lane.b32.xlu0 %v18, 109
  %v211 = vpop.permute.xlu0 %210
  %212 = vrot.lane.b32.xlu0 %v19, 109
  %v213 = vpop.permute.xlu0 %212
  %214 = vrot.lane.b32.xlu0 %v20, 109
  %v215 = vpop.permute.xlu0 %214
  %vm216 = vcmp.lt.s32.totalorder %v34, 109
  %v217 = vsel %vm216, %v213, %v215
  %v218 = vsel %vm216, %v211, %v213
  %v219 = vsel %vm216, %v209, %v211
  %v220 = vsel %vm216, %v207, %v209
  %v221 = vsel %vm216, %v205, %v207
  %v222 = vsel %vm216, %v215, %v205
  %223 = vst [vmem:[#allocation2 + $0x180] sm:$0xff] %v221
  %224 = vst [vmem:[#allocation2 + $0x188] sm:$0xff] %v220
  %225 = vst [vmem:[#allocation2 + $0x190] sm:$0xff] %v219
  %226 = vst [vmem:[#allocation2 + $0x198] sm:$0xff] %v218
  %227 = vst [vmem:[#allocation2 + $0x1a0] sm:$0xff] %v217
  %228 = vst [vmem:[#allocation2 + $0x1a8] sm:$0xff] %v222
  %v229 = vld [vmem:[%s1] sm:$0xff]
  %v230 = vld [vmem:[%s1 + $0x10] sm:$0xff]
  %v231 = vld [vmem:[#allocation2] sm:$0xff]
  %v232 = vld [vmem:[#allocation2 + $0x8] sm:$0xff]
  %v233 = vld [vmem:[#allocation2 + $0x10] sm:$0xff]
  %v234 = vld [vmem:[#allocation2 + $0x18] sm:$0xff]
  %v235 = vld [vmem:[#allocation2 + $0x20] sm:$0xff]
  %v236 = vld [vmem:[#allocation2 + $0x28] sm:$0xff]
  %v237 = vld [vmem:[#allocation2 + $0x30] sm:$0xff]
  %v238 = vld [vmem:[#allocation2 + $0x38] sm:$0xff]
  %v239 = vld [vmem:[#allocation2 + $0x40] sm:$0xff]
  %v240 = vld [vmem:[#allocation2 + $0x48] sm:$0xff]
  %v241 = vld [vmem:[#allocation2 + $0x50] sm:$0xff]
  %v242 = vld [vmem:[#allocation2 + $0x58] sm:$0xff]
  %v243 = vld [vmem:[#allocation2 + $0x60] sm:$0xff]
  %v244 = vld [vmem:[#allocation2 + $0x68] sm:$0xff]
  %v245 = vld [vmem:[#allocation2 + $0x70] sm:$0xff]
  %v246 = vld [vmem:[#allocation2 + $0x78] sm:$0xff]
  %v247 = vld [vmem:[#allocation2 + $0x80] sm:$0xff]
  %v248 = vld [vmem:[#allocation2 + $0x88] sm:$0xff]
  %v249 = vld [vmem:[#allocation2 + $0x90] sm:$0xff]
  %v250 = vld [vmem:[#allocation2 + $0x98] sm:$0xff]
  %v251 = vld [vmem:[#allocation2 + $0xa0] sm:$0xff]
  %v252 = vld [vmem:[#allocation2 + $0xa8] sm:$0xff]
  %v253 = vld [vmem:[#allocation2 + $0xb0] sm:$0xff]
  %v254 = vld [vmem:[#allocation2 + $0xb8] sm:$0xff]
  %v255 = vld [vmem:[#allocation2 + $0xc0] sm:$0xff]
  %v256 = vld [vmem:[#allocation2 + $0xc8] sm:$0xff]
  %v257 = vld [vmem:[#allocation2 + $0xd0] sm:$0xff]
  %v258 = vld [vmem:[#allocation2 + $0xd8] sm:$0xff]
  %v259 = vld [vmem:[#allocation2 + $0xe0] sm:$0xff]
  %v260 = vld [vmem:[#allocation2 + $0xe8] sm:$0xff]
  %v261 = vld [vmem:[#allocation2 + $0xf0] sm:$0xff]
  %v262 = vld [vmem:[#allocation2 + $0xf8] sm:$0xff]
  %v263 = vld [vmem:[#allocation2 + $0x100] sm:$0xff]
  %v264 = vld [vmem:[#allocation2 + $0x108] sm:$0xff]
  %v265 = vld [vmem:[#allocation2 + $0x110] sm:$0xff]
  %v266 = vld [vmem:[#allocation2 + $0x118] sm:$0xff]
  %v267 = vld [vmem:[#allocation2 + $0x120] sm:$0xff]
  %v268 = vld [vmem:[#allocation2 + $0x128] sm:$0xff]
  %v269 = vld [vmem:[#allocation2 + $0x130] sm:$0xff]
  %v270 = vld [vmem:[#allocation2 + $0x138] sm:$0xff]
  %v271 = vld [vmem:[#allocation2 + $0x140] sm:$0xff]
  %v272 = vld [vmem:[#allocation2 + $0x148] sm:$0xff]
  %v273 = vld [vmem:[#allocation2 + $0x150] sm:$0xff]
  %v274 = vld [vmem:[#allocation2 + $0x158] sm:$0xff]
  %v275 = vld [vmem:[#allocation2 + $0x160] sm:$0xff]
  %v276 = vld [vmem:[#allocation2 + $0x168] sm:$0xff]
  %v277 = vld [vmem:[#allocation2 + $0x170] sm:$0xff]
  %v278 = vld [vmem:[#allocation2 + $0x178] sm:$0xff]
  %v279 = vld [vmem:[#allocation2 + $0x180] sm:$0xff]
  %v280 = vld [vmem:[#allocation2 + $0x188] sm:$0xff]
  %v281 = vld [vmem:[#allocation2 + $0x190] sm:$0xff]
  %v282 = vld [vmem:[#allocation2 + $0x198] sm:$0xff]
  %v283 = vld [vmem:[#allocation2 + $0x1a0] sm:$0xff]
  %v284 = vld [vmem:[#allocation2 + $0x1a8] sm:$0xff]
  %286 = vset.pattern.permute.xlu0 32
  %287 = vperm.xlu0 %286, %v230
  %v288 = vpop.permute.xlu0 %287
  %vm290 = vcmask 588800
  %v292 = vsel %vm290, %v229, 0
  %294 = vmatprep.subr.mxu0 0.0
  %295 = vmatpush1.msra.mxu0 0.0
  %296 = vmatprep.subr.mxu0 0.0
  %297 = vmatpush1.msra.mxu0 0.0
  %298 = vmatprep.subr.mxu0 0.0
  %299 = vmatpush1.msra.mxu0 0.0
  %300 = vmatprep.subr.mxu0 0.0
  %301 = vmatpush1.msra.mxu0 0.0
  %302 = vmatprep.subr.mxu0 0.0
  %303 = vmatpush1.msra.mxu0 0.0
  %304 = vmatprep.subr.mxu0 0.0
  %305 = vmatpush1.msra.mxu0 0.0
  %306 = vmatprep.subr.mxu0 0.0
  %307 = vmatpush1.msra.mxu0 0.0
  %308 = vmatprep.subr.mxu0 %v280
  %309 = vmatpush1.msra.mxu0 %v279
  %310 = vmatprep.subr.mxu0 %v274
  %311 = vmatpush1.msra.mxu0 %v273
  %312 = vmatprep.subr.mxu0 %v268
  %313 = vmatpush1.msra.mxu0 %v267
  %314 = vmatprep.subr.mxu0 %v262
  %315 = vmatpush1.msra.mxu0 %v261
  %316 = vmatprep.subr.mxu0 %v256
  %317 = vmatpush1.msra.mxu0 %v255
  %318 = vmatprep.subr.mxu0 %v250
  %319 = vmatpush1.msra.mxu0 %v249
  %320 = vmatprep.subr.mxu0 %v244
  %321 = vmatpush1.msra.mxu0 %v243
  %322 = vmatprep.subr.mxu0 %v238
  %323 = vmatpush1.msra.mxu0 %v237
  %324 = vmatprep.subr.mxu0 %v232
  %325 = vmatpush1.msra.mxu0 %v231
  %326 = vmatprep.subr.mxu0 0.0
  %327 = vmatpush2.msra.mxu0 0.0
  %328 = vmatprep.subr.mxu0 0.0
  %329 = vmatpush2.msra.mxu0 0.0
  %330 = vmatprep.subr.mxu0 0.0
  %331 = vmatpush2.msra.mxu0 0.0
  %332 = vmatprep.subr.mxu0 0.0
  %333 = vmatpush2.msra.mxu0 0.0
  %334 = vmatprep.subr.mxu0 0.0
  %335 = vmatpush2.msra.mxu0 0.0
  %336 = vmatprep.subr.mxu0 0.0
  %337 = vmatpush2.msra.mxu0 0.0
  %338 = vmatprep.subr.mxu0 0.0
  %339 = vmatpush2.msra.mxu0 0.0
  %340 = vmatprep.subr.mxu0 0.0
  %341 = vmatpush2.msra.mxu0 0.0
  %342 = vmatprep.subr.mxu0 0.0
  %343 = vmatpush2.msra.mxu0 0.0
  %344 = vmatprep.subr.mxu0 0.0
  %345 = vmatpush2.msra.mxu0 0.0
  %346 = vmatprep.subr.mxu0 0.0
  %347 = vmatpush2.msra.mxu0 0.0
  %348 = vmatprep.subr.mxu0 0.0
  %349 = vmatpush2.msra.mxu0 0.0
  %350 = vmatprep.subr.mxu0 0.0
  %351 = vmatpush2.msra.mxu0 0.0
  %352 = vmatprep.subr.mxu0 0.0
  %353 = vmatpush2.msra.mxu0 0.0
  %354 = vmatprep.subr.mxu0 0.0
  %355 = vmatpush2.msra.mxu0 0.0
  %356 = vmatprep.subr.mxu0 0.0
  %357 = vmatpush2.msra.mxu0 0.0
  %358 = vmatprep.mubr.f32.mxu0 0.0
  %359 = vmatmul.mubr.f32.gmra.mxu0 %v292
  %v360 = vpop.f32.mrf.mxu0
  %v361 = vadd.f32 %v288, %v360
  %v362 = vpop.f32.mrf.mxu0
  %v363 = vadd.f32 %v288, %v362
  %364 = vdwg.mxu0
  %365 = vmatprep.subr.mxu0 0.0
  %366 = vmatpush1.msra.mxu0 0.0
  %367 = vmatprep.subr.mxu0 0.0
  %368 = vmatpush1.msra.mxu0 0.0
  %369 = vmatprep.subr.mxu0 0.0
  %370 = vmatpush1.msra.mxu0 0.0
  %371 = vmatprep.subr.mxu0 0.0
  %372 = vmatpush1.msra.mxu0 0.0
  %373 = vmatprep.subr.mxu0 0.0
  %374 = vmatpush1.msra.mxu0 0.0
  %375 = vmatprep.subr.mxu0 0.0
  %376 = vmatpush1.msra.mxu0 0.0
  %377 = vmatprep.subr.mxu0 0.0
  %378 = vmatpush1.msra.mxu0 0.0
  %379 = vmatprep.subr.mxu0 %v282
  %380 = vmatpush1.msra.mxu0 %v281
  %381 = vmatprep.subr.mxu0 %v276
  %382 = vmatpush1.msra.mxu0 %v275
  %383 = vmatprep.subr.mxu0 %v270
  %384 = vmatpush1.msra.mxu0 %v269
  %385 = vmatprep.subr.mxu0 %v264
  %386 = vmatpush1.msra.mxu0 %v263
  %387 = vmatprep.subr.mxu0 %v258
  %388 = vmatpush1.msra.mxu0 %v257
  %389 = vmatprep.subr.mxu0 %v252
  %390 = vmatpush1.msra.mxu0 %v251
  %391 = vmatprep.subr.mxu0 %v246
  %392 = vmatpush1.msra.mxu0 %v245
  %393 = vmatprep.subr.mxu0 %v240
  %394 = vmatpush1.msra.mxu0 %v239
  %395 = vmatprep.subr.mxu0 %v234
  %396 = vmatpush1.msra.mxu0 %v233
  %397 = vmatprep.subr.mxu0 0.0
  %398 = vmatpush2.msra.mxu0 0.0
  %399 = vmatprep.subr.mxu0 0.0
  %400 = vmatpush2.msra.mxu0 0.0
  %401 = vmatprep.subr.mxu0 0.0
  %402 = vmatpush2.msra.mxu0 0.0
  %403 = vmatprep.subr.mxu0 0.0
  %404 = vmatpush2.msra.mxu0 0.0
  %405 = vmatprep.subr.mxu0 0.0
  %406 = vmatpush2.msra.mxu0 0.0
  %407 = vmatprep.subr.mxu0 0.0
  %408 = vmatpush2.msra.mxu0 0.0
  %409 = vmatprep.subr.mxu0 0.0
  %410 = vmatpush2.msra.mxu0 0.0
  %411 = vmatprep.subr.mxu0 0.0
  %412 = vmatpush2.msra.mxu0 0.0
  %413 = vmatprep.subr.mxu0 0.0
  %414 = vmatpush2.msra.mxu0 0.0
  %415 = vmatprep.subr.mxu0 0.0
  %416 = vmatpush2.msra.mxu0 0.0
  %417 = vmatprep.subr.mxu0 0.0
  %418 = vmatpush2.msra.mxu0 0.0
  %419 = vmatprep.subr.mxu0 0.0
  %420 = vmatpush2.msra.mxu0 0.0
  %421 = vmatprep.subr.mxu0 0.0
  %422 = vmatpush2.msra.mxu0 0.0
  %423 = vmatprep.subr.mxu0 0.0
  %424 = vmatpush2.msra.mxu0 0.0
  %425 = vmatprep.subr.mxu0 0.0
  %426 = vmatpush2.msra.mxu0 0.0
  %427 = vmatprep.subr.mxu0 0.0
  %428 = vmatpush2.msra.mxu0 0.0
  %429 = vmatprep.mubr.f32.mxu0 0.0
  %430 = vmatmul.mubr.f32.gmra.mxu0 %v292
  %v431 = vpop.f32.mrf.mxu0
  %v432 = vadd.f32 %v288, %v431
  %v433 = vpop.f32.mrf.mxu0
  %v434 = vadd.f32 %v288, %v433
  %435 = vdwg.mxu0
  %436 = vmatprep.subr.mxu0 0.0
  %437 = vmatpush1.msra.mxu0 0.0
  %438 = vmatprep.subr.mxu0 0.0
  %439 = vmatpush1.msra.mxu0 0.0
  %440 = vmatprep.subr.mxu0 0.0
  %441 = vmatpush1.msra.mxu0 0.0
  %442 = vmatprep.subr.mxu0 0.0
  %443 = vmatpush1.msra.mxu0 0.0
  %444 = vmatprep.subr.mxu0 0.0
  %445 = vmatpush1.msra.mxu0 0.0
  %446 = vmatprep.subr.mxu0 0.0
  %447 = vmatpush1.msra.mxu0 0.0
  %448 = vmatprep.subr.mxu0 0.0
  %449 = vmatpush1.msra.mxu0 0.0
  %450 = vmatprep.subr.mxu0 %v284
  %451 = vmatpush1.msra.mxu0 %v283
  %452 = vmatprep.subr.mxu0 %v278
  %453 = vmatpush1.msra.mxu0 %v277
  %454 = vmatprep.subr.mxu0 %v272
  %455 = vmatpush1.msra.mxu0 %v271
  %456 = vmatprep.subr.mxu0 %v266
  %457 = vmatpush1.msra.mxu0 %v265
  %458 = vmatprep.subr.mxu0 %v260
  %459 = vmatpush1.msra.mxu0 %v259
  %460 = vmatprep.subr.mxu0 %v254
  %461 = vmatpush1.msra.mxu0 %v253
  %462 = vmatprep.subr.mxu0 %v248
  %463 = vmatpush1.msra.mxu0 %v247
  %464 = vmatprep.subr.mxu0 %v242
  %465 = vmatpush1.msra.mxu0 %v241
  %466 = vmatprep.subr.mxu0 %v236
  %467 = vmatpush1.msra.mxu0 %v235
  %468 = vmatprep.subr.mxu0 0.0
  %469 = vmatpush2.msra.mxu0 0.0
  %470 = vmatprep.subr.mxu0 0.0
  %471 = vmatpush2.msra.mxu0 0.0
  %472 = vmatprep.subr.mxu0 0.0
  %473 = vmatpush2.msra.mxu0 0.0
  %474 = vmatprep.subr.mxu0 0.0
  %475 = vmatpush2.msra.mxu0 0.0
  %476 = vmatprep.subr.mxu0 0.0
  %477 = vmatpush2.msra.mxu0 0.0
  %478 = vmatprep.subr.mxu0 0.0
  %479 = vmatpush2.msra.mxu0 0.0
  %480 = vmatprep.subr.mxu0 0.0
  %481 = vmatpush2.msra.mxu0 0.0
  %482 = vmatprep.subr.mxu0 0.0
  %483 = vmatpush2.msra.mxu0 0.0
  %484 = vmatprep.subr.mxu0 0.0
  %485 = vmatpush2.msra.mxu0 0.0
  %486 = vmatprep.subr.mxu0 0.0
  %487 = vmatpush2.msra.mxu0 0.0
  %488 = vmatprep.subr.mxu0 0.0
  %489 = vmatpush2.msra.mxu0 0.0
  %490 = vmatprep.subr.mxu0 0.0
  %491 = vmatpush2.msra.mxu0 0.0
  %492 = vmatprep.subr.mxu0 0.0
  %493 = vmatpush2.msra.mxu0 0.0
  %494 = vmatprep.subr.mxu0 0.0
  %495 = vmatpush2.msra.mxu0 0.0
  %496 = vmatprep.subr.mxu0 0.0
  %497 = vmatpush2.msra.mxu0 0.0
  %498 = vmatprep.subr.mxu0 0.0
  %499 = vmatpush2.msra.mxu0 0.0
  %500 = vmatprep.mubr.f32.mxu0 0.0
  %501 = vmatmul.mubr.f32.gmra.mxu0 %v292
  %v502 = vpop.f32.mrf.mxu0
  %v503 = vadd.f32 %v288, %v502
  %v504 = vpop.f32.mrf.mxu0
  %v505 = vadd.f32 %v288, %v504
  %506 = vdwg.mxu0
  %v507 = vmax.f32 %v361, 0.0
  %v508 = vmax.f32 %v363, 0.0
  %v509 = vmax.f32 %v432, 0.0
  %v510 = vmax.f32 %v434, 0.0
  %v511 = vmax.f32 %v503, 0.0
  %v512 = vmax.f32 %v505, 0.0
  %v514 = vlaneseq
  %v515 = vshrl.u32 %v514, 7
  %v516 = vsub.s32 0, %v515
  %v517 = vrot.slane %v14, %v516
  %v518 = vlaneseq
  %v519 = vshrl.u32 %v518, 7
  %v520 = vsub.s32 1, %v519
  %v521 = vrot.slane %v14, %v520
  %v522 = vlaneseq
  %v523 = vshrl.u32 %v522, 7
  %v524 = vsub.s32 2, %v523
  %v525 = vrot.slane %v14, %v524
  %v526 = vlaneseq
  %v527 = vshrl.u32 %v526, 7
  %v528 = vsub.s32 3, %v527
  %v529 = vrot.slane %v14, %v528
  %v530 = vlaneseq
  %v531 = vshrl.u32 %v530, 7
  %v532 = vsub.s32 4, %v531
  %v533 = vrot.slane %v14, %v532
  %v534 = vlaneseq
  %v535 = vshrl.u32 %v534, 7
  %v536 = vsub.s32 5, %v535
  %v537 = vrot.slane %v14, %v536
  %v544 = vmul.f32 %v507, %v517
  %v545 = vmul.f32 %v508, %v521
  %v546 = vmul.f32 %v509, %v525
  %v547 = vmul.f32 %v510, %v529
  %v548 = vmul.f32 %v511, %v533
  %v549 = vmul.f32 %v512, %v537
  %550 = vrot.lane.b32.xlu0 %v544, 19
  %v551 = vpop.permute.xlu0 %550
  %552 = vrot.lane.b32.xlu0 %v545, 19
  %v553 = vpop.permute.xlu0 %552
  %554 = vrot.lane.b32.xlu0 %v546, 19
  %v555 = vpop.permute.xlu0 %554
  %556 = vrot.lane.b32.xlu0 %v547, 19
  %v557 = vpop.permute.xlu0 %556
  %558 = vrot.lane.b32.xlu0 %v548, 19
  %v559 = vpop.permute.xlu0 %558
  %560 = vrot.lane.b32.xlu0 %v549, 19
  %v561 = vpop.permute.xlu0 %560
  %v562 = vsel %vm35, %v559, %v561
  %v563 = vsel %vm35, %v557, %v559
  %v564 = vsel %vm35, %v555, %v557
  %v565 = vsel %vm35, %v553, %v555
  %v566 = vsel %vm35, %v551, %v553
  %v567 = vsel %vm35, %v561, %v551
  %568 = vst [vmem:[#allocation2] sm:$0xff] %v567
  %569 = vst [vmem:[#allocation2 + $0x8] sm:$0xff] %v566
  %570 = vst [vmem:[#allocation2 + $0x10] sm:$0xff] %v565
  %571 = vst [vmem:[#allocation2 + $0x18] sm:$0xff] %v564
  %572 = vst [vmem:[#allocation2 + $0x20] sm:$0xff] %v563
  %573 = vst [vmem:[#allocation2 + $0x28] sm:$0xff] %v562
  %574 = vrot.lane.b32.xlu0 %v544, 18
  %v575 = vpop.permute.xlu0 %574
  %576 = vrot.lane.b32.xlu0 %v545, 18
  %v577 = vpop.permute.xlu0 %576
  %578 = vrot.lane.b32.xlu0 %v546, 18
  %v579 = vpop.permute.xlu0 %578
  %580 = vrot.lane.b32.xlu0 %v547, 18
  %v581 = vpop.permute.xlu0 %580
  %582 = vrot.lane.b32.xlu0 %v548, 18
  %v583 = vpop.permute.xlu0 %582
  %584 = vrot.lane.b32.xlu0 %v549, 18
  %v585 = vpop.permute.xlu0 %584
  %v586 = vsel %vm60, %v583, %v585
  %v587 = vsel %vm60, %v581, %v583
  %v588 = vsel %vm60, %v579, %v581
  %v589 = vsel %vm60, %v577, %v579
  %v590 = vsel %vm60, %v575, %v577
  %v591 = vsel %vm60, %v585, %v575
  %592 = vst [vmem:[#allocation2 + $0x30] sm:$0xff] %v591
  %593 = vst [vmem:[#allocation2 + $0x38] sm:$0xff] %v590
  %594 = vst [vmem:[#allocation2 + $0x40] sm:$0xff] %v589
  %595 = vst [vmem:[#allocation2 + $0x48] sm:$0xff] %v588
  %596 = vst [vmem:[#allocation2 + $0x50] sm:$0xff] %v587
  %597 = vst [vmem:[#allocation2 + $0x58] sm:$0xff] %v586
  %598 = vrot.lane.b32.xlu0 %v544, 17
  %v599 = vpop.permute.xlu0 %598
  %600 = vrot.lane.b32.xlu0 %v545, 17
  %v601 = vpop.permute.xlu0 %600
  %602 = vrot.lane.b32.xlu0 %v546, 17
  %v603 = vpop.permute.xlu0 %602
  %604 = vrot.lane.b32.xlu0 %v547, 17
  %v605 = vpop.permute.xlu0 %604
  %606 = vrot.lane.b32.xlu0 %v548, 17
  %v607 = vpop.permute.xlu0 %606
  %608 = vrot.lane.b32.xlu0 %v549, 17
  %v609 = vpop.permute.xlu0 %608
  %v610 = vsel %vm85, %v607, %v609
  %v611 = vsel %vm85, %v605, %v607
  %v612 = vsel %vm85, %v603, %v605
  %v613 = vsel %vm85, %v601, %v603
  %v614 = vsel %vm85, %v599, %v601
  %v615 = vsel %vm85, %v609, %v599
  %616 = vst [vmem:[#allocation2 + $0x60] sm:$0xff] %v615
  %617 = vst [vmem:[#allocation2 + $0x68] sm:$0xff] %v614
  %618 = vst [vmem:[#allocation2 + $0x70] sm:$0xff] %v613
  %619 = vst [vmem:[#allocation2 + $0x78] sm:$0xff] %v612
  %620 = vst [vmem:[#allocation2 + $0x80] sm:$0xff] %v611
  %621 = vst [vmem:[#allocation2 + $0x88] sm:$0xff] %v610
  %622 = vrot.lane.b32.xlu0 %v544, 1
  %v623 = vpop.permute.xlu0 %622
  %624 = vrot.lane.b32.xlu0 %v545, 1
  %v625 = vpop.permute.xlu0 %624
  %626 = vrot.lane.b32.xlu0 %v546, 1
  %v627 = vpop.permute.xlu0 %626
  %628 = vrot.lane.b32.xlu0 %v547, 1
  %v629 = vpop.permute.xlu0 %628
  %630 = vrot.lane.b32.xlu0 %v548, 1
  %v631 = vpop.permute.xlu0 %630
  %632 = vrot.lane.b32.xlu0 %v549, 1
  %v633 = vpop.permute.xlu0 %632
  %v634 = vsel %vm110, %v631, %v633
  %v635 = vsel %vm110, %v629, %v631
  %v636 = vsel %vm110, %v627, %v629
  %v637 = vsel %vm110, %v625, %v627
  %v638 = vsel %vm110, %v623, %v625
  %v639 = vsel %vm110, %v633, %v623
  %640 = vst [vmem:[#allocation2 + $0x90] sm:$0xff] %v639
  %641 = vst [vmem:[#allocation2 + $0x98] sm:$0xff] %v638
  %642 = vst [vmem:[#allocation2 + $0xa0] sm:$0xff] %v637
  %643 = vst [vmem:[#allocation2 + $0xa8] sm:$0xff] %v636
  %644 = vst [vmem:[#allocation2 + $0xb0] sm:$0xff] %v635
  %645 = vst [vmem:[#allocation2 + $0xb8] sm:$0xff] %v634
  %646 = vst [vmem:[#allocation2 + $0xc0] sm:$0xff] %v544
  %647 = vst [vmem:[#allocation2 + $0xc8] sm:$0xff] %v545
  %648 = vst [vmem:[#allocation2 + $0xd0] sm:$0xff] %v546
  %649 = vst [vmem:[#allocation2 + $0xd8] sm:$0xff] %v547
  %650 = vst [vmem:[#allocation2 + $0xe0] sm:$0xff] %v548
  %651 = vst [vmem:[#allocation2 + $0xe8] sm:$0xff] %v549
  %652 = vrot.lane.b32.xlu0 %v544, 127
  %v653 = vpop.permute.xlu0 %652
  %654 = vrot.lane.b32.xlu0 %v545, 127
  %v655 = vpop.permute.xlu0 %654
  %656 = vrot.lane.b32.xlu0 %v546, 127
  %v657 = vpop.permute.xlu0 %656
  %658 = vrot.lane.b32.xlu0 %v547, 127
  %v659 = vpop.permute.xlu0 %658
  %660 = vrot.lane.b32.xlu0 %v548, 127
  %v661 = vpop.permute.xlu0 %660
  %662 = vrot.lane.b32.xlu0 %v549, 127
  %v663 = vpop.permute.xlu0 %662
  %v664 = vsel %vm141, %v661, %v663
  %v665 = vsel %vm141, %v659, %v661
  %v666 = vsel %vm141, %v657, %v659
  %v667 = vsel %vm141, %v655, %v657
  %v668 = vsel %vm141, %v653, %v655
  %v669 = vsel %vm141, %v663, %v653
  %670 = vst [vmem:[#allocation2 + $0xf0] sm:$0xff] %v668
  %671 = vst [vmem:[#allocation2 + $0xf8] sm:$0xff] %v667
  %672 = vst [vmem:[#allocation2 + $0x100] sm:$0xff] %v666
  %673 = vst [vmem:[#allocation2 + $0x108] sm:$0xff] %v665
  %674 = vst [vmem:[#allocation2 + $0x110] sm:$0xff] %v664
  %675 = vst [vmem:[#allocation2 + $0x118] sm:$0xff] %v669
  %676 = vrot.lane.b32.xlu0 %v544, 111
  %v677 = vpop.permute.xlu0 %676
  %678 = vrot.lane.b32.xlu0 %v545, 111
  %v679 = vpop.permute.xlu0 %678
  %680 = vrot.lane.b32.xlu0 %v546, 111
  %v681 = vpop.permute.xlu0 %680
  %682 = vrot.lane.b32.xlu0 %v547, 111
  %v683 = vpop.permute.xlu0 %682
  %684 = vrot.lane.b32.xlu0 %v548, 111
  %v685 = vpop.permute.xlu0 %684
  %686 = vrot.lane.b32.xlu0 %v549, 111
  %v687 = vpop.permute.xlu0 %686
  %v688 = vsel %vm166, %v685, %v687
  %v689 = vsel %vm166, %v683, %v685
  %v690 = vsel %vm166, %v681, %v683
  %v691 = vsel %vm166, %v679, %v681
  %v692 = vsel %vm166, %v677, %v679
  %v693 = vsel %vm166, %v687, %v677
  %694 = vst [vmem:[#allocation2 + $0x120] sm:$0xff] %v692
  %695 = vst [vmem:[#allocation2 + $0x128] sm:$0xff] %v691
  %696 = vst [vmem:[#allocation2 + $0x130] sm:$0xff] %v690
  %697 = vst [vmem:[#allocation2 + $0x138] sm:$0xff] %v689
  %698 = vst [vmem:[#allocation2 + $0x140] sm:$0xff] %v688
  %699 = vst [vmem:[#allocation2 + $0x148] sm:$0xff] %v693
  %700 = vrot.lane.b32.xlu0 %v544, 110
  %v701 = vpop.permute.xlu0 %700
  %702 = vrot.lane.b32.xlu0 %v545, 110
  %v703 = vpop.permute.xlu0 %702
  %704 = vrot.lane.b32.xlu0 %v546, 110
  %v705 = vpop.permute.xlu0 %704
  %706 = vrot.lane.b32.xlu0 %v547, 110
  %v707 = vpop.permute.xlu0 %706
  %708 = vrot.lane.b32.xlu0 %v548, 110
  %v709 = vpop.permute.xlu0 %708
  %710 = vrot.lane.b32.xlu0 %v549, 110
  %v711 = vpop.permute.xlu0 %710
  %v712 = vsel %vm191, %v709, %v711
  %v713 = vsel %vm191, %v707, %v709
  %v714 = vsel %vm191, %v705, %v707
  %v715 = vsel %vm191, %v703, %v705
  %v716 = vsel %vm191, %v701, %v703
  %v717 = vsel %vm191, %v711, %v701
  %718 = vst [vmem:[#allocation2 + $0x150] sm:$0xff] %v716
  %719 = vst [vmem:[#allocation2 + $0x158] sm:$0xff] %v715
  %720 = vst [vmem:[#allocation2 + $0x160] sm:$0xff] %v714
  %721 = vst [vmem:[#allocation2 + $0x168] sm:$0xff] %v713
  %722 = vst [vmem:[#allocation2 + $0x170] sm:$0xff] %v712
  %723 = vst [vmem:[#allocation2 + $0x178] sm:$0xff] %v717
  %724 = vrot.lane.b32.xlu0 %v544, 109
  %v725 = vpop.permute.xlu0 %724
  %726 = vrot.lane.b32.xlu0 %v545, 109
  %v727 = vpop.permute.xlu0 %726
  %728 = vrot.lane.b32.xlu0 %v546, 109
  %v729 = vpop.permute.xlu0 %728
  %730 = vrot.lane.b32.xlu0 %v547, 109
  %v731 = vpop.permute.xlu0 %730
  %732 = vrot.lane.b32.xlu0 %v548, 109
  %v733 = vpop.permute.xlu0 %732
  %734 = vrot.lane.b32.xlu0 %v549, 109
  %v735 = vpop.permute.xlu0 %734
  %v736 = vsel %vm216, %v733, %v735
  %v737 = vsel %vm216, %v731, %v733
  %v738 = vsel %vm216, %v729, %v731
  %v739 = vsel %vm216, %v727, %v729
  %v740 = vsel %vm216, %v725, %v727
  %v741 = vsel %vm216, %v735, %v725
  %742 = vst [vmem:[#allocation2 + $0x180] sm:$0xff] %v740
  %743 = vst [vmem:[#allocation2 + $0x188] sm:$0xff] %v739
  %744 = vst [vmem:[#allocation2 + $0x190] sm:$0xff] %v738
  %745 = vst [vmem:[#allocation2 + $0x198] sm:$0xff] %v737
  %746 = vst [vmem:[#allocation2 + $0x1a0] sm:$0xff] %v736
  %747 = vst [vmem:[#allocation2 + $0x1a8] sm:$0xff] %v741
  %v748 = vld [vmem:[%s1 + $0x30] sm:$0xff]
  %v749 = vld [vmem:[%s1 + $0x60] sm:$0xff]
  %v750 = vld [vmem:[%s1 + $0x40] sm:$0xff]
  %v751 = vld [vmem:[%s1 + $0x70] sm:$0xff]
  %v752 = vld [vmem:[#allocation2] sm:$0xff]
  %v753 = vld [vmem:[#allocation2 + $0x8] sm:$0xff]
  %v754 = vld [vmem:[#allocation2 + $0x10] sm:$0xff]
  %v755 = vld [vmem:[#allocation2 + $0x18] sm:$0xff]
  %v756 = vld [vmem:[#allocation2 + $0x20] sm:$0xff]
  %v757 = vld [vmem:[#allocation2 + $0x28] sm:$0xff]
  %v758 = vld [vmem:[#allocation2 + $0x30] sm:$0xff]
  %v759 = vld [vmem:[#allocation2 + $0x38] sm:$0xff]
  %v760 = vld [vmem:[#allocation2 + $0x40] sm:$0xff]
  %v761 = vld [vmem:[#allocation2 + $0x48] sm:$0xff]
  %v762 = vld [vmem:[#allocation2 + $0x50] sm:$0xff]
  %v763 = vld [vmem:[#allocation2 + $0x58] sm:$0xff]
  %v764 = vld [vmem:[#allocation2 + $0x60] sm:$0xff]
  %v765 = vld [vmem:[#allocation2 + $0x68] sm:$0xff]
  %v766 = vld [vmem:[#allocation2 + $0x70] sm:$0xff]
  %v767 = vld [vmem:[#allocation2 + $0x78] sm:$0xff]
  %v768 = vld [vmem:[#allocation2 + $0x80] sm:$0xff]
  %v769 = vld [vmem:[#allocation2 + $0x88] sm:$0xff]
  %v770 = vld [vmem:[#allocation2 + $0x90] sm:$0xff]
  %v771 = vld [vmem:[#allocation2 + $0x98] sm:$0xff]
  %v772 = vld [vmem:[#allocation2 + $0xa0] sm:$0xff]
  %v773 = vld [vmem:[#allocation2 + $0xa8] sm:$0xff]
  %v774 = vld [vmem:[#allocation2 + $0xb0] sm:$0xff]
  %v775 = vld [vmem:[#allocation2 + $0xb8] sm:$0xff]
  %v776 = vld [vmem:[#allocation2 + $0xc0] sm:$0xff]
  %v777 = vld [vmem:[#allocation2 + $0xc8] sm:$0xff]
  %v778 = vld [vmem:[#allocation2 + $0xd0] sm:$0xff]
  %v779 = vld [vmem:[#allocation2 + $0xd8] sm:$0xff]
  %v780 = vld [vmem:[#allocation2 + $0xe0] sm:$0xff]
  %v781 = vld [vmem:[#allocation2 + $0xe8] sm:$0xff]
  %v782 = vld [vmem:[#allocation2 + $0xf0] sm:$0xff]
  %v783 = vld [vmem:[#allocation2 + $0xf8] sm:$0xff]
  %v784 = vld [vmem:[#allocation2 + $0x100] sm:$0xff]
  %v785 = vld [vmem:[#allocation2 + $0x108] sm:$0xff]
  %v786 = vld [vmem:[#allocation2 + $0x110] sm:$0xff]
  %v787 = vld [vmem:[#allocation2 + $0x118] sm:$0xff]
  %v788 = vld [vmem:[#allocation2 + $0x120] sm:$0xff]
  %v789 = vld [vmem:[#allocation2 + $0x128] sm:$0xff]
  %v790 = vld [vmem:[#allocation2 + $0x130] sm:$0xff]
  %v791 = vld [vmem:[#allocation2 + $0x138] sm:$0xff]
  %v792 = vld [vmem:[#allocation2 + $0x140] sm:$0xff]
  %v793 = vld [vmem:[#allocation2 + $0x148] sm:$0xff]
  %v794 = vld [vmem:[#allocation2 + $0x150] sm:$0xff]
  %v795 = vld [vmem:[#allocation2 + $0x158] sm:$0xff]
  %v796 = vld [vmem:[#allocation2 + $0x160] sm:$0xff]
  %v797 = vld [vmem:[#allocation2 + $0x168] sm:$0xff]
  %v798 = vld [vmem:[#allocation2 + $0x170] sm:$0xff]
  %v799 = vld [vmem:[#allocation2 + $0x178] sm:$0xff]
  %v800 = vld [vmem:[#allocation2 + $0x180] sm:$0xff]
  %v801 = vld [vmem:[#allocation2 + $0x188] sm:$0xff]
  %v802 = vld [vmem:[#allocation2 + $0x190] sm:$0xff]
  %v803 = vld [vmem:[#allocation2 + $0x198] sm:$0xff]
  %v804 = vld [vmem:[#allocation2 + $0x1a0] sm:$0xff]
  %v805 = vld [vmem:[#allocation2 + $0x1a8] sm:$0xff]
  %807 = vset.pattern.permute.xlu0 32
  %808 = vperm.xlu0 %807, %v750
  %v809 = vpop.permute.xlu0 %808
  %812 = vset.pattern.permute.xlu0 32
  %813 = vperm.xlu0 %812, %v751
  %v814 = vpop.permute.xlu0 %813
  %v817 = vsel %vm290, %v748, 0
  %v820 = vsel %vm290, %v749, 0
  %822 = vmatprep.subr.mxu0 0.0
  %823 = vmatpush1.msra.mxu0 0.0
  %824 = vmatprep.subr.mxu0 0.0
  %825 = vmatpush1.msra.mxu0 0.0
  %826 = vmatprep.subr.mxu0 0.0
  %827 = vmatpush1.msra.mxu0 0.0
  %828 = vmatprep.subr.mxu0 0.0
  %829 = vmatpush1.msra.mxu0 0.0
  %830 = vmatprep.subr.mxu0 0.0
  %831 = vmatpush1.msra.mxu0 0.0
  %832 = vmatprep.subr.mxu0 0.0
  %833 = vmatpush1.msra.mxu0 0.0
  %834 = vmatprep.subr.mxu0 0.0
  %835 = vmatpush1.msra.mxu0 0.0
  %836 = vmatprep.subr.mxu0 %v801
  %837 = vmatpush1.msra.mxu0 %v800
  %838 = vmatprep.subr.mxu0 %v795
  %839 = vmatpush1.msra.mxu0 %v794
  %840 = vmatprep.subr.mxu0 %v789
  %841 = vmatpush1.msra.mxu0 %v788
  %842 = vmatprep.subr.mxu0 %v783
  %843 = vmatpush1.msra.mxu0 %v782
  %844 = vmatprep.subr.mxu0 %v777
  %845 = vmatpush1.msra.mxu0 %v776
  %846 = vmatprep.subr.mxu0 %v771
  %847 = vmatpush1.msra.mxu0 %v770
  %848 = vmatprep.subr.mxu0 %v765
  %849 = vmatpush1.msra.mxu0 %v764
  %850 = vmatprep.subr.mxu0 %v759
  %851 = vmatpush1.msra.mxu0 %v758
  %852 = vmatprep.subr.mxu0 %v753
  %853 = vmatpush1.msra.mxu0 %v752
  %854 = vmatprep.subr.mxu0 0.0
  %855 = vmatpush2.msra.mxu0 0.0
  %856 = vmatprep.subr.mxu0 0.0
  %857 = vmatpush2.msra.mxu0 0.0
  %858 = vmatprep.subr.mxu0 0.0
  %859 = vmatpush2.msra.mxu0 0.0
  %860 = vmatprep.subr.mxu0 0.0
  %861 = vmatpush2.msra.mxu0 0.0
  %862 = vmatprep.subr.mxu0 0.0
  %863 = vmatpush2.msra.mxu0 0.0
  %864 = vmatprep.subr.mxu0 0.0
  %865 = vmatpush2.msra.mxu0 0.0
  %866 = vmatprep.subr.mxu0 0.0
  %867 = vmatpush2.msra.mxu0 0.0
  %868 = vmatprep.subr.mxu0 0.0
  %869 = vmatpush2.msra.mxu0 0.0
  %870 = vmatprep.subr.mxu0 0.0
  %871 = vmatpush2.msra.mxu0 0.0
  %872 = vmatprep.subr.mxu0 0.0
  %873 = vmatpush2.msra.mxu0 0.0
  %874 = vmatprep.subr.mxu0 0.0
  %875 = vmatpush2.msra.mxu0 0.0
  %876 = vmatprep.subr.mxu0 0.0
  %877 = vmatpush2.msra.mxu0 0.0
  %878 = vmatprep.subr.mxu0 0.0
  %879 = vmatpush2.msra.mxu0 0.0
  %880 = vmatprep.subr.mxu0 0.0
  %881 = vmatpush2.msra.mxu0 0.0
  %882 = vmatprep.subr.mxu0 0.0
  %883 = vmatpush2.msra.mxu0 0.0
  %884 = vmatprep.subr.mxu0 0.0
  %885 = vmatpush2.msra.mxu0 0.0
  %886 = vmatprep.mubr.f32.mxu0 0.0
  %887 = vmatmul.mubr.f32.gmra.mxu0 %v817
  %v888 = vpop.f32.mrf.mxu0
  %v889 = vadd.f32 %v809, %v888
  %v890 = vpop.f32.mrf.mxu0
  %v891 = vadd.f32 %v809, %v890
  %892 = vmatprep.mubr.f32.mxu0 0.0
  %893 = vmatmul.mubr.f32.gmra.mxu0 %v820
  %v894 = vpop.f32.mrf.mxu0
  %v895 = vadd.f32 %v814, %v894
  %v896 = vpop.f32.mrf.mxu0
  %v897 = vadd.f32 %v814, %v896
  %898 = vdwg.mxu0
  %899 = vmatprep.subr.mxu0 0.0
  %900 = vmatpush1.msra.mxu0 0.0
  %901 = vmatprep.subr.mxu0 0.0
  %902 = vmatpush1.msra.mxu0 0.0
  %903 = vmatprep.subr.mxu0 0.0
  %904 = vmatpush1.msra.mxu0 0.0
  %905 = vmatprep.subr.mxu0 0.0
  %906 = vmatpush1.msra.mxu0 0.0
  %907 = vmatprep.subr.mxu0 0.0
  %908 = vmatpush1.msra.mxu0 0.0
  %909 = vmatprep.subr.mxu0 0.0
  %910 = vmatpush1.msra.mxu0 0.0
  %911 = vmatprep.subr.mxu0 0.0
  %912 = vmatpush1.msra.mxu0 0.0
  %913 = vmatprep.subr.mxu0 %v803
  %914 = vmatpush1.msra.mxu0 %v802
  %915 = vmatprep.subr.mxu0 %v797
  %916 = vmatpush1.msra.mxu0 %v796
  %917 = vmatprep.subr.mxu0 %v791
  %918 = vmatpush1.msra.mxu0 %v790
  %919 = vmatprep.subr.mxu0 %v785
  %920 = vmatpush1.msra.mxu0 %v784
  %921 = vmatprep.subr.mxu0 %v779
  %922 = vmatpush1.msra.mxu0 %v778
  %923 = vmatprep.subr.mxu0 %v773
  %924 = vmatpush1.msra.mxu0 %v772
  %925 = vmatprep.subr.mxu0 %v767
  %926 = vmatpush1.msra.mxu0 %v766
  %927 = vmatprep.subr.mxu0 %v761
  %928 = vmatpush1.msra.mxu0 %v760
  %929 = vmatprep.subr.mxu0 %v755
  %930 = vmatpush1.msra.mxu0 %v754
  %931 = vmatprep.subr.mxu0 0.0
  %932 = vmatpush2.msra.mxu0 0.0
  %933 = vmatprep.subr.mxu0 0.0
  %934 = vmatpush2.msra.mxu0 0.0
  %935 = vmatprep.subr.mxu0 0.0
  %936 = vmatpush2.msra.mxu0 0.0
  %937 = vmatprep.subr.mxu0 0.0
  %938 = vmatpush2.msra.mxu0 0.0
  %939 = vmatprep.subr.mxu0 0.0
  %940 = vmatpush2.msra.mxu0 0.0
  %941 = vmatprep.subr.mxu0 0.0
  %942 = vmatpush2.msra.mxu0 0.0
  %943 = vmatprep.subr.mxu0 0.0
  %944 = vmatpush2.msra.mxu0 0.0
  %945 = vmatprep.subr.mxu0 0.0
  %946 = vmatpush2.msra.mxu0 0.0
  %947 = vmatprep.subr.mxu0 0.0
  %948 = vmatpush2.msra.mxu0 0.0
  %949 = vmatprep.subr.mxu0 0.0
  %950 = vmatpush2.msra.mxu0 0.0
  %951 = vmatprep.subr.mxu0 0.0
  %952 = vmatpush2.msra.mxu0 0.0
  %953 = vmatprep.subr.mxu0 0.0
  %954 = vmatpush2.msra.mxu0 0.0
  %955 = vmatprep.subr.mxu0 0.0
  %956 = vmatpush2.msra.mxu0 0.0
  %957 = vmatprep.subr.mxu0 0.0
  %958 = vmatpush2.msra.mxu0 0.0
  %959 = vmatprep.subr.mxu0 0.0
  %960 = vmatpush2.msra.mxu0 0.0
  %961 = vmatprep.subr.mxu0 0.0
  %962 = vmatpush2.msra.mxu0 0.0
  %963 = vmatprep.mubr.f32.mxu0 0.0
  %964 = vmatmul.mubr.f32.gmra.mxu0 %v817
  %v965 = vpop.f32.mrf.mxu0
  %v966 = vadd.f32 %v809, %v965
  %v967 = vpop.f32.mrf.mxu0
  %v968 = vadd.f32 %v809, %v967
  %969 = vmatprep.mubr.f32.mxu0 0.0
  %970 = vmatmul.mubr.f32.gmra.mxu0 %v820
  %v971 = vpop.f32.mrf.mxu0
  %v972 = vadd.f32 %v814, %v971
  %v973 = vpop.f32.mrf.mxu0
  %v974 = vadd.f32 %v814, %v973
  %975 = vdwg.mxu0
  %976 = vmatprep.subr.mxu0 0.0
  %977 = vmatpush1.msra.mxu0 0.0
  %978 = vmatprep.subr.mxu0 0.0
  %979 = vmatpush1.msra.mxu0 0.0
  %980 = vmatprep.subr.mxu0 0.0
  %981 = vmatpush1.msra.mxu0 0.0
  %982 = vmatprep.subr.mxu0 0.0
  %983 = vmatpush1.msra.mxu0 0.0
  %984 = vmatprep.subr.mxu0 0.0
  %985 = vmatpush1.msra.mxu0 0.0
  %986 = vmatprep.subr.mxu0 0.0
  %987 = vmatpush1.msra.mxu0 0.0
  %988 = vmatprep.subr.mxu0 0.0
  %989 = vmatpush1.msra.mxu0 0.0
  %990 = vmatprep.subr.mxu0 %v805
  %991 = vmatpush1.msra.mxu0 %v804
  %992 = vmatprep.subr.mxu0 %v799
  %993 = vmatpush1.msra.mxu0 %v798
  %994 = vmatprep.subr.mxu0 %v793
  %995 = vmatpush1.msra.mxu0 %v792
  %996 = vmatprep.subr.mxu0 %v787
  %997 = vmatpush1.msra.mxu0 %v786
  %998 = vmatprep.subr.mxu0 %v781
  %999 = vmatpush1.msra.mxu0 %v780
  %1000 = vmatprep.subr.mxu0 %v775
  %1001 = vmatpush1.msra.mxu0 %v774
  %1002 = vmatprep.subr.mxu0 %v769
  %1003 = vmatpush1.msra.mxu0 %v768
  %1004 = vmatprep.subr.mxu0 %v763
  %1005 = vmatpush1.msra.mxu0 %v762
  %1006 = vmatprep.subr.mxu0 %v757
  %1007 = vmatpush1.msra.mxu0 %v756
  %1008 = vmatprep.subr.mxu0 0.0
  %1009 = vmatpush2.msra.mxu0 0.0
  %1010 = vmatprep.subr.mxu0 0.0
  %1011 = vmatpush2.msra.mxu0 0.0
  %1012 = vmatprep.subr.mxu0 0.0
  %1013 = vmatpush2.msra.mxu0 0.0
  %1014 = vmatprep.subr.mxu0 0.0
  %1015 = vmatpush2.msra.mxu0 0.0
  %1016 = vmatprep.subr.mxu0 0.0
  %1017 = vmatpush2.msra.mxu0 0.0
  %1018 = vmatprep.subr.mxu0 0.0
  %1019 = vmatpush2.msra.mxu0 0.0
  %1020 = vmatprep.subr.mxu0 0.0
  %1021 = vmatpush2.msra.mxu0 0.0
  %1022 = vmatprep.subr.mxu0 0.0
  %1023 = vmatpush2.msra.mxu0 0.0
  %1024 = vmatprep.subr.mxu0 0.0
  %1025 = vmatpush2.msra.mxu0 0.0
  %1026 = vmatprep.subr.mxu0 0.0
  %1027 = vmatpush2.msra.mxu0 0.0
  %1028 = vmatprep.subr.mxu0 0.0
  %1029 = vmatpush2.msra.mxu0 0.0
  %1030 = vmatprep.subr.mxu0 0.0
  %1031 = vmatpush2.msra.mxu0 0.0
  %1032 = vmatprep.subr.mxu0 0.0
  %1033 = vmatpush2.msra.mxu0 0.0
  %1034 = vmatprep.subr.mxu0 0.0
  %1035 = vmatpush2.msra.mxu0 0.0
  %1036 = vmatprep.subr.mxu0 0.0
  %1037 = vmatpush2.msra.mxu0 0.0
  %1038 = vmatprep.subr.mxu0 0.0
  %1039 = vmatpush2.msra.mxu0 0.0
  %1040 = vmatprep.mubr.f32.mxu0 0.0
  %1041 = vmatmul.mubr.f32.gmra.mxu0 %v817
  %v1042 = vpop.f32.mrf.mxu0
  %v1043 = vadd.f32 %v809, %v1042
  %v1044 = vpop.f32.mrf.mxu0
  %v1045 = vadd.f32 %v809, %v1044
  %1046 = vmatprep.mubr.f32.mxu0 0.0
  %1047 = vmatmul.mubr.f32.gmra.mxu0 %v820
  %v1048 = vpop.f32.mrf.mxu0
  %v1049 = vadd.f32 %v814, %v1048
  %v1050 = vpop.f32.mrf.mxu0
  %v1051 = vadd.f32 %v814, %v1050
  %1052 = vdwg.mxu0
  %v1053 = vmax.f32 %v889, 0.0
  %v1054 = vmax.f32 %v891, 0.0
  %v1055 = vmax.f32 %v966, 0.0
  %v1056 = vmax.f32 %v968, 0.0
  %v1057 = vmax.f32 %v1043, 0.0
  %v1058 = vmax.f32 %v1045, 0.0
  %v1059 = vmax.f32 %v895, 0.0
  %v1060 = vmax.f32 %v897, 0.0
  %v1061 = vmax.f32 %v972, 0.0
  %v1062 = vmax.f32 %v974, 0.0
  %v1063 = vmax.f32 %v1049, 0.0
  %v1064 = vmax.f32 %v1051, 0.0
  %v1065 = vmul.f32 %v1053, %v517
  %v1066 = vmul.f32 %v1054, %v521
  %v1067 = vmul.f32 %v1055, %v525
  %v1068 = vmul.f32 %v1056, %v529
  %v1069 = vmul.f32 %v1057, %v533
  %v1070 = vmul.f32 %v1058, %v537
  %v1071 = vmul.f32 %v1059, %v517
  %v1072 = vmul.f32 %v1060, %v521
  %v1073 = vmul.f32 %v1061, %v525
  %v1074 = vmul.f32 %v1062, %v529
  %v1075 = vmul.f32 %v1063, %v533
  %v1076 = vmul.f32 %v1064, %v537
  %1077 = vrot.lane.b32.xlu0 %v1065, 19
  %v1078 = vpop.permute.xlu0 %1077
  %1079 = vrot.lane.b32.xlu0 %v1071, 19
  %v1080 = vpop.permute.xlu0 %1079
  %1081 = vrot.lane.b32.xlu0 %v1066, 19
  %v1082 = vpop.permute.xlu0 %1081
  %1083 = vrot.lane.b32.xlu0 %v1072, 19
  %v1084 = vpop.permute.xlu0 %1083
  %1085 = vrot.lane.b32.xlu0 %v1067, 19
  %v1086 = vpop.permute.xlu0 %1085
  %1087 = vrot.lane.b32.xlu0 %v1073, 19
  %v1088 = vpop.permute.xlu0 %1087
  %1089 = vrot.lane.b32.xlu0 %v1068, 19
  %v1090 = vpop.permute.xlu0 %1089
  %1091 = vrot.lane.b32.xlu0 %v1074, 19
  %v1092 = vpop.permute.xlu0 %1091
  %1093 = vrot.lane.b32.xlu0 %v1069, 19
  %v1094 = vpop.permute.xlu0 %1093
  %1095 = vrot.lane.b32.xlu0 %v1075, 19
  %v1096 = vpop.permute.xlu0 %1095
  %1097 = vrot.lane.b32.xlu0 %v1070, 19
  %v1098 = vpop.permute.xlu0 %1097
  %1099 = vrot.lane.b32.xlu0 %v1076, 19
  %v1100 = vpop.permute.xlu0 %1099
  %v1101 = vsel %vm35, %v1094, %v1098
  %v1102 = vsel %vm35, %v1096, %v1100
  %v1103 = vsel %vm35, %v1090, %v1094
  %v1104 = vsel %vm35, %v1092, %v1096
  %v1105 = vsel %vm35, %v1086, %v1090
  %v1106 = vsel %vm35, %v1088, %v1092
  %v1107 = vsel %vm35, %v1082, %v1086
  %v1108 = vsel %vm35, %v1084, %v1088
  %v1109 = vsel %vm35, %v1078, %v1082
  %v1110 = vsel %vm35, %v1080, %v1084
  %v1111 = vsel %vm35, %v1098, %v1078
  %v1112 = vsel %vm35, %v1100, %v1080
  %1113 = vst [vmem:[#allocation2] sm:$0xff] %v1111
  %1114 = vst [vmem:[#allocation2 + $0x8] sm:$0xff] %v1109
  %1115 = vst [vmem:[#allocation2 + $0x10] sm:$0xff] %v1107
  %1116 = vst [vmem:[#allocation2 + $0x18] sm:$0xff] %v1105
  %1117 = vst [vmem:[#allocation2 + $0x20] sm:$0xff] %v1103
  %1118 = vst [vmem:[#allocation2 + $0x28] sm:$0xff] %v1101
  %1119 = vst [vmem:[#allocation2 + $0x30] sm:$0xff] %v1112
  %1120 = vst [vmem:[#allocation2 + $0x38] sm:$0xff] %v1110
  %1121 = vst [vmem:[#allocation2 + $0x40] sm:$0xff] %v1108
  %1122 = vst [vmem:[#allocation2 + $0x48] sm:$0xff] %v1106
  %1123 = vst [vmem:[#allocation2 + $0x50] sm:$0xff] %v1104
  %1124 = vst [vmem:[#allocation2 + $0x58] sm:$0xff] %v1102
  %1125 = vrot.lane.b32.xlu0 %v1065, 18
  %v1126 = vpop.permute.xlu0 %1125
  %1127 = vrot.lane.b32.xlu0 %v1071, 18
  %v1128 = vpop.permute.xlu0 %1127
  %1129 = vrot.lane.b32.xlu0 %v1066, 18
  %v1130 = vpop.permute.xlu0 %1129
  %1131 = vrot.lane.b32.xlu0 %v1072, 18
  %v1132 = vpop.permute.xlu0 %1131
  %1133 = vrot.lane.b32.xlu0 %v1067, 18
  %v1134 = vpop.permute.xlu0 %1133
  %1135 = vrot.lane.b32.xlu0 %v1073, 18
  %v1136 = vpop.permute.xlu0 %1135
  %1137 = vrot.lane.b32.xlu0 %v1068, 18
  %v1138 = vpop.permute.xlu0 %1137
  %1139 = vrot.lane.b32.xlu0 %v1074, 18
  %v1140 = vpop.permute.xlu0 %1139
  %1141 = vrot.lane.b32.xlu0 %v1069, 18
  %v1142 = vpop.permute.xlu0 %1141
  %1143 = vrot.lane.b32.xlu0 %v1075, 18
  %v1144 = vpop.permute.xlu0 %1143
  %1145 = vrot.lane.b32.xlu0 %v1070, 18
  %v1146 = vpop.permute.xlu0 %1145
  %1147 = vrot.lane.b32.xlu0 %v1076, 18
  %v1148 = vpop.permute.xlu0 %1147
  %v1149 = vsel %vm60, %v1142, %v1146
  %v1150 = vsel %vm60, %v1144, %v1148
  %v1151 = vsel %vm60, %v1138, %v1142
  %v1152 = vsel %vm60, %v1140, %v1144
  %v1153 = vsel %vm60, %v1134, %v1138
  %v1154 = vsel %vm60, %v1136, %v1140
  %v1155 = vsel %vm60, %v1130, %v1134
  %v1156 = vsel %vm60, %v1132, %v1136
  %v1157 = vsel %vm60, %v1126, %v1130
  %v1158 = vsel %vm60, %v1128, %v1132
  %v1159 = vsel %vm60, %v1146, %v1126
  %v1160 = vsel %vm60, %v1148, %v1128
  %1161 = vst [vmem:[#allocation2 + $0x60] sm:$0xff] %v1159
  %1162 = vst [vmem:[#allocation2 + $0x68] sm:$0xff] %v1157
  %1163 = vst [vmem:[#allocation2 + $0x70] sm:$0xff] %v1155
  %1164 = vst [vmem:[#allocation2 + $0x78] sm:$0xff] %v1153
  %1165 = vst [vmem:[#allocation2 + $0x80] sm:$0xff] %v1151
  %1166 = vst [vmem:[#allocation2 + $0x88] sm:$0xff] %v1149
  %1167 = vst [vmem:[#allocation2 + $0x90] sm:$0xff] %v1160
  %1168 = vst [vmem:[#allocation2 + $0x98] sm:$0xff] %v1158
  %1169 = vst [vmem:[#allocation2 + $0xa0] sm:$0xff] %v1156
  %1170 = vst [vmem:[#allocation2 + $0xa8] sm:$0xff] %v1154
  %1171 = vst [vmem:[#allocation2 + $0xb0] sm:$0xff] %v1152
  %1172 = vst [vmem:[#allocation2 + $0xb8] sm:$0xff] %v1150
  %1173 = vrot.lane.b32.xlu0 %v1065, 17
  %v1174 = vpop.permute.xlu0 %1173
  %1175 = vrot.lane.b32.xlu0 %v1071, 17
  %v1176 = vpop.permute.xlu0 %1175
  %1177 = vrot.lane.b32.xlu0 %v1066, 17
  %v1178 = vpop.permute.xlu0 %1177
  %1179 = vrot.lane.b32.xlu0 %v1072, 17
  %v1180 = vpop.permute.xlu0 %1179
  %1181 = vrot.lane.b32.xlu0 %v1067, 17
  %v1182 = vpop.permute.xlu0 %1181
  %1183 = vrot.lane.b32.xlu0 %v1073, 17
  %v1184 = vpop.permute.xlu0 %1183
  %1185 = vrot.lane.b32.xlu0 %v1068, 17
  %v1186 = vpop.permute.xlu0 %1185
  %1187 = vrot.lane.b32.xlu0 %v1074, 17
  %v1188 = vpop.permute.xlu0 %1187
  %1189 = vrot.lane.b32.xlu0 %v1069, 17
  %v1190 = vpop.permute.xlu0 %1189
  %1191 = vrot.lane.b32.xlu0 %v1075, 17
  %v1192 = vpop.permute.xlu0 %1191
  %1193 = vrot.lane.b32.xlu0 %v1070, 17
  %v1194 = vpop.permute.xlu0 %1193
  %1195 = vrot.lane.b32.xlu0 %v1076, 17
  %v1196 = vpop.permute.xlu0 %1195
  %v1197 = vsel %vm85, %v1190, %v1194
  %v1198 = vsel %vm85, %v1192, %v1196
  %v1199 = vsel %vm85, %v1186, %v1190
  %v1200 = vsel %vm85, %v1188, %v1192
  %v1201 = vsel %vm85, %v1182, %v1186
  %v1202 = vsel %vm85, %v1184, %v1188
  %v1203 = vsel %vm85, %v1178, %v1182
  %v1204 = vsel %vm85, %v1180, %v1184
  %v1205 = vsel %vm85, %v1174, %v1178
  %v1206 = vsel %vm85, %v1176, %v1180
  %v1207 = vsel %vm85, %v1194, %v1174
  %v1208 = vsel %vm85, %v1196, %v1176
  %1209 = vst [vmem:[#allocation2 + $0xc0] sm:$0xff] %v1207
  %1210 = vst [vmem:[#allocation2 + $0xc8] sm:$0xff] %v1205
  %1211 = vst [vmem:[#allocation2 + $0xd0] sm:$0xff] %v1203
  %1212 = vst [vmem:[#allocation2 + $0xd8] sm:$0xff] %v1201
  %1213 = vst [vmem:[#allocation2 + $0xe0] sm:$0xff] %v1199
  %1214 = vst [vmem:[#allocation2 + $0xe8] sm:$0xff] %v1197
  %1215 = vst [vmem:[#allocation2 + $0xf0] sm:$0xff] %v1208
  %1216 = vst [vmem:[#allocation2 + $0xf8] sm:$0xff] %v1206
  %1217 = vst [vmem:[#allocation2 + $0x100] sm:$0xff] %v1204
  %1218 = vst [vmem:[#allocation2 + $0x108] sm:$0xff] %v1202
  %1219 = vst [vmem:[#allocation2 + $0x110] sm:$0xff] %v1200
  %1220 = vst [vmem:[#allocation2 + $0x118] sm:$0xff] %v1198
  %1221 = vrot.lane.b32.xlu0 %v1065, 1
  %v1222 = vpop.permute.xlu0 %1221
  %1223 = vrot.lane.b32.xlu0 %v1071, 1
  %v1224 = vpop.permute.xlu0 %1223
  %1225 = vrot.lane.b32.xlu0 %v1066, 1
  %v1226 = vpop.permute.xlu0 %1225
  %1227 = vrot.lane.b32.xlu0 %v1072, 1
  %v1228 = vpop.permute.xlu0 %1227
  %1229 = vrot.lane.b32.xlu0 %v1067, 1
  %v1230 = vpop.permute.xlu0 %1229
  %1231 = vrot.lane.b32.xlu0 %v1073, 1
  %v1232 = vpop.permute.xlu0 %1231
  %1233 = vrot.lane.b32.xlu0 %v1068, 1
  %v1234 = vpop.permute.xlu0 %1233
  %1235 = vrot.lane.b32.xlu0 %v1074, 1
  %v1236 = vpop.permute.xlu0 %1235
  %1237 = vrot.lane.b32.xlu0 %v1069, 1
  %v1238 = vpop.permute.xlu0 %1237
  %1239 = vrot.lane.b32.xlu0 %v1075, 1
  %v1240 = vpop.permute.xlu0 %1239
  %1241 = vrot.lane.b32.xlu0 %v1070, 1
  %v1242 = vpop.permute.xlu0 %1241
  %1243 = vrot.lane.b32.xlu0 %v1076, 1
  %v1244 = vpop.permute.xlu0 %1243
  %v1245 = vsel %vm110, %v1238, %v1242
  %v1246 = vsel %vm110, %v1240, %v1244
  %v1247 = vsel %vm110, %v1234, %v1238
  %v1248 = vsel %vm110, %v1236, %v1240
  %v1249 = vsel %vm110, %v1230, %v1234
  %v1250 = vsel %vm110, %v1232, %v1236
  %v1251 = vsel %vm110, %v1226, %v1230
  %v1252 = vsel %vm110, %v1228, %v1232
  %v1253 = vsel %vm110, %v1222, %v1226
  %v1254 = vsel %vm110, %v1224, %v1228
  %v1255 = vsel %vm110, %v1242, %v1222
  %v1256 = vsel %vm110, %v1244, %v1224
  %1257 = vst [vmem:[#allocation2 + $0x120] sm:$0xff] %v1255
  %1258 = vst [vmem:[#allocation2 + $0x128] sm:$0xff] %v1253
  %1259 = vst [vmem:[#allocation2 + $0x130] sm:$0xff] %v1251
  %1260 = vst [vmem:[#allocation2 + $0x138] sm:$0xff] %v1249
  %1261 = vst [vmem:[#allocation2 + $0x140] sm:$0xff] %v1247
  %1262 = vst [vmem:[#allocation2 + $0x148] sm:$0xff] %v1245
  %1263 = vst [vmem:[#allocation2 + $0x150] sm:$0xff] %v1256
  %1264 = vst [vmem:[#allocation2 + $0x158] sm:$0xff] %v1254
  %1265 = vst [vmem:[#allocation2 + $0x160] sm:$0xff] %v1252
  %1266 = vst [vmem:[#allocation2 + $0x168] sm:$0xff] %v1250
  %1267 = vst [vmem:[#allocation2 + $0x170] sm:$0xff] %v1248
  %1268 = vst [vmem:[#allocation2 + $0x178] sm:$0xff] %v1246
  %1269 = vst [vmem:[#allocation2 + $0x180] sm:$0xff] %v1065
  %1270 = vst [vmem:[#allocation2 + $0x188] sm:$0xff] %v1066
  %1271 = vst [vmem:[#allocation2 + $0x190] sm:$0xff] %v1067
  %1272 = vst [vmem:[#allocation2 + $0x198] sm:$0xff] %v1068
  %1273 = vst [vmem:[#allocation2 + $0x1a0] sm:$0xff] %v1069
  %1274 = vst [vmem:[#allocation2 + $0x1a8] sm:$0xff] %v1070
  %1275 = vst [vmem:[#allocation2 + $0x1b0] sm:$0xff] %v1071
  %1276 = vst [vmem:[#allocation2 + $0x1b8] sm:$0xff] %v1072
  %1277 = vst [vmem:[#allocation2 + $0x1c0] sm:$0xff] %v1073
  %1278 = vst [vmem:[#allocation2 + $0x1c8] sm:$0xff] %v1074
  %1279 = vst [vmem:[#allocation2 + $0x1d0] sm:$0xff] %v1075
  %1280 = vst [vmem:[#allocation2 + $0x1d8] sm:$0xff] %v1076
  %1281 = vrot.lane.b32.xlu0 %v1065, 127
  %v1282 = vpop.permute.xlu0 %1281
  %1283 = vrot.lane.b32.xlu0 %v1071, 127
  %v1284 = vpop.permute.xlu0 %1283
  %1285 = vrot.lane.b32.xlu0 %v1066, 127
  %v1286 = vpop.permute.xlu0 %1285
  %1287 = vrot.lane.b32.xlu0 %v1072, 127
  %v1288 = vpop.permute.xlu0 %1287
  %1289 = vrot.lane.b32.xlu0 %v1067, 127
  %v1290 = vpop.permute.xlu0 %1289
  %1291 = vrot.lane.b32.xlu0 %v1073, 127
  %v1292 = vpop.permute.xlu0 %1291
  %1293 = vrot.lane.b32.xlu0 %v1068, 127
  %v1294 = vpop.permute.xlu0 %1293
  %1295 = vrot.lane.b32.xlu0 %v1074, 127
  %v1296 = vpop.permute.xlu0 %1295
  %1297 = vrot.lane.b32.xlu0 %v1069, 127
  %v1298 = vpop.permute.xlu0 %1297
  %1299 = vrot.lane.b32.xlu0 %v1075, 127
  %v1300 = vpop.permute.xlu0 %1299
  %1301 = vrot.lane.b32.xlu0 %v1070, 127
  %v1302 = vpop.permute.xlu0 %1301
  %1303 = vrot.lane.b32.xlu0 %v1076, 127
  %v1304 = vpop.permute.xlu0 %1303
  %v1305 = vsel %vm141, %v1298, %v1302
  %v1306 = vsel %vm141, %v1300, %v1304
  %v1307 = vsel %vm141, %v1294, %v1298
  %v1308 = vsel %vm141, %v1296, %v1300
  %v1309 = vsel %vm141, %v1290, %v1294
  %v1310 = vsel %vm141, %v1292, %v1296
  %v1311 = vsel %vm141, %v1286, %v1290
  %v1312 = vsel %vm141, %v1288, %v1292
  %v1313 = vsel %vm141, %v1282, %v1286
  %v1314 = vsel %vm141, %v1284, %v1288
  %v1315 = vsel %vm141, %v1302, %v1282
  %v1316 = vsel %vm141, %v1304, %v1284
  %1317 = vst [vmem:[#allocation2 + $0x1e0] sm:$0xff] %v1313
  %1318 = vst [vmem:[#allocation2 + $0x1e8] sm:$0xff] %v1311
  %1319 = vst [vmem:[#allocation2 + $0x1f0] sm:$0xff] %v1309
  %1320 = vst [vmem:[#allocation2 + $0x1f8] sm:$0xff] %v1307
  %1321 = vst [vmem:[#allocation2 + $0x200] sm:$0xff] %v1305
  %1322 = vst [vmem:[#allocation2 + $0x208] sm:$0xff] %v1315
  %1323 = vst [vmem:[#allocation2 + $0x210] sm:$0xff] %v1314
  %1324 = vst [vmem:[#allocation2 + $0x218] sm:$0xff] %v1312
  %1325 = vst [vmem:[#allocation2 + $0x220] sm:$0xff] %v1310
  %1326 = vst [vmem:[#allocation2 + $0x228] sm:$0xff] %v1308
  %1327 = vst [vmem:[#allocation2 + $0x230] sm:$0xff] %v1306
  %1328 = vst [vmem:[#allocation2 + $0x238] sm:$0xff] %v1316
  %1329 = vrot.lane.b32.xlu0 %v1065, 111
  %v1330 = vpop.permute.xlu0 %1329
  %1331 = vrot.lane.b32.xlu0 %v1071, 111
  %v1332 = vpop.permute.xlu0 %1331
  %1333 = vrot.lane.b32.xlu0 %v1066, 111
  %v1334 = vpop.permute.xlu0 %1333
  %1335 = vrot.lane.b32.xlu0 %v1072, 111
  %v1336 = vpop.permute.xlu0 %1335
  %1337 = vrot.lane.b32.xlu0 %v1067, 111
  %v1338 = vpop.permute.xlu0 %1337
  %1339 = vrot.lane.b32.xlu0 %v1073, 111
  %v1340 = vpop.permute.xlu0 %1339
  %1341 = vrot.lane.b32.xlu0 %v1068, 111
  %v1342 = vpop.permute.xlu0 %1341
  %1343 = vrot.lane.b32.xlu0 %v1074, 111
  %v1344 = vpop.permute.xlu0 %1343
  %1345 = vrot.lane.b32.xlu0 %v1069, 111
  %v1346 = vpop.permute.xlu0 %1345
  %1347 = vrot.lane.b32.xlu0 %v1075, 111
  %v1348 = vpop.permute.xlu0 %1347
  %1349 = vrot.lane.b32.xlu0 %v1070, 111
  %v1350 = vpop.permute.xlu0 %1349
  %1351 = vrot.lane.b32.xlu0 %v1076, 111
  %v1352 = vpop.permute.xlu0 %1351
  %v1353 = vsel %vm166, %v1346, %v1350
  %v1354 = vsel %vm166, %v1348, %v1352
  %v1355 = vsel %vm166, %v1342, %v1346
  %v1356 = vsel %vm166, %v1344, %v1348
  %v1357 = vsel %vm166, %v1338, %v1342
  %v1358 = vsel %vm166, %v1340, %v1344
  %v1359 = vsel %vm166, %v1334, %v1338
  %v1360 = vsel %vm166, %v1336, %v1340
  %v1361 = vsel %vm166, %v1330, %v1334
  %v1362 = vsel %vm166, %v1332, %v1336
  %v1363 = vsel %vm166, %v1350, %v1330
  %v1364 = vsel %vm166, %v1352, %v1332
  %1365 = vst [vmem:[#allocation2 + $0x240] sm:$0xff] %v1361
  %1366 = vst [vmem:[#allocation2 + $0x248] sm:$0xff] %v1359
  %1367 = vst [vmem:[#allocation2 + $0x250] sm:$0xff] %v1357
  %1368 = vst [vmem:[#allocation2 + $0x258] sm:$0xff] %v1355
  %1369 = vst [vmem:[#allocation2 + $0x260] sm:$0xff] %v1353
  %1370 = vst [vmem:[#allocation2 + $0x268] sm:$0xff] %v1363
  %1371 = vst [vmem:[#allocation2 + $0x270] sm:$0xff] %v1362
  %1372 = vst [vmem:[#allocation2 + $0x278] sm:$0xff] %v1360
  %1373 = vst [vmem:[#allocation2 + $0x280] sm:$0xff] %v1358
  %1374 = vst [vmem:[#allocation2 + $0x288] sm:$0xff] %v1356
  %1375 = vst [vmem:[#allocation2 + $0x290] sm:$0xff] %v1354
  %1376 = vst [vmem:[#allocation2 + $0x298] sm:$0xff] %v1364
  %1377 = vrot.lane.b32.xlu0 %v1065, 110
  %v1378 = vpop.permute.xlu0 %1377
  %1379 = vrot.lane.b32.xlu0 %v1071, 110
  %v1380 = vpop.permute.xlu0 %1379
  %1381 = vrot.lane.b32.xlu0 %v1066, 110
  %v1382 = vpop.permute.xlu0 %1381
  %1383 = vrot.lane.b32.xlu0 %v1072, 110
  %v1384 = vpop.permute.xlu0 %1383
  %1385 = vrot.lane.b32.xlu0 %v1067, 110
  %v1386 = vpop.permute.xlu0 %1385
  %1387 = vrot.lane.b32.xlu0 %v1073, 110
  %v1388 = vpop.permute.xlu0 %1387
  %1389 = vrot.lane.b32.xlu0 %v1068, 110
  %v1390 = vpop.permute.xlu0 %1389
  %1391 = vrot.lane.b32.xlu0 %v1074, 110
  %v1392 = vpop.permute.xlu0 %1391
  %1393 = vrot.lane.b32.xlu0 %v1069, 110
  %v1394 = vpop.permute.xlu0 %1393
  %1395 = vrot.lane.b32.xlu0 %v1075, 110
  %v1396 = vpop.permute.xlu0 %1395
  %1397 = vrot.lane.b32.xlu0 %v1070, 110
  %v1398 = vpop.permute.xlu0 %1397
  %1399 = vrot.lane.b32.xlu0 %v1076, 110
  %v1400 = vpop.permute.xlu0 %1399
  %v1401 = vsel %vm191, %v1394, %v1398
  %v1402 = vsel %vm191, %v1396, %v1400
  %v1403 = vsel %vm191, %v1390, %v1394
  %v1404 = vsel %vm191, %v1392, %v1396
  %v1405 = vsel %vm191, %v1386, %v1390
  %v1406 = vsel %vm191, %v1388, %v1392
  %v1407 = vsel %vm191, %v1382, %v1386
  %v1408 = vsel %vm191, %v1384, %v1388
  %v1409 = vsel %vm191, %v1378, %v1382
  %v1410 = vsel %vm191, %v1380, %v1384
  %v1411 = vsel %vm191, %v1398, %v1378
  %v1412 = vsel %vm191, %v1400, %v1380
  %1413 = vst [vmem:[#allocation2 + $0x2a0] sm:$0xff] %v1409
  %1414 = vst [vmem:[#allocation2 + $0x2a8] sm:$0xff] %v1407
  %1415 = vst [vmem:[#allocation2 + $0x2b0] sm:$0xff] %v1405
  %1416 = vst [vmem:[#allocation2 + $0x2b8] sm:$0xff] %v1403
  %1417 = vst [vmem:[#allocation2 + $0x2c0] sm:$0xff] %v1401
  %1418 = vst [vmem:[#allocation2 + $0x2c8] sm:$0xff] %v1411
  %1419 = vst [vmem:[#allocation2 + $0x2d0] sm:$0xff] %v1410
  %1420 = vst [vmem:[#allocation2 + $0x2d8] sm:$0xff] %v1408
  %1421 = vst [vmem:[#allocation2 + $0x2e0] sm:$0xff] %v1406
  %1422 = vst [vmem:[#allocation2 + $0x2e8] sm:$0xff] %v1404
  %1423 = vst [vmem:[#allocation2 + $0x2f0] sm:$0xff] %v1402
  %1424 = vst [vmem:[#allocation2 + $0x2f8] sm:$0xff] %v1412
  %1425 = vrot.lane.b32.xlu0 %v1065, 109
  %v1426 = vpop.permute.xlu0 %1425
  %1427 = vrot.lane.b32.xlu0 %v1071, 109
  %v1428 = vpop.permute.xlu0 %1427
  %1429 = vrot.lane.b32.xlu0 %v1066, 109
  %v1430 = vpop.permute.xlu0 %1429
  %1431 = vrot.lane.b32.xlu0 %v1072, 109
  %v1432 = vpop.permute.xlu0 %1431
  %1433 = vrot.lane.b32.xlu0 %v1067, 109
  %v1434 = vpop.permute.xlu0 %1433
  %1435 = vrot.lane.b32.xlu0 %v1073, 109
  %v1436 = vpop.permute.xlu0 %1435
  %1437 = vrot.lane.b32.xlu0 %v1068, 109
  %v1438 = vpop.permute.xlu0 %1437
  %1439 = vrot.lane.b32.xlu0 %v1074, 109
  %v1440 = vpop.permute.xlu0 %1439
  %1441 = vrot.lane.b32.xlu0 %v1069, 109
  %v1442 = vpop.permute.xlu0 %1441
  %1443 = vrot.lane.b32.xlu0 %v1075, 109
  %v1444 = vpop.permute.xlu0 %1443
  %1445 = vrot.lane.b32.xlu0 %v1070, 109
  %v1446 = vpop.permute.xlu0 %1445
  %1447 = vrot.lane.b32.xlu0 %v1076, 109
  %v1448 = vpop.permute.xlu0 %1447
  %v1449 = vsel %vm216, %v1442, %v1446
  %v1450 = vsel %vm216, %v1444, %v1448
  %v1451 = vsel %vm216, %v1438, %v1442
  %v1452 = vsel %vm216, %v1440, %v1444
  %v1453 = vsel %vm216, %v1434, %v1438
  %v1454 = vsel %vm216, %v1436, %v1440
  %v1455 = vsel %vm216, %v1430, %v1434
  %v1456 = vsel %vm216, %v1432, %v1436
  %v1457 = vsel %vm216, %v1426, %v1430
  %v1458 = vsel %vm216, %v1428, %v1432
  %v1459 = vsel %vm216, %v1446, %v1426
  %v1460 = vsel %vm216, %v1448, %v1428
  %1461 = vst [vmem:[#allocation2 + $0x300] sm:$0xff] %v1457
  %1462 = vst [vmem:[#allocation2 + $0x308] sm:$0xff] %v1455
  %1463 = vst [vmem:[#allocation2 + $0x310] sm:$0xff] %v1453
  %1464 = vst [vmem:[#allocation2 + $0x318] sm:$0xff] %v1451
  %1465 = vst [vmem:[#allocation2 + $0x320] sm:$0xff] %v1449
  %1466 = vst [vmem:[#allocation2 + $0x328] sm:$0xff] %v1459
  %1467 = vst [vmem:[#allocation2 + $0x330] sm:$0xff] %v1458
  %1468 = vst [vmem:[#allocation2 + $0x338] sm:$0xff] %v1456
  %1469 = vst [vmem:[#allocation2 + $0x340] sm:$0xff] %v1454
  %1470 = vst [vmem:[#allocation2 + $0x348] sm:$0xff] %v1452
  %1471 = vst [vmem:[#allocation2 + $0x350] sm:$0xff] %v1450
  %1472 = vst [vmem:[#allocation2 + $0x358] sm:$0xff] %v1460
  %v1473 = vld [vmem:[%s1 + $0x90] sm:$0xff]
  %v1474 = vld [vmem:[%s1 + $0x98] sm:$0xff]
  %v1475 = vld [vmem:[%s1 + $0xc0] sm:$0xff]
  %v1476 = vld [vmem:[%s1 + $0xc8] sm:$0xff]
  %v1477 = vld [vmem:[%s1 + $0xf0] sm:$0xff]
  %v1478 = vld [vmem:[%s1 + $0xf8] sm:$0xff]
  %v1479 = vld [vmem:[%s1 + $0x120] sm:$0xff]
  %v1480 = vld [vmem:[%s1 + $0x128] sm:$0xff]
  %v1481 = vld [vmem:[%s1 + $0xa0] sm:$0xff]
  %v1482 = vld [vmem:[%s1 + $0xd0] sm:$0xff]
  %v1483 = vld [vmem:[%s1 + $0x100] sm:$0xff]
  %v1484 = vld [vmem:[%s1 + $0x130] sm:$0xff]
  %v1485 = vld [vmem:[#allocation2] sm:$0xff]
  %v1486 = vld [vmem:[#allocation2 + $0x8] sm:$0xff]
  %v1487 = vld [vmem:[#allocation2 + $0x10] sm:$0xff]
  %v1488 = vld [vmem:[#allocation2 + $0x18] sm:$0xff]
  %v1489 = vld [vmem:[#allocation2 + $0x20] sm:$0xff]
  %v1490 = vld [vmem:[#allocation2 + $0x28] sm:$0xff]
  %v1491 = vld [vmem:[#allocation2 + $0x30] sm:$0xff]
  %v1492 = vld [vmem:[#allocation2 + $0x38] sm:$0xff]
  %v1493 = vld [vmem:[#allocation2 + $0x40] sm:$0xff]
  %v1494 = vld [vmem:[#allocation2 + $0x48] sm:$0xff]
  %v1495 = vld [vmem:[#allocation2 + $0x50] sm:$0xff]
  %v1496 = vld [vmem:[#allocation2 + $0x58] sm:$0xff]
  %v1497 = vld [vmem:[#allocation2 + $0x60] sm:$0xff]
  %v1498 = vld [vmem:[#allocation2 + $0x68] sm:$0xff]
  %v1499 = vld [vmem:[#allocation2 + $0x70] sm:$0xff]
  %v1500 = vld [vmem:[#allocation2 + $0x78] sm:$0xff]
  %v1501 = vld [vmem:[#allocation2 + $0x80] sm:$0xff]
  %v1502 = vld [vmem:[#allocation2 + $0x88] sm:$0xff]
  %v1503 = vld [vmem:[#allocation2 + $0x90] sm:$0xff]
  %v1504 = vld [vmem:[#allocation2 + $0x98] sm:$0xff]
  %v1505 = vld [vmem:[#allocation2 + $0xa0] sm:$0xff]
  %v1506 = vld [vmem:[#allocation2 + $0xa8] sm:$0xff]
  %v1507 = vld [vmem:[#allocation2 + $0xb0] sm:$0xff]
  %v1508 = vld [vmem:[#allocation2 + $0xb8] sm:$0xff]
  %v1509 = vld [vmem:[#allocation2 + $0xc0] sm:$0xff]
  %v1510 = vld [vmem:[#allocation2 + $0xc8] sm:$0xff]
  %v1511 = vld [vmem:[#allocation2 + $0xd0] sm:$0xff]
  %v1512 = vld [vmem:[#allocation2 + $0xd8] sm:$0xff]
  %v1513 = vld [vmem:[#allocation2 + $0xe0] sm:$0xff]
  %v1514 = vld [vmem:[#allocation2 + $0xe8] sm:$0xff]
  %v1515 = vld [vmem:[#allocation2 + $0xf0] sm:$0xff]
  %v1516 = vld [vmem:[#allocation2 + $0xf8] sm:$0xff]
  %v1517 = vld [vmem:[#allocation2 + $0x100] sm:$0xff]
  %v1518 = vld [vmem:[#allocation2 + $0x108] sm:$0xff]
  %v1519 = vld [vmem:[#allocation2 + $0x110] sm:$0xff]
  %v1520 = vld [vmem:[#allocation2 + $0x118] sm:$0xff]
  %v1521 = vld [vmem:[#allocation2 + $0x120] sm:$0xff]
  %v1522 = vld [vmem:[#allocation2 + $0x128] sm:$0xff]
  %v1523 = vld [vmem:[#allocation2 + $0x130] sm:$0xff]
  %v1524 = vld [vmem:[#allocation2 + $0x138] sm:$0xff]
  %v1525 = vld [vmem:[#allocation2 + $0x140] sm:$0xff]
  %v1526 = vld [vmem:[#allocation2 + $0x148] sm:$0xff]
  %v1527 = vld [vmem:[#allocation2 + $0x150] sm:$0xff]
  %v1528 = vld [vmem:[#allocation2 + $0x158] sm:$0xff]
  %v1529 = vld [vmem:[#allocation2 + $0x160] sm:$0xff]
  %v1530 = vld [vmem:[#allocation2 + $0x168] sm:$0xff]
  %v1531 = vld [vmem:[#allocation2 + $0x170] sm:$0xff]
  %v1532 = vld [vmem:[#allocation2 + $0x178] sm:$0xff]
  %v1533 = vld [vmem:[#allocation2 + $0x180] sm:$0xff]
  %v1534 = vld [vmem:[#allocation2 + $0x188] sm:$0xff]
  %v1535 = vld [vmem:[#allocation2 + $0x190] sm:$0xff]
  %v1536 = vld [vmem:[#allocation2 + $0x198] sm:$0xff]
  %v1537 = vld [vmem:[#allocation2 + $0x1a0] sm:$0xff]
  %v1538 = vld [vmem:[#allocation2 + $0x1a8] sm:$0xff]
  %v1539 = vld [vmem:[#allocation2 + $0x1b0] sm:$0xff]
  %v1540 = vld [vmem:[#allocation2 + $0x1b8] sm:$0xff]
  %v1541 = vld [vmem:[#allocation2 + $0x1c0] sm:$0xff]
  %v1542 = vld [vmem:[#allocation2 + $0x1c8] sm:$0xff]
  %v1543 = vld [vmem:[#allocation2 + $0x1d0] sm:$0xff]
  %v1544 = vld [vmem:[#allocation2 + $0x1d8] sm:$0xff]
  %v1545 = vld [vmem:[#allocation2 + $0x1e0] sm:$0xff]
  %v1546 = vld [vmem:[#allocation2 + $0x1e8] sm:$0xff]
  %v1547 = vld [vmem:[#allocation2 + $0x1f0] sm:$0xff]
  %v1548 = vld [vmem:[#allocation2 + $0x1f8] sm:$0xff]
  %v1549 = vld [vmem:[#allocation2 + $0x200] sm:$0xff]
  %v1550 = vld [vmem:[#allocation2 + $0x208] sm:$0xff]
  %v1551 = vld [vmem:[#allocation2 + $0x210] sm:$0xff]
  %v1552 = vld [vmem:[#allocation2 + $0x218] sm:$0xff]
  %v1553 = vld [vmem:[#allocation2 + $0x220] sm:$0xff]
  %v1554 = vld [vmem:[#allocation2 + $0x228] sm:$0xff]
  %v1555 = vld [vmem:[#allocation2 + $0x230] sm:$0xff]
  %v1556 = vld [vmem:[#allocation2 + $0x238] sm:$0xff]
  %v1557 = vld [vmem:[#allocation2 + $0x240] sm:$0xff]
  %v1558 = vld [vmem:[#allocation2 + $0x248] sm:$0xff]
  %v1559 = vld [vmem:[#allocation2 + $0x250] sm:$0xff]
  %v1560 = vld [vmem:[#allocation2 + $0x258] sm:$0xff]
  %v1561 = vld [vmem:[#allocation2 + $0x260] sm:$0xff]
  %v1562 = vld [vmem:[#allocation2 + $0x268] sm:$0xff]
  %v1563 = vld [vmem:[#allocation2 + $0x270] sm:$0xff]
  %v1564 = vld [vmem:[#allocation2 + $0x278] sm:$0xff]
  %v1565 = vld [vmem:[#allocation2 + $0x280] sm:$0xff]
  %v1566 = vld [vmem:[#allocation2 + $0x288] sm:$0xff]
  %v1567 = vld [vmem:[#allocation2 + $0x290] sm:$0xff]
  %v1568 = vld [vmem:[#allocation2 + $0x298] sm:$0xff]
  %v1569 = vld [vmem:[#allocation2 + $0x2a0] sm:$0xff]
  %v1570 = vld [vmem:[#allocation2 + $0x2a8] sm:$0xff]
  %v1571 = vld [vmem:[#allocation2 + $0x2b0] sm:$0xff]
  %v1572 = vld [vmem:[#allocation2 + $0x2b8] sm:$0xff]
  %v1573 = vld [vmem:[#allocation2 + $0x2c0] sm:$0xff]
  %v1574 = vld [vmem:[#allocation2 + $0x2c8] sm:$0xff]
  %v1575 = vld [vmem:[#allocation2 + $0x2d0] sm:$0xff]
  %v1576 = vld [vmem:[#allocation2 + $0x2d8] sm:$0xff]
  %v1577 = vld [vmem:[#allocation2 + $0x2e0] sm:$0xff]
  %v1578 = vld [vmem:[#allocation2 + $0x2e8] sm:$0xff]
  %v1579 = vld [vmem:[#allocation2 + $0x2f0] sm:$0xff]
  %v1580 = vld [vmem:[#allocation2 + $0x2f8] sm:$0xff]
  %v1581 = vld [vmem:[#allocation2 + $0x300] sm:$0xff]
  %v1582 = vld [vmem:[#allocation2 + $0x308] sm:$0xff]
  %v1583 = vld [vmem:[#allocation2 + $0x310] sm:$0xff]
  %v1584 = vld [vmem:[#allocation2 + $0x318] sm:$0xff]
  %v1585 = vld [vmem:[#allocation2 + $0x320] sm:$0xff]
  %v1586 = vld [vmem:[#allocation2 + $0x328] sm:$0xff]
  %v1587 = vld [vmem:[#allocation2 + $0x330] sm:$0xff]
  %v1588 = vld [vmem:[#allocation2 + $0x338] sm:$0xff]
  %v1589 = vld [vmem:[#allocation2 + $0x340] sm:$0xff]
  %v1590 = vld [vmem:[#allocation2 + $0x348] sm:$0xff]
  %v1591 = vld [vmem:[#allocation2 + $0x350] sm:$0xff]
  %v1592 = vld [vmem:[#allocation2 + $0x358] sm:$0xff]
  %1594 = vset.pattern.permute.xlu0 32
  %1595 = vperm.xlu0 %1594, %v1481
  %v1596 = vpop.permute.xlu0 %1595
  %1599 = vset.pattern.permute.xlu0 32
  %1600 = vperm.xlu0 %1599, %v1482
  %v1601 = vpop.permute.xlu0 %1600
  %1604 = vset.pattern.permute.xlu0 32
  %1605 = vperm.xlu0 %1604, %v1483
  %v1606 = vpop.permute.xlu0 %1605
  %1609 = vset.pattern.permute.xlu0 32
  %1610 = vperm.xlu0 %1609, %v1484
  %v1611 = vpop.permute.xlu0 %1610
  %vm1613 = vcmask 130048
  %v1615 = vsel %vm1613, %v1474, 0
  %v1618 = vsel %vm1613, %v1476, 0
  %v1621 = vsel %vm1613, %v1478, 0
  %v1624 = vsel %vm1613, %v1480, 0
  %1626 = vmatprep.subr.mxu0 %v1576
  %1627 = vmatpush1.msra.mxu0 %v1575
  %1628 = vmatprep.subr.mxu0 %v1570
  %1629 = vmatpush1.msra.mxu0 %v1569
  %1630 = vmatprep.subr.mxu0 %v1564
  %1631 = vmatpush1.msra.mxu0 %v1563
  %1632 = vmatprep.subr.mxu0 %v1558
  %1633 = vmatpush1.msra.mxu0 %v1557
  %1634 = vmatprep.subr.mxu0 %v1552
  %1635 = vmatpush1.msra.mxu0 %v1551
  %1636 = vmatprep.subr.mxu0 %v1546
  %1637 = vmatpush1.msra.mxu0 %v1545
  %1638 = vmatprep.subr.mxu0 %v1540
  %1639 = vmatpush1.msra.mxu0 %v1539
  %1640 = vmatprep.subr.mxu0 %v1534
  %1641 = vmatpush1.msra.mxu0 %v1533
  %1642 = vmatprep.subr.mxu0 %v1528
  %1643 = vmatpush1.msra.mxu0 %v1527
  %1644 = vmatprep.subr.mxu0 %v1522
  %1645 = vmatpush1.msra.mxu0 %v1521
  %1646 = vmatprep.subr.mxu0 %v1516
  %1647 = vmatpush1.msra.mxu0 %v1515
  %1648 = vmatprep.subr.mxu0 %v1510
  %1649 = vmatpush1.msra.mxu0 %v1509
  %1650 = vmatprep.subr.mxu0 %v1504
  %1651 = vmatpush1.msra.mxu0 %v1503
  %1652 = vmatprep.subr.mxu0 %v1498
  %1653 = vmatpush1.msra.mxu0 %v1497
  %1654 = vmatprep.subr.mxu0 %v1492
  %1655 = vmatpush1.msra.mxu0 %v1491
  %1656 = vmatprep.subr.mxu0 %v1486
  %1657 = vmatpush1.msra.mxu0 %v1485
  %1658 = vmatprep.subr.mxu0 0.0
  %1659 = vmatpush2.msra.mxu0 0.0
  %1660 = vmatprep.subr.mxu0 0.0
  %1661 = vmatpush2.msra.mxu0 0.0
  %1662 = vmatprep.subr.mxu0 0.0
  %1663 = vmatpush2.msra.mxu0 0.0
  %1664 = vmatprep.subr.mxu0 0.0
  %1665 = vmatpush2.msra.mxu0 0.0
  %1666 = vmatprep.subr.mxu0 0.0
  %1667 = vmatpush2.msra.mxu0 0.0
  %1668 = vmatprep.subr.mxu0 0.0
  %1669 = vmatpush2.msra.mxu0 0.0
  %1670 = vmatprep.subr.mxu0 0.0
  %1671 = vmatpush2.msra.mxu0 0.0
  %1672 = vmatprep.subr.mxu0 0.0
  %1673 = vmatpush2.msra.mxu0 0.0
  %1674 = vmatprep.subr.mxu0 0.0
  %1675 = vmatpush2.msra.mxu0 0.0
  %1676 = vmatprep.subr.mxu0 0.0
  %1677 = vmatpush2.msra.mxu0 0.0
  %1678 = vmatprep.subr.mxu0 0.0
  %1679 = vmatpush2.msra.mxu0 0.0
  %1680 = vmatprep.subr.mxu0 0.0
  %1681 = vmatpush2.msra.mxu0 0.0
  %1682 = vmatprep.subr.mxu0 0.0
  %1683 = vmatpush2.msra.mxu0 0.0
  %1684 = vmatprep.subr.mxu0 0.0
  %1685 = vmatpush2.msra.mxu0 0.0
  %1686 = vmatprep.subr.mxu0 %v1588
  %1687 = vmatpush2.msra.mxu0 %v1587
  %1688 = vmatprep.subr.mxu0 %v1582
  %1689 = vmatpush2.msra.mxu0 %v1581
  %1690 = vmatprep.mubr.f32.mxu0 %v1615
  %1691 = vmatmul.mubr.f32.gmra.mxu0 %v1473
  %v1692 = vpop.f32.mrf.mxu0
  %v1693 = vadd.f32 %v1596, %v1692
  %v1694 = vpop.f32.mrf.mxu0
  %v1695 = vadd.f32 %v1596, %v1694
  %1696 = vmatprep.mubr.f32.mxu0 %v1618
  %1697 = vmatmul.mubr.f32.gmra.mxu0 %v1475
  %v1698 = vpop.f32.mrf.mxu0
  %v1699 = vadd.f32 %v1601, %v1698
  %v1700 = vpop.f32.mrf.mxu0
  %v1701 = vadd.f32 %v1601, %v1700
  %1702 = vmatprep.mubr.f32.mxu0 %v1621
  %1703 = vmatmul.mubr.f32.gmra.mxu0 %v1477
  %v1704 = vpop.f32.mrf.mxu0
  %v1705 = vadd.f32 %v1606, %v1704
  %v1706 = vpop.f32.mrf.mxu0
  %v1707 = vadd.f32 %v1606, %v1706
  %1708 = vmatprep.mubr.f32.mxu0 %v1624
  %1709 = vmatmul.mubr.f32.gmra.mxu0 %v1479
  %v1710 = vpop.f32.mrf.mxu0
  %v1711 = vadd.f32 %v1611, %v1710
  %v1712 = vpop.f32.mrf.mxu0
  %v1713 = vadd.f32 %v1611, %v1712
  %1714 = vdwg.mxu0
  %1715 = vmatprep.subr.mxu0 %v1578
  %1716 = vmatpush1.msra.mxu0 %v1577
  %1717 = vmatprep.subr.mxu0 %v1572
  %1718 = vmatpush1.msra.mxu0 %v1571
  %1719 = vmatprep.subr.mxu0 %v1566
  %1720 = vmatpush1.msra.mxu0 %v1565
  %1721 = vmatprep.subr.mxu0 %v1560
  %1722 = vmatpush1.msra.mxu0 %v1559
  %1723 = vmatprep.subr.mxu0 %v1554
  %1724 = vmatpush1.msra.mxu0 %v1553
  %1725 = vmatprep.subr.mxu0 %v1548
  %1726 = vmatpush1.msra.mxu0 %v1547
  %1727 = vmatprep.subr.mxu0 %v1542
  %1728 = vmatpush1.msra.mxu0 %v1541
  %1729 = vmatprep.subr.mxu0 %v1536
  %1730 = vmatpush1.msra.mxu0 %v1535
  %1731 = vmatprep.subr.mxu0 %v1530
  %1732 = vmatpush1.msra.mxu0 %v1529
  %1733 = vmatprep.subr.mxu0 %v1524
  %1734 = vmatpush1.msra.mxu0 %v1523
  %1735 = vmatprep.subr.mxu0 %v1518
  %1736 = vmatpush1.msra.mxu0 %v1517
  %1737 = vmatprep.subr.mxu0 %v1512
  %1738 = vmatpush1.msra.mxu0 %v1511
  %1739 = vmatprep.subr.mxu0 %v1506
  %1740 = vmatpush1.msra.mxu0 %v1505
  %1741 = vmatprep.subr.mxu0 %v1500
  %1742 = vmatpush1.msra.mxu0 %v1499
  %1743 = vmatprep.subr.mxu0 %v1494
  %1744 = vmatpush1.msra.mxu0 %v1493
  %1745 = vmatprep.subr.mxu0 %v1488
  %1746 = vmatpush1.msra.mxu0 %v1487
  %1747 = vmatprep.subr.mxu0 0.0
  %1748 = vmatpush2.msra.mxu0 0.0
  %1749 = vmatprep.subr.mxu0 0.0
  %1750 = vmatpush2.msra.mxu0 0.0
  %1751 = vmatprep.subr.mxu0 0.0
  %1752 = vmatpush2.msra.mxu0 0.0
  %1753 = vmatprep.subr.mxu0 0.0
  %1754 = vmatpush2.msra.mxu0 0.0
  %1755 = vmatprep.subr.mxu0 0.0
  %1756 = vmatpush2.msra.mxu0 0.0
  %1757 = vmatprep.subr.mxu0 0.0
  %1758 = vmatpush2.msra.mxu0 0.0
  %1759 = vmatprep.subr.mxu0 0.0
  %1760 = vmatpush2.msra.mxu0 0.0
  %1761 = vmatprep.subr.mxu0 0.0
  %1762 = vmatpush2.msra.mxu0 0.0
  %1763 = vmatprep.subr.mxu0 0.0
  %1764 = vmatpush2.msra.mxu0 0.0
  %1765 = vmatprep.subr.mxu0 0.0
  %1766 = vmatpush2.msra.mxu0 0.0
  %1767 = vmatprep.subr.mxu0 0.0
  %1768 = vmatpush2.msra.mxu0 0.0
  %1769 = vmatprep.subr.mxu0 0.0
  %1770 = vmatpush2.msra.mxu0 0.0
  %1771 = vmatprep.subr.mxu0 0.0
  %1772 = vmatpush2.msra.mxu0 0.0
  %1773 = vmatprep.subr.mxu0 0.0
  %1774 = vmatpush2.msra.mxu0 0.0
  %1775 = vmatprep.subr.mxu0 %v1590
  %1776 = vmatpush2.msra.mxu0 %v1589
  %1777 = vmatprep.subr.mxu0 %v1584
  %1778 = vmatpush2.msra.mxu0 %v1583
  %1779 = vmatprep.mubr.f32.mxu0 %v1615
  %1780 = vmatmul.mubr.f32.gmra.mxu0 %v1473
  %v1781 = vpop.f32.mrf.mxu0
  %v1782 = vadd.f32 %v1596, %v1781
  %v1783 = vpop.f32.mrf.mxu0
  %v1784 = vadd.f32 %v1596, %v1783
  %1785 = vmatprep.mubr.f32.mxu0 %v1618
  %1786 = vmatmul.mubr.f32.gmra.mxu0 %v1475
  %v1787 = vpop.f32.mrf.mxu0
  %v1788 = vadd.f32 %v1601, %v1787
  %v1789 = vpop.f32.mrf.mxu0
  %v1790 = vadd.f32 %v1601, %v1789
  %1791 = vmatprep.mubr.f32.mxu0 %v1621
  %1792 = vmatmul.mubr.f32.gmra.mxu0 %v1477
  %v1793 = vpop.f32.mrf.mxu0
  %v1794 = vadd.f32 %v1606, %v1793
  %v1795 = vpop.f32.mrf.mxu0
  %v1796 = vadd.f32 %v1606, %v1795
  %1797 = vmatprep.mubr.f32.mxu0 %v1624
  %1798 = vmatmul.mubr.f32.gmra.mxu0 %v1479
  %v1799 = vpop.f32.mrf.mxu0
  %v1800 = vadd.f32 %v1611, %v1799
  %v1801 = vpop.f32.mrf.mxu0
  %v1802 = vadd.f32 %v1611, %v1801
  %1803 = vdwg.mxu0
  %1804 = vmatprep.subr.mxu0 %v1580
  %1805 = vmatpush1.msra.mxu0 %v1579
  %1806 = vmatprep.subr.mxu0 %v1574
  %1807 = vmatpush1.msra.mxu0 %v1573
  %1808 = vmatprep.subr.mxu0 %v1568
  %1809 = vmatpush1.msra.mxu0 %v1567
  %1810 = vmatprep.subr.mxu0 %v1562
  %1811 = vmatpush1.msra.mxu0 %v1561
  %1812 = vmatprep.subr.mxu0 %v1556
  %1813 = vmatpush1.msra.mxu0 %v1555
  %1814 = vmatprep.subr.mxu0 %v1550
  %1815 = vmatpush1.msra.mxu0 %v1549
  %1816 = vmatprep.subr.mxu0 %v1544
  %1817 = vmatpush1.msra.mxu0 %v1543
  %1818 = vmatprep.subr.mxu0 %v1538
  %1819 = vmatpush1.msra.mxu0 %v1537
  %1820 = vmatprep.subr.mxu0 %v1532
  %1821 = vmatpush1.msra.mxu0 %v1531
  %1822 = vmatprep.subr.mxu0 %v1526
  %1823 = vmatpush1.msra.mxu0 %v1525
  %1824 = vmatprep.subr.mxu0 %v1520
  %1825 = vmatpush1.msra.mxu0 %v1519
  %1826 = vmatprep.subr.mxu0 %v1514
  %1827 = vmatpush1.msra.mxu0 %v1513
  %1828 = vmatprep.subr.mxu0 %v1508
  %1829 = vmatpush1.msra.mxu0 %v1507
  %1830 = vmatprep.subr.mxu0 %v1502
  %1831 = vmatpush1.msra.mxu0 %v1501
  %1832 = vmatprep.subr.mxu0 %v1496
  %1833 = vmatpush1.msra.mxu0 %v1495
  %1834 = vmatprep.subr.mxu0 %v1490
  %1835 = vmatpush1.msra.mxu0 %v1489
  %1836 = vmatprep.subr.mxu0 0.0
  %1837 = vmatpush2.msra.mxu0 0.0
  %1838 = vmatprep.subr.mxu0 0.0
  %1839 = vmatpush2.msra.mxu0 0.0
  %1840 = vmatprep.subr.mxu0 0.0
  %1841 = vmatpush2.msra.mxu0 0.0
  %1842 = vmatprep.subr.mxu0 0.0
  %1843 = vmatpush2.msra.mxu0 0.0
  %1844 = vmatprep.subr.mxu0 0.0
  %1845 = vmatpush2.msra.mxu0 0.0
  %1846 = vmatprep.subr.mxu0 0.0
  %1847 = vmatpush2.msra.mxu0 0.0
  %1848 = vmatprep.subr.mxu0 0.0
  %1849 = vmatpush2.msra.mxu0 0.0
  %1850 = vmatprep.subr.mxu0 0.0
  %1851 = vmatpush2.msra.mxu0 0.0
  %1852 = vmatprep.subr.mxu0 0.0
  %1853 = vmatpush2.msra.mxu0 0.0
  %1854 = vmatprep.subr.mxu0 0.0
  %1855 = vmatpush2.msra.mxu0 0.0
  %1856 = vmatprep.subr.mxu0 0.0
  %1857 = vmatpush2.msra.mxu0 0.0
  %1858 = vmatprep.subr.mxu0 0.0
  %1859 = vmatpush2.msra.mxu0 0.0
  %1860 = vmatprep.subr.mxu0 0.0
  %1861 = vmatpush2.msra.mxu0 0.0
  %1862 = vmatprep.subr.mxu0 0.0
  %1863 = vmatpush2.msra.mxu0 0.0
  %1864 = vmatprep.subr.mxu0 %v1592
  %1865 = vmatpush2.msra.mxu0 %v1591
  %1866 = vmatprep.subr.mxu0 %v1586
  %1867 = vmatpush2.msra.mxu0 %v1585
  %1868 = vmatprep.mubr.f32.mxu0 %v1615
  %1869 = vmatmul.mubr.f32.gmra.mxu0 %v1473
  %v1870 = vpop.f32.mrf.mxu0
  %v1871 = vadd.f32 %v1596, %v1870
  %v1872 = vpop.f32.mrf.mxu0
  %v1873 = vadd.f32 %v1596, %v1872
  %1874 = vmatprep.mubr.f32.mxu0 %v1618
  %1875 = vmatmul.mubr.f32.gmra.mxu0 %v1475
  %v1876 = vpop.f32.mrf.mxu0
  %v1877 = vadd.f32 %v1601, %v1876
  %v1878 = vpop.f32.mrf.mxu0
  %v1879 = vadd.f32 %v1601, %v1878
  %1880 = vmatprep.mubr.f32.mxu0 %v1621
  %1881 = vmatmul.mubr.f32.gmra.mxu0 %v1477
  %v1882 = vpop.f32.mrf.mxu0
  %v1883 = vadd.f32 %v1606, %v1882
  %v1884 = vpop.f32.mrf.mxu0
  %v1885 = vadd.f32 %v1606, %v1884
  %1886 = vmatprep.mubr.f32.mxu0 %v1624
  %1887 = vmatmul.mubr.f32.gmra.mxu0 %v1479
  %v1888 = vpop.f32.mrf.mxu0
  %v1889 = vadd.f32 %v1611, %v1888
  %v1890 = vpop.f32.mrf.mxu0
  %v1891 = vadd.f32 %v1611, %v1890
  %1892 = vdwg.mxu0
  %v1893 = vmax.f32 %v1693, 0.0
  %v1894 = vmax.f32 %v1695, 0.0
  %v1895 = vmax.f32 %v1782, 0.0
  %v1896 = vmax.f32 %v1784, 0.0
  %v1897 = vmax.f32 %v1871, 0.0
  %v1898 = vmax.f32 %v1873, 0.0
  %v1899 = vmax.f32 %v1699, 0.0
  %v1900 = vmax.f32 %v1701, 0.0
  %v1901 = vmax.f32 %v1788, 0.0
  %v1902 = vmax.f32 %v1790, 0.0
  %v1903 = vmax.f32 %v1877, 0.0
  %v1904 = vmax.f32 %v1879, 0.0
  %v1905 = vmax.f32 %v1705, 0.0
  %v1906 = vmax.f32 %v1707, 0.0
  %v1907 = vmax.f32 %v1794, 0.0
  %v1908 = vmax.f32 %v1796, 0.0
  %v1909 = vmax.f32 %v1883, 0.0
  %v1910 = vmax.f32 %v1885, 0.0
  %v1911 = vmax.f32 %v1711, 0.0
  %v1912 = vmax.f32 %v1713, 0.0
  %v1913 = vmax.f32 %v1800, 0.0
  %v1914 = vmax.f32 %v1802, 0.0
  %v1915 = vmax.f32 %v1889, 0.0
  %v1916 = vmax.f32 %v1891, 0.0
  %v1917 = vmul.f32 %v1893, %v517
  %v1918 = vmul.f32 %v1894, %v521
  %v1919 = vmul.f32 %v1895, %v525
  %v1920 = vmul.f32 %v1896, %v529
  %v1921 = vmul.f32 %v1897, %v533
  %v1922 = vmul.f32 %v1898, %v537
  %v1923 = vmul.f32 %v1899, %v517
  %v1924 = vmul.f32 %v1900, %v521
  %v1925 = vmul.f32 %v1901, %v525
  %v1926 = vmul.f32 %v1902, %v529
  %v1927 = vmul.f32 %v1903, %v533
  %v1928 = vmul.f32 %v1904, %v537
  %v1929 = vmul.f32 %v1905, %v517
  %v1930 = vmul.f32 %v1906, %v521
  %v1931 = vmul.f32 %v1907, %v525
  %v1932 = vmul.f32 %v1908, %v529
  %v1933 = vmul.f32 %v1909, %v533
  %v1934 = vmul.f32 %v1910, %v537
  %v1935 = vmul.f32 %v1911, %v517
  %v1936 = vmul.f32 %v1912, %v521
  %v1937 = vmul.f32 %v1913, %v525
  %v1938 = vmul.f32 %v1914, %v529
  %v1939 = vmul.f32 %v1915, %v533
  %v1940 = vmul.f32 %v1916, %v537
  %1941 = vrot.lane.b32.xlu0 %v1917, 19
  %v1942 = vpop.permute.xlu0 %1941
  %1943 = vrot.lane.b32.xlu0 %v1923, 19
  %v1944 = vpop.permute.xlu0 %1943
  %1945 = vrot.lane.b32.xlu0 %v1929, 19
  %v1946 = vpop.permute.xlu0 %1945
  %1947 = vrot.lane.b32.xlu0 %v1935, 19
  %v1948 = vpop.permute.xlu0 %1947
  %1949 = vrot.lane.b32.xlu0 %v1918, 19
  %v1950 = vpop.permute.xlu0 %1949
  %1951 = vrot.lane.b32.xlu0 %v1924, 19
  %v1952 = vpop.permute.xlu0 %1951
  %1953 = vrot.lane.b32.xlu0 %v1930, 19
  %v1954 = vpop.permute.xlu0 %1953
  %1955 = vrot.lane.b32.xlu0 %v1936, 19
  %v1956 = vpop.permute.xlu0 %1955
  %1957 = vrot.lane.b32.xlu0 %v1919, 19
  %v1958 = vpop.permute.xlu0 %1957
  %1959 = vrot.lane.b32.xlu0 %v1925, 19
  %v1960 = vpop.permute.xlu0 %1959
  %1961 = vrot.lane.b32.xlu0 %v1931, 19
  %v1962 = vpop.permute.xlu0 %1961
  %1963 = vrot.lane.b32.xlu0 %v1937, 19
  %v1964 = vpop.permute.xlu0 %1963
  %1965 = vrot.lane.b32.xlu0 %v1920, 19
  %v1966 = vpop.permute.xlu0 %1965
  %1967 = vrot.lane.b32.xlu0 %v1926, 19
  %v1968 = vpop.permute.xlu0 %1967
  %1969 = vrot.lane.b32.xlu0 %v1932, 19
  %v1970 = vpop.permute.xlu0 %1969
  %1971 = vrot.lane.b32.xlu0 %v1938, 19
  %v1972 = vpop.permute.xlu0 %1971
  %1973 = vrot.lane.b32.xlu0 %v1921, 19
  %v1974 = vpop.permute.xlu0 %1973
  %1975 = vrot.lane.b32.xlu0 %v1927, 19
  %v1976 = vpop.permute.xlu0 %1975
  %1977 = vrot.lane.b32.xlu0 %v1933, 19
  %v1978 = vpop.permute.xlu0 %1977
  %1979 = vrot.lane.b32.xlu0 %v1939, 19
  %v1980 = vpop.permute.xlu0 %1979
  %1981 = vrot.lane.b32.xlu0 %v1922, 19
  %v1982 = vpop.permute.xlu0 %1981
  %1983 = vrot.lane.b32.xlu0 %v1928, 19
  %v1984 = vpop.permute.xlu0 %1983
  %1985 = vrot.lane.b32.xlu0 %v1934, 19
  %v1986 = vpop.permute.xlu0 %1985
  %1987 = vrot.lane.b32.xlu0 %v1940, 19
  %v1988 = vpop.permute.xlu0 %1987
  %v1989 = vsel %vm35, %v1974, %v1982
  %v1990 = vsel %vm35, %v1976, %v1984
  %v1991 = vsel %vm35, %v1978, %v1986
  %v1992 = vsel %vm35, %v1980, %v1988
  %v1993 = vsel %vm35, %v1966, %v1974
  %v1994 = vsel %vm35, %v1968, %v1976
  %v1995 = vsel %vm35, %v1970, %v1978
  %v1996 = vsel %vm35, %v1972, %v1980
  %v1997 = vsel %vm35, %v1958, %v1966
  %v1998 = vsel %vm35, %v1960, %v1968
  %v1999 = vsel %vm35, %v1962, %v1970
  %v2000 = vsel %vm35, %v1964, %v1972
  %v2001 = vsel %vm35, %v1950, %v1958
  %v2002 = vsel %vm35, %v1952, %v1960
  %v2003 = vsel %vm35, %v1954, %v1962
  %v2004 = vsel %vm35, %v1956, %v1964
  %v2005 = vsel %vm35, %v1942, %v1950
  %v2006 = vsel %vm35, %v1944, %v1952
  %v2007 = vsel %vm35, %v1946, %v1954
  %v2008 = vsel %vm35, %v1948, %v1956
  %v2009 = vsel %vm35, %v1982, %v1942
  %v2010 = vsel %vm35, %v1984, %v1944
  %v2011 = vsel %vm35, %v1986, %v1946
  %v2012 = vsel %vm35, %v1988, %v1948
  %2013 = vst [vmem:[#allocation2] sm:$0xff] %v2009
  %2014 = vst [vmem:[#allocation2 + $0x8] sm:$0xff] %v2005
  %2015 = vst [vmem:[#allocation2 + $0x10] sm:$0xff] %v2001
  %2016 = vst [vmem:[#allocation2 + $0x18] sm:$0xff] %v1997
  %2017 = vst [vmem:[#allocation2 + $0x20] sm:$0xff] %v1993
  %2018 = vst [vmem:[#allocation2 + $0x28] sm:$0xff] %v1989
  %2019 = vst [vmem:[#allocation2 + $0x30] sm:$0xff] %v2010
  %2020 = vst [vmem:[#allocation2 + $0x38] sm:$0xff] %v2006
  %2021 = vst [vmem:[#allocation2 + $0x40] sm:$0xff] %v2002
  %2022 = vst [vmem:[#allocation2 + $0x48] sm:$0xff] %v1998
  %2023 = vst [vmem:[#allocation2 + $0x50] sm:$0xff] %v1994
  %2024 = vst [vmem:[#allocation2 + $0x58] sm:$0xff] %v1990
  %2025 = vst [vmem:[#allocation2 + $0x60] sm:$0xff] %v2011
  %2026 = vst [vmem:[#allocation2 + $0x68] sm:$0xff] %v2007
  %2027 = vst [vmem:[#allocation2 + $0x70] sm:$0xff] %v2003
  %2028 = vst [vmem:[#allocation2 + $0x78] sm:$0xff] %v1999
  %2029 = vst [vmem:[#allocation2 + $0x80] sm:$0xff] %v1995
  %2030 = vst [vmem:[#allocation2 + $0x88] sm:$0xff] %v1991
  %2031 = vst [vmem:[#allocation2 + $0x90] sm:$0xff] %v2012
  %2032 = vst [vmem:[#allocation2 + $0x98] sm:$0xff] %v2008
  %2033 = vst [vmem:[#allocation2 + $0xa0] sm:$0xff] %v2004
  %2034 = vst [vmem:[#allocation2 + $0xa8] sm:$0xff] %v2000
  %2035 = vst [vmem:[#allocation2 + $0xb0] sm:$0xff] %v1996
  %2036 = vst [vmem:[#allocation2 + $0xb8] sm:$0xff] %v1992
  %2037 = vrot.lane.b32.xlu0 %v1917, 18
  %v2038 = vpop.permute.xlu0 %2037
  %2039 = vrot.lane.b32.xlu0 %v1923, 18
  %v2040 = vpop.permute.xlu0 %2039
  %2041 = vrot.lane.b32.xlu0 %v1929, 18
  %v2042 = vpop.permute.xlu0 %2041
  %2043 = vrot.lane.b32.xlu0 %v1935, 18
  %v2044 = vpop.permute.xlu0 %2043
  %2045 = vrot.lane.b32.xlu0 %v1918, 18
  %v2046 = vpop.permute.xlu0 %2045
  %2047 = vrot.lane.b32.xlu0 %v1924, 18
  %v2048 = vpop.permute.xlu0 %2047
  %2049 = vrot.lane.b32.xlu0 %v1930, 18
  %v2050 = vpop.permute.xlu0 %2049
  %2051 = vrot.lane.b32.xlu0 %v1936, 18
  %v2052 = vpop.permute.xlu0 %2051
  %2053 = vrot.lane.b32.xlu0 %v1919, 18
  %v2054 = vpop.permute.xlu0 %2053
  %2055 = vrot.lane.b32.xlu0 %v1925, 18
  %v2056 = vpop.permute.xlu0 %2055
  %2057 = vrot.lane.b32.xlu0 %v1931, 18
  %v2058 = vpop.permute.xlu0 %2057
  %2059 = vrot.lane.b32.xlu0 %v1937, 18
  %v2060 = vpop.permute.xlu0 %2059
  %2061 = vrot.lane.b32.xlu0 %v1920, 18
  %v2062 = vpop.permute.xlu0 %2061
  %2063 = vrot.lane.b32.xlu0 %v1926, 18
  %v2064 = vpop.permute.xlu0 %2063
  %2065 = vrot.lane.b32.xlu0 %v1932, 18
  %v2066 = vpop.permute.xlu0 %2065
  %2067 = vrot.lane.b32.xlu0 %v1938, 18
  %v2068 = vpop.permute.xlu0 %2067
  %2069 = vrot.lane.b32.xlu0 %v1921, 18
  %v2070 = vpop.permute.xlu0 %2069
  %2071 = vrot.lane.b32.xlu0 %v1927, 18
  %v2072 = vpop.permute.xlu0 %2071
  %2073 = vrot.lane.b32.xlu0 %v1933, 18
  %v2074 = vpop.permute.xlu0 %2073
  %2075 = vrot.lane.b32.xlu0 %v1939, 18
  %v2076 = vpop.permute.xlu0 %2075
  %2077 = vrot.lane.b32.xlu0 %v1922, 18
  %v2078 = vpop.permute.xlu0 %2077
  %2079 = vrot.lane.b32.xlu0 %v1928, 18
  %v2080 = vpop.permute.xlu0 %2079
  %2081 = vrot.lane.b32.xlu0 %v1934, 18
  %v2082 = vpop.permute.xlu0 %2081
  %2083 = vrot.lane.b32.xlu0 %v1940, 18
  %v2084 = vpop.permute.xlu0 %2083
  %v2085 = vsel %vm60, %v2070, %v2078
  %v2086 = vsel %vm60, %v2072, %v2080
  %v2087 = vsel %vm60, %v2074, %v2082
  %v2088 = vsel %vm60, %v2076, %v2084
  %v2089 = vsel %vm60, %v2062, %v2070
  %v2090 = vsel %vm60, %v2064, %v2072
  %v2091 = vsel %vm60, %v2066, %v2074
  %v2092 = vsel %vm60, %v2068, %v2076
  %v2093 = vsel %vm60, %v2054, %v2062
  %v2094 = vsel %vm60, %v2056, %v2064
  %v2095 = vsel %vm60, %v2058, %v2066
  %v2096 = vsel %vm60, %v2060, %v2068
  %v2097 = vsel %vm60, %v2046, %v2054
  %v2098 = vsel %vm60, %v2048, %v2056
  %v2099 = vsel %vm60, %v2050, %v2058
  %v2100 = vsel %vm60, %v2052, %v2060
  %v2101 = vsel %vm60, %v2038, %v2046
  %v2102 = vsel %vm60, %v2040, %v2048
  %v2103 = vsel %vm60, %v2042, %v2050
  %v2104 = vsel %vm60, %v2044, %v2052
  %v2105 = vsel %vm60, %v2078, %v2038
  %v2106 = vsel %vm60, %v2080, %v2040
  %v2107 = vsel %vm60, %v2082, %v2042
  %v2108 = vsel %vm60, %v2084, %v2044
  %2109 = vst [vmem:[#allocation2 + $0xc0] sm:$0xff] %v2105
  %2110 = vst [vmem:[#allocation2 + $0xc8] sm:$0xff] %v2101
  %2111 = vst [vmem:[#allocation2 + $0xd0] sm:$0xff] %v2097
  %2112 = vst [vmem:[#allocation2 + $0xd8] sm:$0xff] %v2093
  %2113 = vst [vmem:[#allocation2 + $0xe0] sm:$0xff] %v2089
  %2114 = vst [vmem:[#allocation2 + $0xe8] sm:$0xff] %v2085
  %2115 = vst [vmem:[#allocation2 + $0xf0] sm:$0xff] %v2106
  %2116 = vst [vmem:[#allocation2 + $0xf8] sm:$0xff] %v2102
  %2117 = vst [vmem:[#allocation2 + $0x100] sm:$0xff] %v2098
  %2118 = vst [vmem:[#allocation2 + $0x108] sm:$0xff] %v2094
  %2119 = vst [vmem:[#allocation2 + $0x110] sm:$0xff] %v2090
  %2120 = vst [vmem:[#allocation2 + $0x118] sm:$0xff] %v2086
  %2121 = vst [vmem:[#allocation2 + $0x120] sm:$0xff] %v2107
  %2122 = vst [vmem:[#allocation2 + $0x128] sm:$0xff] %v2103
  %2123 = vst [vmem:[#allocation2 + $0x130] sm:$0xff] %v2099
  %2124 = vst [vmem:[#allocation2 + $0x138] sm:$0xff] %v2095
  %2125 = vst [vmem:[#allocation2 + $0x140] sm:$0xff] %v2091
  %2126 = vst [vmem:[#allocation2 + $0x148] sm:$0xff] %v2087
  %2127 = vst [vmem:[#allocation2 + $0x150] sm:$0xff] %v2108
  %2128 = vst [vmem:[#allocation2 + $0x158] sm:$0xff] %v2104
  %2129 = vst [vmem:[#allocation2 + $0x160] sm:$0xff] %v2100
  %2130 = vst [vmem:[#allocation2 + $0x168] sm:$0xff] %v2096
  %2131 = vst [vmem:[#allocation2 + $0x170] sm:$0xff] %v2092
  %2132 = vst [vmem:[#allocation2 + $0x178] sm:$0xff] %v2088
  %2133 = vrot.lane.b32.xlu0 %v1917, 17
  %v2134 = vpop.permute.xlu0 %2133
  %2135 = vrot.lane.b32.xlu0 %v1923, 17
  %v2136 = vpop.permute.xlu0 %2135
  %2137 = vrot.lane.b32.xlu0 %v1929, 17
  %v2138 = vpop.permute.xlu0 %2137
  %2139 = vrot.lane.b32.xlu0 %v1935, 17
  %v2140 = vpop.permute.xlu0 %2139
  %2141 = vrot.lane.b32.xlu0 %v1918, 17
  %v2142 = vpop.permute.xlu0 %2141
  %2143 = vrot.lane.b32.xlu0 %v1924, 17
  %v2144 = vpop.permute.xlu0 %2143
  %2145 = vrot.lane.b32.xlu0 %v1930, 17
  %v2146 = vpop.permute.xlu0 %2145
  %2147 = vrot.lane.b32.xlu0 %v1936, 17
  %v2148 = vpop.permute.xlu0 %2147
  %2149 = vrot.lane.b32.xlu0 %v1919, 17
  %v2150 = vpop.permute.xlu0 %2149
  %2151 = vrot.lane.b32.xlu0 %v1925, 17
  %v2152 = vpop.permute.xlu0 %2151
  %2153 = vrot.lane.b32.xlu0 %v1931, 17
  %v2154 = vpop.permute.xlu0 %2153
  %2155 = vrot.lane.b32.xlu0 %v1937, 17
  %v2156 = vpop.permute.xlu0 %2155
  %2157 = vrot.lane.b32.xlu0 %v1920, 17
  %v2158 = vpop.permute.xlu0 %2157
  %2159 = vrot.lane.b32.xlu0 %v1926, 17
  %v2160 = vpop.permute.xlu0 %2159
  %2161 = vrot.lane.b32.xlu0 %v1932, 17
  %v2162 = vpop.permute.xlu0 %2161
  %2163 = vrot.lane.b32.xlu0 %v1938, 17
  %v2164 = vpop.permute.xlu0 %2163
  %2165 = vrot.lane.b32.xlu0 %v1921, 17
  %v2166 = vpop.permute.xlu0 %2165
  %2167 = vrot.lane.b32.xlu0 %v1927, 17
  %v2168 = vpop.permute.xlu0 %2167
  %2169 = vrot.lane.b32.xlu0 %v1933, 17
  %v2170 = vpop.permute.xlu0 %2169
  %2171 = vrot.lane.b32.xlu0 %v1939, 17
  %v2172 = vpop.permute.xlu0 %2171
  %2173 = vrot.lane.b32.xlu0 %v1922, 17
  %v2174 = vpop.permute.xlu0 %2173
  %2175 = vrot.lane.b32.xlu0 %v1928, 17
  %v2176 = vpop.permute.xlu0 %2175
  %2177 = vrot.lane.b32.xlu0 %v1934, 17
  %v2178 = vpop.permute.xlu0 %2177
  %2179 = vrot.lane.b32.xlu0 %v1940, 17
  %v2180 = vpop.permute.xlu0 %2179
  %v2181 = vsel %vm85, %v2166, %v2174
  %v2182 = vsel %vm85, %v2168, %v2176
  %v2183 = vsel %vm85, %v2170, %v2178
  %v2184 = vsel %vm85, %v2172, %v2180
  %v2185 = vsel %vm85, %v2158, %v2166
  %v2186 = vsel %vm85, %v2160, %v2168
  %v2187 = vsel %vm85, %v2162, %v2170
  %v2188 = vsel %vm85, %v2164, %v2172
  %v2189 = vsel %vm85, %v2150, %v2158
  %v2190 = vsel %vm85, %v2152, %v2160
  %v2191 = vsel %vm85, %v2154, %v2162
  %v2192 = vsel %vm85, %v2156, %v2164
  %v2193 = vsel %vm85, %v2142, %v2150
  %v2194 = vsel %vm85, %v2144, %v2152
  %v2195 = vsel %vm85, %v2146, %v2154
  %v2196 = vsel %vm85, %v2148, %v2156
  %v2197 = vsel %vm85, %v2134, %v2142
  %v2198 = vsel %vm85, %v2136, %v2144
  %v2199 = vsel %vm85, %v2138, %v2146
  %v2200 = vsel %vm85, %v2140, %v2148
  %v2201 = vsel %vm85, %v2174, %v2134
  %v2202 = vsel %vm85, %v2176, %v2136
  %v2203 = vsel %vm85, %v2178, %v2138
  %v2204 = vsel %vm85, %v2180, %v2140
  %2205 = vst [vmem:[#allocation2 + $0x180] sm:$0xff] %v2201
  %2206 = vst [vmem:[#allocation2 + $0x188] sm:$0xff] %v2197
  %2207 = vst [vmem:[#allocation2 + $0x190] sm:$0xff] %v2193
  %2208 = vst [vmem:[#allocation2 + $0x198] sm:$0xff] %v2189
  %2209 = vst [vmem:[#allocation2 + $0x1a0] sm:$0xff] %v2185
  %2210 = vst [vmem:[#allocation2 + $0x1a8] sm:$0xff] %v2181
  %2211 = vst [vmem:[#allocation2 + $0x1b0] sm:$0xff] %v2202
  %2212 = vst [vmem:[#allocation2 + $0x1b8] sm:$0xff] %v2198
  %2213 = vst [vmem:[#allocation2 + $0x1c0] sm:$0xff] %v2194
  %2214 = vst [vmem:[#allocation2 + $0x1c8] sm:$0xff] %v2190
  %2215 = vst [vmem:[#allocation2 + $0x1d0] sm:$0xff] %v2186
  %2216 = vst [vmem:[#allocation2 + $0x1d8] sm:$0xff] %v2182
  %2217 = vst [vmem:[#allocation2 + $0x1e0] sm:$0xff] %v2203
  %2218 = vst [vmem:[#allocation2 + $0x1e8] sm:$0xff] %v2199
  %2219 = vst [vmem:[#allocation2 + $0x1f0] sm:$0xff] %v2195
  %2220 = vst [vmem:[#allocation2 + $0x1f8] sm:$0xff] %v2191
  %2221 = vst [vmem:[#allocation2 + $0x200] sm:$0xff] %v2187
  %2222 = vst [vmem:[#allocation2 + $0x208] sm:$0xff] %v2183
  %2223 = vst [vmem:[#allocation2 + $0x210] sm:$0xff] %v2204
  %2224 = vst [vmem:[#allocation2 + $0x218] sm:$0xff] %v2200
  %2225 = vst [vmem:[#allocation2 + $0x220] sm:$0xff] %v2196
  %2226 = vst [vmem:[#allocation2 + $0x228] sm:$0xff] %v2192
  %2227 = vst [vmem:[#allocation2 + $0x230] sm:$0xff] %v2188
  %2228 = vst [vmem:[#allocation2 + $0x238] sm:$0xff] %v2184
  %2229 = vrot.lane.b32.xlu0 %v1917, 1
  %v2230 = vpop.permute.xlu0 %2229
  %2231 = vrot.lane.b32.xlu0 %v1923, 1
  %v2232 = vpop.permute.xlu0 %2231
  %2233 = vrot.lane.b32.xlu0 %v1929, 1
  %v2234 = vpop.permute.xlu0 %2233
  %2235 = vrot.lane.b32.xlu0 %v1935, 1
  %v2236 = vpop.permute.xlu0 %2235
  %2237 = vrot.lane.b32.xlu0 %v1918, 1
  %v2238 = vpop.permute.xlu0 %2237
  %2239 = vrot.lane.b32.xlu0 %v1924, 1
  %v2240 = vpop.permute.xlu0 %2239
  %2241 = vrot.lane.b32.xlu0 %v1930, 1
  %v2242 = vpop.permute.xlu0 %2241
  %2243 = vrot.lane.b32.xlu0 %v1936, 1
  %v2244 = vpop.permute.xlu0 %2243
  %2245 = vrot.lane.b32.xlu0 %v1919, 1
  %v2246 = vpop.permute.xlu0 %2245
  %2247 = vrot.lane.b32.xlu0 %v1925, 1
  %v2248 = vpop.permute.xlu0 %2247
  %2249 = vrot.lane.b32.xlu0 %v1931, 1
  %v2250 = vpop.permute.xlu0 %2249
  %2251 = vrot.lane.b32.xlu0 %v1937, 1
  %v2252 = vpop.permute.xlu0 %2251
  %2253 = vrot.lane.b32.xlu0 %v1920, 1
  %v2254 = vpop.permute.xlu0 %2253
  %2255 = vrot.lane.b32.xlu0 %v1926, 1
  %v2256 = vpop.permute.xlu0 %2255
  %2257 = vrot.lane.b32.xlu0 %v1932, 1
  %v2258 = vpop.permute.xlu0 %2257
  %2259 = vrot.lane.b32.xlu0 %v1938, 1
  %v2260 = vpop.permute.xlu0 %2259
  %2261 = vrot.lane.b32.xlu0 %v1921, 1
  %v2262 = vpop.permute.xlu0 %2261
  %2263 = vrot.lane.b32.xlu0 %v1927, 1
  %v2264 = vpop.permute.xlu0 %2263
  %2265 = vrot.lane.b32.xlu0 %v1933, 1
  %v2266 = vpop.permute.xlu0 %2265
  %2267 = vrot.lane.b32.xlu0 %v1939, 1
  %v2268 = vpop.permute.xlu0 %2267
  %2269 = vrot.lane.b32.xlu0 %v1922, 1
  %v2270 = vpop.permute.xlu0 %2269
  %2271 = vrot.lane.b32.xlu0 %v1928, 1
  %v2272 = vpop.permute.xlu0 %2271
  %2273 = vrot.lane.b32.xlu0 %v1934, 1
  %v2274 = vpop.permute.xlu0 %2273
  %2275 = vrot.lane.b32.xlu0 %v1940, 1
  %v2276 = vpop.permute.xlu0 %2275
  %v2277 = vsel %vm110, %v2262, %v2270
  %v2278 = vsel %vm110, %v2264, %v2272
  %v2279 = vsel %vm110, %v2266, %v2274
  %v2280 = vsel %vm110, %v2268, %v2276
  %v2281 = vsel %vm110, %v2254, %v2262
  %v2282 = vsel %vm110, %v2256, %v2264
  %v2283 = vsel %vm110, %v2258, %v2266
  %v2284 = vsel %vm110, %v2260, %v2268
  %v2285 = vsel %vm110, %v2246, %v2254
  %v2286 = vsel %vm110, %v2248, %v2256
  %v2287 = vsel %vm110, %v2250, %v2258
  %v2288 = vsel %vm110, %v2252, %v2260
  %v2289 = vsel %vm110, %v2238, %v2246
  %v2290 = vsel %vm110, %v2240, %v2248
  %v2291 = vsel %vm110, %v2242, %v2250
  %v2292 = vsel %vm110, %v2244, %v2252
  %v2293 = vsel %vm110, %v2230, %v2238
  %v2294 = vsel %vm110, %v2232, %v2240
  %v2295 = vsel %vm110, %v2234, %v2242
  %v2296 = vsel %vm110, %v2236, %v2244
  %v2297 = vsel %vm110, %v2270, %v2230
  %v2298 = vsel %vm110, %v2272, %v2232
  %v2299 = vsel %vm110, %v2274, %v2234
  %v2300 = vsel %vm110, %v2276, %v2236
  %2301 = vst [vmem:[#allocation2 + $0x240] sm:$0xff] %v2297
  %2302 = vst [vmem:[#allocation2 + $0x248] sm:$0xff] %v2293
  %2303 = vst [vmem:[#allocation2 + $0x250] sm:$0xff] %v2289
  %2304 = vst [vmem:[#allocation2 + $0x258] sm:$0xff] %v2285
  %2305 = vst [vmem:[#allocation2 + $0x260] sm:$0xff] %v2281
  %2306 = vst [vmem:[#allocation2 + $0x268] sm:$0xff] %v2277
  %2307 = vst [vmem:[#allocation2 + $0x270] sm:$0xff] %v2298
  %2308 = vst [vmem:[#allocation2 + $0x278] sm:$0xff] %v2294
  %2309 = vst [vmem:[#allocation2 + $0x280] sm:$0xff] %v2290
  %2310 = vst [vmem:[#allocation2 + $0x288] sm:$0xff] %v2286
  %2311 = vst [vmem:[#allocation2 + $0x290] sm:$0xff] %v2282
  %2312 = vst [vmem:[#allocation2 + $0x298] sm:$0xff] %v2278
  %2313 = vst [vmem:[#allocation2 + $0x2a0] sm:$0xff] %v2299
  %2314 = vst [vmem:[#allocation2 + $0x2a8] sm:$0xff] %v2295
  %2315 = vst [vmem:[#allocation2 + $0x2b0] sm:$0xff] %v2291
  %2316 = vst [vmem:[#allocation2 + $0x2b8] sm:$0xff] %v2287
  %2317 = vst [vmem:[#allocation2 + $0x2c0] sm:$0xff] %v2283
  %2318 = vst [vmem:[#allocation2 + $0x2c8] sm:$0xff] %v2279
  %2319 = vst [vmem:[#allocation2 + $0x2d0] sm:$0xff] %v2300
  %2320 = vst [vmem:[#allocation2 + $0x2d8] sm:$0xff] %v2296
  %2321 = vst [vmem:[#allocation2 + $0x2e0] sm:$0xff] %v2292
  %2322 = vst [vmem:[#allocation2 + $0x2e8] sm:$0xff] %v2288
  %2323 = vst [vmem:[#allocation2 + $0x2f0] sm:$0xff] %v2284
  %2324 = vst [vmem:[#allocation2 + $0x2f8] sm:$0xff] %v2280
  %2325 = vst [vmem:[#allocation2 + $0x300] sm:$0xff] %v1917
  %2326 = vst [vmem:[#allocation2 + $0x308] sm:$0xff] %v1918
  %2327 = vst [vmem:[#allocation2 + $0x310] sm:$0xff] %v1919
  %2328 = vst [vmem:[#allocation2 + $0x318] sm:$0xff] %v1920
  %2329 = vst [vmem:[#allocation2 + $0x320] sm:$0xff] %v1921
  %2330 = vst [vmem:[#allocation2 + $0x328] sm:$0xff] %v1922
  %2331 = vst [vmem:[#allocation2 + $0x330] sm:$0xff] %v1923
  %2332 = vst [vmem:[#allocation2 + $0x338] sm:$0xff] %v1924
  %2333 = vst [vmem:[#allocation2 + $0x340] sm:$0xff] %v1925
  %2334 = vst [vmem:[#allocation2 + $0x348] sm:$0xff] %v1926
  %2335 = vst [vmem:[#allocation2 + $0x350] sm:$0xff] %v1927
  %2336 = vst [vmem:[#allocation2 + $0x358] sm:$0xff] %v1928
  %2337 = vst [vmem:[#allocation2 + $0x360] sm:$0xff] %v1929
  %2338 = vst [vmem:[#allocation2 + $0x368] sm:$0xff] %v1930
  %2339 = vst [vmem:[#allocation2 + $0x370] sm:$0xff] %v1931
  %2340 = vst [vmem:[#allocation2 + $0x378] sm:$0xff] %v1932
  %2341 = vst [vmem:[#allocation2 + $0x380] sm:$0xff] %v1933
  %2342 = vst [vmem:[#allocation2 + $0x388] sm:$0xff] %v1934
  %2343 = vst [vmem:[#allocation2 + $0x390] sm:$0xff] %v1935
  %2344 = vst [vmem:[#allocation2 + $0x398] sm:$0xff] %v1936
  %2345 = vst [vmem:[#allocation2 + $0x3a0] sm:$0xff] %v1937
  %2346 = vst [vmem:[#allocation2 + $0x3a8] sm:$0xff] %v1938
  %2347 = vst [vmem:[#allocation2 + $0x3b0] sm:$0xff] %v1939
  %2348 = vst [vmem:[#allocation2 + $0x3b8] sm:$0xff] %v1940
  %2349 = vrot.lane.b32.xlu0 %v1917, 127
  %v2350 = vpop.permute.xlu0 %2349
  %2351 = vrot.lane.b32.xlu0 %v1923, 127
  %v2352 = vpop.permute.xlu0 %2351
  %2353 = vrot.lane.b32.xlu0 %v1929, 127
  %v2354 = vpop.permute.xlu0 %2353
  %2355 = vrot.lane.b32.xlu0 %v1935, 127
  %v2356 = vpop.permute.xlu0 %2355
  %2357 = vrot.lane.b32.xlu0 %v1918, 127
  %v2358 = vpop.permute.xlu0 %2357
  %2359 = vrot.lane.b32.xlu0 %v1924, 127
  %v2360 = vpop.permute.xlu0 %2359
  %2361 = vrot.lane.b32.xlu0 %v1930, 127
  %v2362 = vpop.permute.xlu0 %2361
  %2363 = vrot.lane.b32.xlu0 %v1936, 127
  %v2364 = vpop.permute.xlu0 %2363
  %2365 = vrot.lane.b32.xlu0 %v1919, 127
  %v2366 = vpop.permute.xlu0 %2365
  %2367 = vrot.lane.b32.xlu0 %v1925, 127
  %v2368 = vpop.permute.xlu0 %2367
  %2369 = vrot.lane.b32.xlu0 %v1931, 127
  %v2370 = vpop.permute.xlu0 %2369
  %2371 = vrot.lane.b32.xlu0 %v1937, 127
  %v2372 = vpop.permute.xlu0 %2371
  %2373 = vrot.lane.b32.xlu0 %v1920, 127
  %v2374 = vpop.permute.xlu0 %2373
  %2375 = vrot.lane.b32.xlu0 %v1926, 127
  %v2376 = vpop.permute.xlu0 %2375
  %2377 = vrot.lane.b32.xlu0 %v1932, 127
  %v2378 = vpop.permute.xlu0 %2377
  %2379 = vrot.lane.b32.xlu0 %v1938, 127
  %v2380 = vpop.permute.xlu0 %2379
  %2381 = vrot.lane.b32.xlu0 %v1921, 127
  %v2382 = vpop.permute.xlu0 %2381
  %2383 = vrot.lane.b32.xlu0 %v1927, 127
  %v2384 = vpop.permute.xlu0 %2383
  %2385 = vrot.lane.b32.xlu0 %v1933, 127
  %v2386 = vpop.permute.xlu0 %2385
  %2387 = vrot.lane.b32.xlu0 %v1939, 127
  %v2388 = vpop.permute.xlu0 %2387
  %2389 = vrot.lane.b32.xlu0 %v1922, 127
  %v2390 = vpop.permute.xlu0 %2389
  %2391 = vrot.lane.b32.xlu0 %v1928, 127
  %v2392 = vpop.permute.xlu0 %2391
  %2393 = vrot.lane.b32.xlu0 %v1934, 127
  %v2394 = vpop.permute.xlu0 %2393
  %2395 = vrot.lane.b32.xlu0 %v1940, 127
  %v2396 = vpop.permute.xlu0 %2395
  %v2397 = vsel %vm141, %v2382, %v2390
  %v2398 = vsel %vm141, %v2384, %v2392
  %v2399 = vsel %vm141, %v2386, %v2394
  %v2400 = vsel %vm141, %v2388, %v2396
  %v2401 = vsel %vm141, %v2374, %v2382
  %v2402 = vsel %vm141, %v2376, %v2384
  %v2403 = vsel %vm141, %v2378, %v2386
  %v2404 = vsel %vm141, %v2380, %v2388
  %v2405 = vsel %vm141, %v2366, %v2374
  %v2406 = vsel %vm141, %v2368, %v2376
  %v2407 = vsel %vm141, %v2370, %v2378
  %v2408 = vsel %vm141, %v2372, %v2380
  %v2409 = vsel %vm141, %v2358, %v2366
  %v2410 = vsel %vm141, %v2360, %v2368
  %v2411 = vsel %vm141, %v2362, %v2370
  %v2412 = vsel %vm141, %v2364, %v2372
  %v2413 = vsel %vm141, %v2350, %v2358
  %v2414 = vsel %vm141, %v2352, %v2360
  %v2415 = vsel %vm141, %v2354, %v2362
  %v2416 = vsel %vm141, %v2356, %v2364
  %v2417 = vsel %vm141, %v2390, %v2350
  %v2418 = vsel %vm141, %v2392, %v2352
  %v2419 = vsel %vm141, %v2394, %v2354
  %v2420 = vsel %vm141, %v2396, %v2356
  %2421 = vst [vmem:[#allocation2 + $0x3c0] sm:$0xff] %v2413
  %2422 = vst [vmem:[#allocation2 + $0x3c8] sm:$0xff] %v2409
  %2423 = vst [vmem:[#allocation2 + $0x3d0] sm:$0xff] %v2405
  %2424 = vst [vmem:[#allocation2 + $0x3d8] sm:$0xff] %v2401
  %2425 = vst [vmem:[#allocation2 + $0x3e0] sm:$0xff] %v2397
  %2426 = vst [vmem:[#allocation2 + $0x3e8] sm:$0xff] %v2417
  %2427 = vst [vmem:[#allocation2 + $0x3f0] sm:$0xff] %v2414
  %2428 = vst [vmem:[#allocation2 + $0x3f8] sm:$0xff] %v2410
  %2429 = vst [vmem:[#allocation2 + $0x400] sm:$0xff] %v2406
  %2430 = vst [vmem:[#allocation2 + $0x408] sm:$0xff] %v2402
  %2431 = vst [vmem:[#allocation2 + $0x410] sm:$0xff] %v2398
  %2432 = vst [vmem:[#allocation2 + $0x418] sm:$0xff] %v2418
  %2433 = vst [vmem:[#allocation2 + $0x420] sm:$0xff] %v2415
  %2434 = vst [vmem:[#allocation2 + $0x428] sm:$0xff] %v2411
  %2435 = vst [vmem:[#allocation2 + $0x430] sm:$0xff] %v2407
  %2436 = vst [vmem:[#allocation2 + $0x438] sm:$0xff] %v2403
  %2437 = vst [vmem:[#allocation2 + $0x440] sm:$0xff] %v2399
  %2438 = vst [vmem:[#allocation2 + $0x448] sm:$0xff] %v2419
  %2439 = vst [vmem:[#allocation2 + $0x450] sm:$0xff] %v2416
  %2440 = vst [vmem:[#allocation2 + $0x458] sm:$0xff] %v2412
  %2441 = vst [vmem:[#allocation2 + $0x460] sm:$0xff] %v2408
  %2442 = vst [vmem:[#allocation2 + $0x468] sm:$0xff] %v2404
  %2443 = vst [vmem:[#allocation2 + $0x470] sm:$0xff] %v2400
  %2444 = vst [vmem:[#allocation2 + $0x478] sm:$0xff] %v2420
  %2445 = vrot.lane.b32.xlu0 %v1917, 111
  %v2446 = vpop.permute.xlu0 %2445
  %2447 = vrot.lane.b32.xlu0 %v1923, 111
  %v2448 = vpop.permute.xlu0 %2447
  %2449 = vrot.lane.b32.xlu0 %v1929, 111
  %v2450 = vpop.permute.xlu0 %2449
  %2451 = vrot.lane.b32.xlu0 %v1935, 111
  %v2452 = vpop.permute.xlu0 %2451
  %2453 = vrot.lane.b32.xlu0 %v1918, 111
  %v2454 = vpop.permute.xlu0 %2453
  %2455 = vrot.lane.b32.xlu0 %v1924, 111
  %v2456 = vpop.permute.xlu0 %2455
  %2457 = vrot.lane.b32.xlu0 %v1930, 111
  %v2458 = vpop.permute.xlu0 %2457
  %2459 = vrot.lane.b32.xlu0 %v1936, 111
  %v2460 = vpop.permute.xlu0 %2459
  %2461 = vrot.lane.b32.xlu0 %v1919, 111
  %v2462 = vpop.permute.xlu0 %2461
  %2463 = vrot.lane.b32.xlu0 %v1925, 111
  %v2464 = vpop.permute.xlu0 %2463
  %2465 = vrot.lane.b32.xlu0 %v1931, 111
  %v2466 = vpop.permute.xlu0 %2465
  %2467 = vrot.lane.b32.xlu0 %v1937, 111
  %v2468 = vpop.permute.xlu0 %2467
  %2469 = vrot.lane.b32.xlu0 %v1920, 111
  %v2470 = vpop.permute.xlu0 %2469
  %2471 = vrot.lane.b32.xlu0 %v1926, 111
  %v2472 = vpop.permute.xlu0 %2471
  %2473 = vrot.lane.b32.xlu0 %v1932, 111
  %v2474 = vpop.permute.xlu0 %2473
  %2475 = vrot.lane.b32.xlu0 %v1938, 111
  %v2476 = vpop.permute.xlu0 %2475
  %2477 = vrot.lane.b32.xlu0 %v1921, 111
  %v2478 = vpop.permute.xlu0 %2477
  %2479 = vrot.lane.b32.xlu0 %v1927, 111
  %v2480 = vpop.permute.xlu0 %2479
  %2481 = vrot.lane.b32.xlu0 %v1933, 111
  %v2482 = vpop.permute.xlu0 %2481
  %2483 = vrot.lane.b32.xlu0 %v1939, 111
  %v2484 = vpop.permute.xlu0 %2483
  %2485 = vrot.lane.b32.xlu0 %v1922, 111
  %v2486 = vpop.permute.xlu0 %2485
  %2487 = vrot.lane.b32.xlu0 %v1928, 111
  %v2488 = vpop.permute.xlu0 %2487
  %2489 = vrot.lane.b32.xlu0 %v1934, 111
  %v2490 = vpop.permute.xlu0 %2489
  %2491 = vrot.lane.b32.xlu0 %v1940, 111
  %v2492 = vpop.permute.xlu0 %2491
  %v2493 = vsel %vm166, %v2478, %v2486
  %v2494 = vsel %vm166, %v2480, %v2488
  %v2495 = vsel %vm166, %v2482, %v2490
  %v2496 = vsel %vm166, %v2484, %v2492
  %v2497 = vsel %vm166, %v2470, %v2478
  %v2498 = vsel %vm166, %v2472, %v2480
  %v2499 = vsel %vm166, %v2474, %v2482
  %v2500 = vsel %vm166, %v2476, %v2484
  %v2501 = vsel %vm166, %v2462, %v2470
  %v2502 = vsel %vm166, %v2464, %v2472
  %v2503 = vsel %vm166, %v2466, %v2474
  %v2504 = vsel %vm166, %v2468, %v2476
  %v2505 = vsel %vm166, %v2454, %v2462
  %v2506 = vsel %vm166, %v2456, %v2464
  %v2507 = vsel %vm166, %v2458, %v2466
  %v2508 = vsel %vm166, %v2460, %v2468
  %v2509 = vsel %vm166, %v2446, %v2454
  %v2510 = vsel %vm166, %v2448, %v2456
  %v2511 = vsel %vm166, %v2450, %v2458
  %v2512 = vsel %vm166, %v2452, %v2460
  %v2513 = vsel %vm166, %v2486, %v2446
  %v2514 = vsel %vm166, %v2488, %v2448
  %v2515 = vsel %vm166, %v2490, %v2450
  %v2516 = vsel %vm166, %v2492, %v2452
  %2517 = vst [vmem:[#allocation2 + $0x480] sm:$0xff] %v2509
  %2518 = vst [vmem:[#allocation2 + $0x488] sm:$0xff] %v2505
  %2519 = vst [vmem:[#allocation2 + $0x490] sm:$0xff] %v2501
  %2520 = vst [vmem:[#allocation2 + $0x498] sm:$0xff] %v2497
  %2521 = vst [vmem:[#allocation2 + $0x4a0] sm:$0xff] %v2493
  %2522 = vst [vmem:[#allocation2 + $0x4a8] sm:$0xff] %v2513
  %2523 = vst [vmem:[#allocation2 + $0x4b0] sm:$0xff] %v2510
  %2524 = vst [vmem:[#allocation2 + $0x4b8] sm:$0xff] %v2506
  %2525 = vst [vmem:[#allocation2 + $0x4c0] sm:$0xff] %v2502
  %2526 = vst [vmem:[#allocation2 + $0x4c8] sm:$0xff] %v2498
  %2527 = vst [vmem:[#allocation2 + $0x4d0] sm:$0xff] %v2494
  %2528 = vst [vmem:[#allocation2 + $0x4d8] sm:$0xff] %v2514
  %2529 = vst [vmem:[#allocation2 + $0x4e0] sm:$0xff] %v2511
  %2530 = vst [vmem:[#allocation2 + $0x4e8] sm:$0xff] %v2507
  %2531 = vst [vmem:[#allocation2 + $0x4f0] sm:$0xff] %v2503
  %2532 = vst [vmem:[#allocation2 + $0x4f8] sm:$0xff] %v2499
  %2533 = vst [vmem:[#allocation2 + $0x500] sm:$0xff] %v2495
  %2534 = vst [vmem:[#allocation2 + $0x508] sm:$0xff] %v2515
  %2535 = vst [vmem:[#allocation2 + $0x510] sm:$0xff] %v2512
  %2536 = vst [vmem:[#allocation2 + $0x518] sm:$0xff] %v2508
  %2537 = vst [vmem:[#allocation2 + $0x520] sm:$0xff] %v2504
  %2538 = vst [vmem:[#allocation2 + $0x528] sm:$0xff] %v2500
  %2539 = vst [vmem:[#allocation2 + $0x530] sm:$0xff] %v2496
  %2540 = vst [vmem:[#allocation2 + $0x538] sm:$0xff] %v2516
  %2541 = vrot.lane.b32.xlu0 %v1917, 110
  %v2542 = vpop.permute.xlu0 %2541
  %2543 = vrot.lane.b32.xlu0 %v1923, 110
  %v2544 = vpop.permute.xlu0 %2543
  %2545 = vrot.lane.b32.xlu0 %v1929, 110
  %v2546 = vpop.permute.xlu0 %2545
  %2547 = vrot.lane.b32.xlu0 %v1935, 110
  %v2548 = vpop.permute.xlu0 %2547
  %2549 = vrot.lane.b32.xlu0 %v1918, 110
  %v2550 = vpop.permute.xlu0 %2549
  %2551 = vrot.lane.b32.xlu0 %v1924, 110
  %v2552 = vpop.permute.xlu0 %2551
  %2553 = vrot.lane.b32.xlu0 %v1930, 110
  %v2554 = vpop.permute.xlu0 %2553
  %2555 = vrot.lane.b32.xlu0 %v1936, 110
  %v2556 = vpop.permute.xlu0 %2555
  %2557 = vrot.lane.b32.xlu0 %v1919, 110
  %v2558 = vpop.permute.xlu0 %2557
  %2559 = vrot.lane.b32.xlu0 %v1925, 110
  %v2560 = vpop.permute.xlu0 %2559
  %2561 = vrot.lane.b32.xlu0 %v1931, 110
  %v2562 = vpop.permute.xlu0 %2561
  %2563 = vrot.lane.b32.xlu0 %v1937, 110
  %v2564 = vpop.permute.xlu0 %2563
  %2565 = vrot.lane.b32.xlu0 %v1920, 110
  %v2566 = vpop.permute.xlu0 %2565
  %2567 = vrot.lane.b32.xlu0 %v1926, 110
  %v2568 = vpop.permute.xlu0 %2567
  %2569 = vrot.lane.b32.xlu0 %v1932, 110
  %v2570 = vpop.permute.xlu0 %2569
  %2571 = vrot.lane.b32.xlu0 %v1938, 110
  %v2572 = vpop.permute.xlu0 %2571
  %2573 = vrot.lane.b32.xlu0 %v1921, 110
  %v2574 = vpop.permute.xlu0 %2573
  %2575 = vrot.lane.b32.xlu0 %v1927, 110
  %v2576 = vpop.permute.xlu0 %2575
  %2577 = vrot.lane.b32.xlu0 %v1933, 110
  %v2578 = vpop.permute.xlu0 %2577
  %2579 = vrot.lane.b32.xlu0 %v1939, 110
  %v2580 = vpop.permute.xlu0 %2579
  %2581 = vrot.lane.b32.xlu0 %v1922, 110
  %v2582 = vpop.permute.xlu0 %2581
  %2583 = vrot.lane.b32.xlu0 %v1928, 110
  %v2584 = vpop.permute.xlu0 %2583
  %2585 = vrot.lane.b32.xlu0 %v1934, 110
  %v2586 = vpop.permute.xlu0 %2585
  %2587 = vrot.lane.b32.xlu0 %v1940, 110
  %v2588 = vpop.permute.xlu0 %2587
  %v2589 = vsel %vm191, %v2574, %v2582
  %v2590 = vsel %vm191, %v2576, %v2584
  %v2591 = vsel %vm191, %v2578, %v2586
  %v2592 = vsel %vm191, %v2580, %v2588
  %v2593 = vsel %vm191, %v2566, %v2574
  %v2594 = vsel %vm191, %v2568, %v2576
  %v2595 = vsel %vm191, %v2570, %v2578
  %v2596 = vsel %vm191, %v2572, %v2580
  %v2597 = vsel %vm191, %v2558, %v2566
  %v2598 = vsel %vm191, %v2560, %v2568
  %v2599 = vsel %vm191, %v2562, %v2570
  %v2600 = vsel %vm191, %v2564, %v2572
  %v2601 = vsel %vm191, %v2550, %v2558
  %v2602 = vsel %vm191, %v2552, %v2560
  %v2603 = vsel %vm191, %v2554, %v2562
  %v2604 = vsel %vm191, %v2556, %v2564
  %v2605 = vsel %vm191, %v2542, %v2550
  %v2606 = vsel %vm191, %v2544, %v2552
  %v2607 = vsel %vm191, %v2546, %v2554
  %v2608 = vsel %vm191, %v2548, %v2556
  %v2609 = vsel %vm191, %v2582, %v2542
  %v2610 = vsel %vm191, %v2584, %v2544
  %v2611 = vsel %vm191, %v2586, %v2546
  %v2612 = vsel %vm191, %v2588, %v2548
  %2613 = vst [vmem:[#allocation2 + $0x540] sm:$0xff] %v2605
  %2614 = vst [vmem:[#allocation2 + $0x548] sm:$0xff] %v2601
  %2615 = vst [vmem:[#allocation2 + $0x550] sm:$0xff] %v2597
  %2616 = vst [vmem:[#allocation2 + $0x558] sm:$0xff] %v2593
  %2617 = vst [vmem:[#allocation2 + $0x560] sm:$0xff] %v2589
  %2618 = vst [vmem:[#allocation2 + $0x568] sm:$0xff] %v2609
  %2619 = vst [vmem:[#allocation2 + $0x570] sm:$0xff] %v2606
  %2620 = vst [vmem:[#allocation2 + $0x578] sm:$0xff] %v2602
  %2621 = vst [vmem:[#allocation2 + $0x580] sm:$0xff] %v2598
  %2622 = vst [vmem:[#allocation2 + $0x588] sm:$0xff] %v2594
  %2623 = vst [vmem:[#allocation2 + $0x590] sm:$0xff] %v2590
  %2624 = vst [vmem:[#allocation2 + $0x598] sm:$0xff] %v2610
  %2625 = vst [vmem:[#allocation2 + $0x5a0] sm:$0xff] %v2607
  %2626 = vst [vmem:[#allocation2 + $0x5a8] sm:$0xff] %v2603
  %2627 = vst [vmem:[#allocation2 + $0x5b0] sm:$0xff] %v2599
  %2628 = vst [vmem:[#allocation2 + $0x5b8] sm:$0xff] %v2595
  %2629 = vst [vmem:[#allocation2 + $0x5c0] sm:$0xff] %v2591
  %2630 = vst [vmem:[#allocation2 + $0x5c8] sm:$0xff] %v2611
  %2631 = vst [vmem:[#allocation2 + $0x5d0] sm:$0xff] %v2608
  %2632 = vst [vmem:[#allocation2 + $0x5d8] sm:$0xff] %v2604
  %2633 = vst [vmem:[#allocation2 + $0x5e0] sm:$0xff] %v2600
  %2634 = vst [vmem:[#allocation2 + $0x5e8] sm:$0xff] %v2596
  %2635 = vst [vmem:[#allocation2 + $0x5f0] sm:$0xff] %v2592
  %2636 = vst [vmem:[#allocation2 + $0x5f8] sm:$0xff] %v2612
  %2637 = vrot.lane.b32.xlu0 %v1917, 109
  %v2638 = vpop.permute.xlu0 %2637
  %2639 = vrot.lane.b32.xlu0 %v1923, 109
  %v2640 = vpop.permute.xlu0 %2639
  %2641 = vrot.lane.b32.xlu0 %v1929, 109
  %v2642 = vpop.permute.xlu0 %2641
  %2643 = vrot.lane.b32.xlu0 %v1935, 109
  %v2644 = vpop.permute.xlu0 %2643
  %2645 = vrot.lane.b32.xlu0 %v1918, 109
  %v2646 = vpop.permute.xlu0 %2645
  %2647 = vrot.lane.b32.xlu0 %v1924, 109
  %v2648 = vpop.permute.xlu0 %2647
  %2649 = vrot.lane.b32.xlu0 %v1930, 109
  %v2650 = vpop.permute.xlu0 %2649
  %2651 = vrot.lane.b32.xlu0 %v1936, 109
  %v2652 = vpop.permute.xlu0 %2651
  %2653 = vrot.lane.b32.xlu0 %v1919, 109
  %v2654 = vpop.permute.xlu0 %2653
  %2655 = vrot.lane.b32.xlu0 %v1925, 109
  %v2656 = vpop.permute.xlu0 %2655
  %2657 = vrot.lane.b32.xlu0 %v1931, 109
  %v2658 = vpop.permute.xlu0 %2657
  %2659 = vrot.lane.b32.xlu0 %v1937, 109
  %v2660 = vpop.permute.xlu0 %2659
  %2661 = vrot.lane.b32.xlu0 %v1920, 109
  %v2662 = vpop.permute.xlu0 %2661
  %2663 = vrot.lane.b32.xlu0 %v1926, 109
  %v2664 = vpop.permute.xlu0 %2663
  %2665 = vrot.lane.b32.xlu0 %v1932, 109
  %v2666 = vpop.permute.xlu0 %2665
  %2667 = vrot.lane.b32.xlu0 %v1938, 109
  %v2668 = vpop.permute.xlu0 %2667
  %2669 = vrot.lane.b32.xlu0 %v1921, 109
  %v2670 = vpop.permute.xlu0 %2669
  %2671 = vrot.lane.b32.xlu0 %v1927, 109
  %v2672 = vpop.permute.xlu0 %2671
  %2673 = vrot.lane.b32.xlu0 %v1933, 109
  %v2674 = vpop.permute.xlu0 %2673
  %2675 = vrot.lane.b32.xlu0 %v1939, 109
  %v2676 = vpop.permute.xlu0 %2675
  %2677 = vrot.lane.b32.xlu0 %v1922, 109
  %v2678 = vpop.permute.xlu0 %2677
  %2679 = vrot.lane.b32.xlu0 %v1928, 109
  %v2680 = vpop.permute.xlu0 %2679
  %2681 = vrot.lane.b32.xlu0 %v1934, 109
  %v2682 = vpop.permute.xlu0 %2681
  %2683 = vrot.lane.b32.xlu0 %v1940, 109
  %v2684 = vpop.permute.xlu0 %2683
  %v2685 = vsel %vm216, %v2670, %v2678
  %v2686 = vsel %vm216, %v2672, %v2680
  %v2687 = vsel %vm216, %v2674, %v2682
  %v2688 = vsel %vm216, %v2676, %v2684
  %v2689 = vsel %vm216, %v2662, %v2670
  %v2690 = vsel %vm216, %v2664, %v2672
  %v2691 = vsel %vm216, %v2666, %v2674
  %v2692 = vsel %vm216, %v2668, %v2676
  %v2693 = vsel %vm216, %v2654, %v2662
  %v2694 = vsel %vm216, %v2656, %v2664
  %v2695 = vsel %vm216, %v2658, %v2666
  %v2696 = vsel %vm216, %v2660, %v2668
  %v2697 = vsel %vm216, %v2646, %v2654
  %v2698 = vsel %vm216, %v2648, %v2656
  %v2699 = vsel %vm216, %v2650, %v2658
  %v2700 = vsel %vm216, %v2652, %v2660
  %v2701 = vsel %vm216, %v2638, %v2646
  %v2702 = vsel %vm216, %v2640, %v2648
  %v2703 = vsel %vm216, %v2642, %v2650
  %v2704 = vsel %vm216, %v2644, %v2652
  %v2705 = vsel %vm216, %v2678, %v2638
  %v2706 = vsel %vm216, %v2680, %v2640
  %v2707 = vsel %vm216, %v2682, %v2642
  %v2708 = vsel %vm216, %v2684, %v2644
  %2709 = vst [vmem:[#allocation2 + $0x600] sm:$0xff] %v2701
  %2710 = vst [vmem:[#allocation2 + $0x608] sm:$0xff] %v2697
  %2711 = vst [vmem:[#allocation2 + $0x610] sm:$0xff] %v2693
  %2712 = vst [vmem:[#allocation2 + $0x618] sm:$0xff] %v2689
  %2713 = vst [vmem:[#allocation2 + $0x620] sm:$0xff] %v2685
  %2714 = vst [vmem:[#allocation2 + $0x628] sm:$0xff] %v2705
  %2715 = vst [vmem:[#allocation2 + $0x630] sm:$0xff] %v2702
  %2716 = vst [vmem:[#allocation2 + $0x638] sm:$0xff] %v2698
  %2717 = vst [vmem:[#allocation2 + $0x640] sm:$0xff] %v2694
  %2718 = vst [vmem:[#allocation2 + $0x648] sm:$0xff] %v2690
  %2719 = vst [vmem:[#allocation2 + $0x650] sm:$0xff] %v2686
  %2720 = vst [vmem:[#allocation2 + $0x658] sm:$0xff] %v2706
  %2721 = vst [vmem:[#allocation2 + $0x660] sm:$0xff] %v2703
  %2722 = vst [vmem:[#allocation2 + $0x668] sm:$0xff] %v2699
  %2723 = vst [vmem:[#allocation2 + $0x670] sm:$0xff] %v2695
  %2724 = vst [vmem:[#allocation2 + $0x678] sm:$0xff] %v2691
  %2725 = vst [vmem:[#allocation2 + $0x680] sm:$0xff] %v2687
  %2726 = vst [vmem:[#allocation2 + $0x688] sm:$0xff] %v2707
  %2727 = vst [vmem:[#allocation2 + $0x690] sm:$0xff] %v2704
  %2728 = vst [vmem:[#allocation2 + $0x698] sm:$0xff] %v2700
  %2729 = vst [vmem:[#allocation2 + $0x6a0] sm:$0xff] %v2696
  %2730 = vst [vmem:[#allocation2 + $0x6a8] sm:$0xff] %v2692
  %2731 = vst [vmem:[#allocation2 + $0x6b0] sm:$0xff] %v2688
  %2732 = vst [vmem:[#allocation2 + $0x6b8] sm:$0xff] %v2708
  %v2733 = vld [vmem:[%s1 + $0x150] sm:$0xf]
  %v2734 = vld [vmem:[%s1 + $0x158] sm:$0xf]
  %v2735 = vld [vmem:[%s1 + $0x160] sm:$0xf]
  %v2736 = vld [vmem:[#allocation2] sm:$0xff]
  %v2737 = vld [vmem:[#allocation2 + $0x8] sm:$0xff]
  %v2738 = vld [vmem:[#allocation2 + $0x10] sm:$0xff]
  %v2739 = vld [vmem:[#allocation2 + $0x18] sm:$0xff]
  %v2740 = vld [vmem:[#allocation2 + $0x20] sm:$0xff]
  %v2741 = vld [vmem:[#allocation2 + $0x28] sm:$0xff]
  %v2742 = vld [vmem:[#allocation2 + $0x30] sm:$0xff]
  %v2743 = vld [vmem:[#allocation2 + $0x38] sm:$0xff]
  %v2744 = vld [vmem:[#allocation2 + $0x40] sm:$0xff]
  %v2745 = vld [vmem:[#allocation2 + $0x48] sm:$0xff]
  %v2746 = vld [vmem:[#allocation2 + $0x50] sm:$0xff]
  %v2747 = vld [vmem:[#allocation2 + $0x58] sm:$0xff]
  %v2748 = vld [vmem:[#allocation2 + $0x60] sm:$0xff]
  %v2749 = vld [vmem:[#allocation2 + $0x68] sm:$0xff]
  %v2750 = vld [vmem:[#allocation2 + $0x70] sm:$0xff]
  %v2751 = vld [vmem:[#allocation2 + $0x78] sm:$0xff]
  %v2752 = vld [vmem:[#allocation2 + $0x80] sm:$0xff]
  %v2753 = vld [vmem:[#allocation2 + $0x88] sm:$0xff]
  %v2754 = vld [vmem:[#allocation2 + $0x90] sm:$0xff]
  %v2755 = vld [vmem:[#allocation2 + $0x98] sm:$0xff]
  %v2756 = vld [vmem:[#allocation2 + $0xa0] sm:$0xff]
  %v2757 = vld [vmem:[#allocation2 + $0xa8] sm:$0xff]
  %v2758 = vld [vmem:[#allocation2 + $0xb0] sm:$0xff]
  %v2759 = vld [vmem:[#allocation2 + $0xb8] sm:$0xff]
  %v2760 = vld [vmem:[#allocation2 + $0xc0] sm:$0xff]
  %v2761 = vld [vmem:[#allocation2 + $0xc8] sm:$0xff]
  %v2762 = vld [vmem:[#allocation2 + $0xd0] sm:$0xff]
  %v2763 = vld [vmem:[#allocation2 + $0xd8] sm:$0xff]
  %v2764 = vld [vmem:[#allocation2 + $0xe0] sm:$0xff]
  %v2765 = vld [vmem:[#allocation2 + $0xe8] sm:$0xff]
  %v2766 = vld [vmem:[#allocation2 + $0xf0] sm:$0xff]
  %v2767 = vld [vmem:[#allocation2 + $0xf8] sm:$0xff]
  %v2768 = vld [vmem:[#allocation2 + $0x100] sm:$0xff]
  %v2769 = vld [vmem:[#allocation2 + $0x108] sm:$0xff]
  %v2770 = vld [vmem:[#allocation2 + $0x110] sm:$0xff]
  %v2771 = vld [vmem:[#allocation2 + $0x118] sm:$0xff]
  %v2772 = vld [vmem:[#allocation2 + $0x120] sm:$0xff]
  %v2773 = vld [vmem:[#allocation2 + $0x128] sm:$0xff]
  %v2774 = vld [vmem:[#allocation2 + $0x130] sm:$0xff]
  %v2775 = vld [vmem:[#allocation2 + $0x138] sm:$0xff]
  %v2776 = vld [vmem:[#allocation2 + $0x140] sm:$0xff]
  %v2777 = vld [vmem:[#allocation2 + $0x148] sm:$0xff]
  %v2778 = vld [vmem:[#allocation2 + $0x150] sm:$0xff]
  %v2779 = vld [vmem:[#allocation2 + $0x158] sm:$0xff]
  %v2780 = vld [vmem:[#allocation2 + $0x160] sm:$0xff]
  %v2781 = vld [vmem:[#allocation2 + $0x168] sm:$0xff]
  %v2782 = vld [vmem:[#allocation2 + $0x170] sm:$0xff]
  %v2783 = vld [vmem:[#allocation2 + $0x178] sm:$0xff]
  %v2784 = vld [vmem:[#allocation2 + $0x180] sm:$0xff]
  %v2785 = vld [vmem:[#allocation2 + $0x188] sm:$0xff]
  %v2786 = vld [vmem:[#allocation2 + $0x190] sm:$0xff]
  %v2787 = vld [vmem:[#allocation2 + $0x198] sm:$0xff]
  %v2788 = vld [vmem:[#allocation2 + $0x1a0] sm:$0xff]
  %v2789 = vld [vmem:[#allocation2 + $0x1a8] sm:$0xff]
  %v2790 = vld [vmem:[#allocation2 + $0x1b0] sm:$0xff]
  %v2791 = vld [vmem:[#allocation2 + $0x1b8] sm:$0xff]
  %v2792 = vld [vmem:[#allocation2 + $0x1c0] sm:$0xff]
  %v2793 = vld [vmem:[#allocation2 + $0x1c8] sm:$0xff]
  %v2794 = vld [vmem:[#allocation2 + $0x1d0] sm:$0xff]
  %v2795 = vld [vmem:[#allocation2 + $0x1d8] sm:$0xff]
  %v2796 = vld [vmem:[#allocation2 + $0x1e0] sm:$0xff]
  %v2797 = vld [vmem:[#allocation2 + $0x1e8] sm:$0xff]
  %v2798 = vld [vmem:[#allocation2 + $0x1f0] sm:$0xff]
  %v2799 = vld [vmem:[#allocation2 + $0x1f8] sm:$0xff]
  %v2800 = vld [vmem:[#allocation2 + $0x200] sm:$0xff]
  %v2801 = vld [vmem:[#allocation2 + $0x208] sm:$0xff]
  %v2802 = vld [vmem:[#allocation2 + $0x210] sm:$0xff]
  %v2803 = vld [vmem:[#allocation2 + $0x218] sm:$0xff]
  %v2804 = vld [vmem:[#allocation2 + $0x220] sm:$0xff]
  %v2805 = vld [vmem:[#allocation2 + $0x228] sm:$0xff]
  %v2806 = vld [vmem:[#allocation2 + $0x230] sm:$0xff]
  %v2807 = vld [vmem:[#allocation2 + $0x238] sm:$0xff]
  %v2808 = vld [vmem:[#allocation2 + $0x240] sm:$0xff]
  %v2809 = vld [vmem:[#allocation2 + $0x248] sm:$0xff]
  %v2810 = vld [vmem:[#allocation2 + $0x250] sm:$0xff]
  %v2811 = vld [vmem:[#allocation2 + $0x258] sm:$0xff]
  %v2812 = vld [vmem:[#allocation2 + $0x260] sm:$0xff]
  %v2813 = vld [vmem:[#allocation2 + $0x268] sm:$0xff]
  %v2814 = vld [vmem:[#allocation2 + $0x270] sm:$0xff]
  %v2815 = vld [vmem:[#allocation2 + $0x278] sm:$0xff]
  %v2816 = vld [vmem:[#allocation2 + $0x280] sm:$0xff]
  %v2817 = vld [vmem:[#allocation2 + $0x288] sm:$0xff]
  %v2818 = vld [vmem:[#allocation2 + $0x290] sm:$0xff]
  %v2819 = vld [vmem:[#allocation2 + $0x298] sm:$0xff]
  %v2820 = vld [vmem:[#allocation2 + $0x2a0] sm:$0xff]
  %v2821 = vld [vmem:[#allocation2 + $0x2a8] sm:$0xff]
  %v2822 = vld [vmem:[#allocation2 + $0x2b0] sm:$0xff]
  %v2823 = vld [vmem:[#allocation2 + $0x2b8] sm:$0xff]
  %v2824 = vld [vmem:[#allocation2 + $0x2c0] sm:$0xff]
  %v2825 = vld [vmem:[#allocation2 + $0x2c8] sm:$0xff]
  %v2826 = vld [vmem:[#allocation2 + $0x2d0] sm:$0xff]
  %v2827 = vld [vmem:[#allocation2 + $0x2d8] sm:$0xff]
  %v2828 = vld [vmem:[#allocation2 + $0x2e0] sm:$0xff]
  %v2829 = vld [vmem:[#allocation2 + $0x2e8] sm:$0xff]
  %v2830 = vld [vmem:[#allocation2 + $0x2f0] sm:$0xff]
  %v2831 = vld [vmem:[#allocation2 + $0x2f8] sm:$0xff]
  %v2832 = vld [vmem:[#allocation2 + $0x300] sm:$0xff]
  %v2833 = vld [vmem:[#allocation2 + $0x308] sm:$0xff]
  %v2834 = vld [vmem:[#allocation2 + $0x310] sm:$0xff]
  %v2835 = vld [vmem:[#allocation2 + $0x318] sm:$0xff]
  %v2836 = vld [vmem:[#allocation2 + $0x320] sm:$0xff]
  %v2837 = vld [vmem:[#allocation2 + $0x328] sm:$0xff]
  %v2838 = vld [vmem:[#allocation2 + $0x330] sm:$0xff]
  %v2839 = vld [vmem:[#allocation2 + $0x338] sm:$0xff]
  %v2840 = vld [vmem:[#allocation2 + $0x340] sm:$0xff]
  %v2841 = vld [vmem:[#allocation2 + $0x348] sm:$0xff]
  %v2842 = vld [vmem:[#allocation2 + $0x350] sm:$0xff]
  %v2843 = vld [vmem:[#allocation2 + $0x358] sm:$0xff]
  %v2844 = vld [vmem:[#allocation2 + $0x360] sm:$0xff]
  %v2845 = vld [vmem:[#allocation2 + $0x368] sm:$0xff]
  %v2846 = vld [vmem:[#allocation2 + $0x370] sm:$0xff]
  %v2847 = vld [vmem:[#allocation2 + $0x378] sm:$0xff]
  %v2848 = vld [vmem:[#allocation2 + $0x380] sm:$0xff]
  %v2849 = vld [vmem:[#allocation2 + $0x388] sm:$0xff]
  %v2850 = vld [vmem:[#allocation2 + $0x390] sm:$0xff]
  %v2851 = vld [vmem:[#allocation2 + $0x398] sm:$0xff]
  %v2852 = vld [vmem:[#allocation2 + $0x3a0] sm:$0xff]
  %v2853 = vld [vmem:[#allocation2 + $0x3a8] sm:$0xff]
  %v2854 = vld [vmem:[#allocation2 + $0x3b0] sm:$0xff]
  %v2855 = vld [vmem:[#allocation2 + $0x3b8] sm:$0xff]
  %v2856 = vld [vmem:[#allocation2 + $0x3c0] sm:$0xff]
  %v2857 = vld [vmem:[#allocation2 + $0x3c8] sm:$0xff]
  %v2858 = vld [vmem:[#allocation2 + $0x3d0] sm:$0xff]
  %v2859 = vld [vmem:[#allocation2 + $0x3d8] sm:$0xff]
  %v2860 = vld [vmem:[#allocation2 + $0x3e0] sm:$0xff]
  %v2861 = vld [vmem:[#allocation2 + $0x3e8] sm:$0xff]
  %v2862 = vld [vmem:[#allocation2 + $0x3f0] sm:$0xff]
  %v2863 = vld [vmem:[#allocation2 + $0x3f8] sm:$0xff]
  %v2864 = vld [vmem:[#allocation2 + $0x400] sm:$0xff]
  %v2865 = vld [vmem:[#allocation2 + $0x408] sm:$0xff]
  %v2866 = vld [vmem:[#allocation2 + $0x410] sm:$0xff]
  %v2867 = vld [vmem:[#allocation2 + $0x418] sm:$0xff]
  %v2868 = vld [vmem:[#allocation2 + $0x420] sm:$0xff]
  %v2869 = vld [vmem:[#allocation2 + $0x428] sm:$0xff]
  %v2870 = vld [vmem:[#allocation2 + $0x430] sm:$0xff]
  %v2871 = vld [vmem:[#allocation2 + $0x438] sm:$0xff]
  %v2872 = vld [vmem:[#allocation2 + $0x440] sm:$0xff]
  %v2873 = vld [vmem:[#allocation2 + $0x448] sm:$0xff]
  %v2874 = vld [vmem:[#allocation2 + $0x450] sm:$0xff]
  %v2875 = vld [vmem:[#allocation2 + $0x458] sm:$0xff]
  %v2876 = vld [vmem:[#allocation2 + $0x460] sm:$0xff]
  %v2877 = vld [vmem:[#allocation2 + $0x468] sm:$0xff]
  %v2878 = vld [vmem:[#allocation2 + $0x470] sm:$0xff]
  %v2879 = vld [vmem:[#allocation2 + $0x478] sm:$0xff]
  %v2880 = vld [vmem:[#allocation2 + $0x480] sm:$0xff]
  %v2881 = vld [vmem:[#allocation2 + $0x488] sm:$0xff]
  %v2882 = vld [vmem:[#allocation2 + $0x490] sm:$0xff]
  %v2883 = vld [vmem:[#allocation2 + $0x498] sm:$0xff]
  %v2884 = vld [vmem:[#allocation2 + $0x4a0] sm:$0xff]
  %v2885 = vld [vmem:[#allocation2 + $0x4a8] sm:$0xff]
  %v2886 = vld [vmem:[#allocation2 + $0x4b0] sm:$0xff]
  %v2887 = vld [vmem:[#allocation2 + $0x4b8] sm:$0xff]
  %v2888 = vld [vmem:[#allocation2 + $0x4c0] sm:$0xff]
  %v2889 = vld [vmem:[#allocation2 + $0x4c8] sm:$0xff]
  %v2890 = vld [vmem:[#allocation2 + $0x4d0] sm:$0xff]
  %v2891 = vld [vmem:[#allocation2 + $0x4d8] sm:$0xff]
  %v2892 = vld [vmem:[#allocation2 + $0x4e0] sm:$0xff]
  %v2893 = vld [vmem:[#allocation2 + $0x4e8] sm:$0xff]
  %v2894 = vld [vmem:[#allocation2 + $0x4f0] sm:$0xff]
  %v2895 = vld [vmem:[#allocation2 + $0x4f8] sm:$0xff]
  %v2896 = vld [vmem:[#allocation2 + $0x500] sm:$0xff]
  %v2897 = vld [vmem:[#allocation2 + $0x508] sm:$0xff]
  %v2898 = vld [vmem:[#allocation2 + $0x510] sm:$0xff]
  %v2899 = vld [vmem:[#allocation2 + $0x518] sm:$0xff]
  %v2900 = vld [vmem:[#allocation2 + $0x520] sm:$0xff]
  %v2901 = vld [vmem:[#allocation2 + $0x528] sm:$0xff]
  %v2902 = vld [vmem:[#allocation2 + $0x530] sm:$0xff]
  %v2903 = vld [vmem:[#allocation2 + $0x538] sm:$0xff]
  %v2904 = vld [vmem:[#allocation2 + $0x540] sm:$0xff]
  %v2905 = vld [vmem:[#allocation2 + $0x548] sm:$0xff]
  %v2906 = vld [vmem:[#allocation2 + $0x550] sm:$0xff]
  %v2907 = vld [vmem:[#allocation2 + $0x558] sm:$0xff]
  %v2908 = vld [vmem:[#allocation2 + $0x560] sm:$0xff]
  %v2909 = vld [vmem:[#allocation2 + $0x568] sm:$0xff]
  %v2910 = vld [vmem:[#allocation2 + $0x570] sm:$0xff]
  %v2911 = vld [vmem:[#allocation2 + $0x578] sm:$0xff]
  %v2912 = vld [vmem:[#allocation2 + $0x580] sm:$0xff]
  %v2913 = vld [vmem:[#allocation2 + $0x588] sm:$0xff]
  %v2914 = vld [vmem:[#allocation2 + $0x590] sm:$0xff]
  %v2915 = vld [vmem:[#allocation2 + $0x598] sm:$0xff]
  %v2916 = vld [vmem:[#allocation2 + $0x5a0] sm:$0xff]
  %v2917 = vld [vmem:[#allocation2 + $0x5a8] sm:$0xff]
  %v2918 = vld [vmem:[#allocation2 + $0x5b0] sm:$0xff]
  %v2919 = vld [vmem:[#allocation2 + $0x5b8] sm:$0xff]
  %v2920 = vld [vmem:[#allocation2 + $0x5c0] sm:$0xff]
  %v2921 = vld [vmem:[#allocation2 + $0x5c8] sm:$0xff]
  %v2922 = vld [vmem:[#allocation2 + $0x5d0] sm:$0xff]
  %v2923 = vld [vmem:[#allocation2 + $0x5d8] sm:$0xff]
  %v2924 = vld [vmem:[#allocation2 + $0x5e0] sm:$0xff]
  %v2925 = vld [vmem:[#allocation2 + $0x5e8] sm:$0xff]
  %v2926 = vld [vmem:[#allocation2 + $0x5f0] sm:$0xff]
  %v2927 = vld [vmem:[#allocation2 + $0x5f8] sm:$0xff]
  %v2928 = vld [vmem:[#allocation2 + $0x600] sm:$0xff]
  %v2929 = vld [vmem:[#allocation2 + $0x608] sm:$0xff]
  %v2930 = vld [vmem:[#allocation2 + $0x610] sm:$0xff]
  %v2931 = vld [vmem:[#allocation2 + $0x618] sm:$0xff]
  %v2932 = vld [vmem:[#allocation2 + $0x620] sm:$0xff]
  %v2933 = vld [vmem:[#allocation2 + $0x628] sm:$0xff]
  %v2934 = vld [vmem:[#allocation2 + $0x630] sm:$0xff]
  %v2935 = vld [vmem:[#allocation2 + $0x638] sm:$0xff]
  %v2936 = vld [vmem:[#allocation2 + $0x640] sm:$0xff]
  %v2937 = vld [vmem:[#allocation2 + $0x648] sm:$0xff]
  %v2938 = vld [vmem:[#allocation2 + $0x650] sm:$0xff]
  %v2939 = vld [vmem:[#allocation2 + $0x658] sm:$0xff]
  %v2940 = vld [vmem:[#allocation2 + $0x660] sm:$0xff]
  %v2941 = vld [vmem:[#allocation2 + $0x668] sm:$0xff]
  %v2942 = vld [vmem:[#allocation2 + $0x670] sm:$0xff]
  %v2943 = vld [vmem:[#allocation2 + $0x678] sm:$0xff]
  %v2944 = vld [vmem:[#allocation2 + $0x680] sm:$0xff]
  %v2945 = vld [vmem:[#allocation2 + $0x688] sm:$0xff]
  %v2946 = vld [vmem:[#allocation2 + $0x690] sm:$0xff]
  %v2947 = vld [vmem:[#allocation2 + $0x698] sm:$0xff]
  %v2948 = vld [vmem:[#allocation2 + $0x6a0] sm:$0xff]
  %v2949 = vld [vmem:[#allocation2 + $0x6a8] sm:$0xff]
  %v2950 = vld [vmem:[#allocation2 + $0x6b0] sm:$0xff]
  %v2951 = vld [vmem:[#allocation2 + $0x6b8] sm:$0xff]
  %2953 = vset.pattern.permute.xlu0 32
  %2954 = vperm.xlu0 %2953, %v2735
  %v2955 = vpop.permute.xlu0 %2954
  %vm2957 = vcmask 261120
  %v2958 = vsel %vm2957, %v2735, 0
  %2960 = vmatprep.subr.mxu0 %v2827
  %2961 = vmatpush1.msra.mxu0 %v2826
  %2962 = vmatprep.subr.mxu0 %v2821
  %2963 = vmatpush1.msra.mxu0 %v2820
  %2964 = vmatprep.subr.mxu0 %v2815
  %2965 = vmatpush1.msra.mxu0 %v2814
  %2966 = vmatprep.subr.mxu0 %v2809
  %2967 = vmatpush1.msra.mxu0 %v2808
  %2968 = vmatprep.subr.mxu0 %v2803
  %2969 = vmatpush1.msra.mxu0 %v2802
  %2970 = vmatprep.subr.mxu0 %v2797
  %2971 = vmatpush1.msra.mxu0 %v2796
  %2972 = vmatprep.subr.mxu0 %v2791
  %2973 = vmatpush1.msra.mxu0 %v2790
  %2974 = vmatprep.subr.mxu0 %v2785
  %2975 = vmatpush1.msra.mxu0 %v2784
  %2976 = vmatprep.subr.mxu0 %v2779
  %2977 = vmatpush1.msra.mxu0 %v2778
  %2978 = vmatprep.subr.mxu0 %v2773
  %2979 = vmatpush1.msra.mxu0 %v2772
  %2980 = vmatprep.subr.mxu0 %v2767
  %2981 = vmatpush1.msra.mxu0 %v2766
  %2982 = vmatprep.subr.mxu0 %v2761
  %2983 = vmatpush1.msra.mxu0 %v2760
  %2984 = vmatprep.subr.mxu0 %v2755
  %2985 = vmatpush1.msra.mxu0 %v2754
  %2986 = vmatprep.subr.mxu0 %v2749
  %2987 = vmatpush1.msra.mxu0 %v2748
  %2988 = vmatprep.subr.mxu0 %v2743
  %2989 = vmatpush1.msra.mxu0 %v2742
  %2990 = vmatprep.subr.mxu0 %v2737
  %2991 = vmatpush1.msra.mxu0 %v2736
  %2992 = vmatprep.subr.mxu0 %v2923
  %2993 = vmatpush2.msra.mxu0 %v2922
  %2994 = vmatprep.subr.mxu0 %v2917
  %2995 = vmatpush2.msra.mxu0 %v2916
  %2996 = vmatprep.subr.mxu0 %v2911
  %2997 = vmatpush2.msra.mxu0 %v2910
  %2998 = vmatprep.subr.mxu0 %v2905
  %2999 = vmatpush2.msra.mxu0 %v2904
  %3000 = vmatprep.subr.mxu0 %v2899
  %3001 = vmatpush2.msra.mxu0 %v2898
  %3002 = vmatprep.subr.mxu0 %v2893
  %3003 = vmatpush2.msra.mxu0 %v2892
  %3004 = vmatprep.subr.mxu0 %v2887
  %3005 = vmatpush2.msra.mxu0 %v2886
  %3006 = vmatprep.subr.mxu0 %v2881
  %3007 = vmatpush2.msra.mxu0 %v2880
  %3008 = vmatprep.subr.mxu0 %v2875
  %3009 = vmatpush2.msra.mxu0 %v2874
  %3010 = vmatprep.subr.mxu0 %v2869
  %3011 = vmatpush2.msra.mxu0 %v2868
  %3012 = vmatprep.subr.mxu0 %v2863
  %3013 = vmatpush2.msra.mxu0 %v2862
  %3014 = vmatprep.subr.mxu0 %v2857
  %3015 = vmatpush2.msra.mxu0 %v2856
  %3016 = vmatprep.subr.mxu0 %v2851
  %3017 = vmatpush2.msra.mxu0 %v2850
  %3018 = vmatprep.subr.mxu0 %v2845
  %3019 = vmatpush2.msra.mxu0 %v2844
  %3020 = vmatprep.subr.mxu0 %v2839
  %3021 = vmatpush2.msra.mxu0 %v2838
  %3022 = vmatprep.subr.mxu0 %v2833
  %3023 = vmatpush2.msra.mxu0 %v2832
  %3024 = vmatprep.mubr.f32.mxu0 %v2734
  %3025 = vmatmul.mubr.f32.gmra.mxu0 %v2733
  %v3026 = vpop.f32.mrf.mxu0
  %v3027 = vadd.f32 %v2955, %v3026
  %v3028 = vpop.f32.mrf.mxu0
  %v3029 = vadd.f32 %v2955, %v3028
  %3030 = vdwg.mxu0
  %3031 = vmatprep.subr.mxu0 0.0
  %3032 = vmatpush1.msra.mxu0 0.0
  %3033 = vmatprep.subr.mxu0 0.0
  %3034 = vmatpush1.msra.mxu0 0.0
  %3035 = vmatprep.subr.mxu0 0.0
  %3036 = vmatpush1.msra.mxu0 0.0
  %3037 = vmatprep.subr.mxu0 0.0
  %3038 = vmatpush1.msra.mxu0 0.0
  %3039 = vmatprep.subr.mxu0 0.0
  %3040 = vmatpush1.msra.mxu0 0.0
  %3041 = vmatprep.subr.mxu0 0.0
  %3042 = vmatpush1.msra.mxu0 0.0
  %3043 = vmatprep.subr.mxu0 0.0
  %3044 = vmatpush1.msra.mxu0 0.0
  %3045 = vmatprep.subr.mxu0 0.0
  %3046 = vmatpush1.msra.mxu0 0.0
  %3047 = vmatprep.subr.mxu0 0.0
  %3048 = vmatpush1.msra.mxu0 0.0
  %3049 = vmatprep.subr.mxu0 0.0
  %3050 = vmatpush1.msra.mxu0 0.0
  %3051 = vmatprep.subr.mxu0 0.0
  %3052 = vmatpush1.msra.mxu0 0.0
  %3053 = vmatprep.subr.mxu0 0.0
  %3054 = vmatpush1.msra.mxu0 0.0
  %3055 = vmatprep.subr.mxu0 %v2947
  %3056 = vmatpush1.msra.mxu0 %v2946
  %3057 = vmatprep.subr.mxu0 %v2941
  %3058 = vmatpush1.msra.mxu0 %v2940
  %3059 = vmatprep.subr.mxu0 %v2935
  %3060 = vmatpush1.msra.mxu0 %v2934
  %3061 = vmatprep.subr.mxu0 %v2929
  %3062 = vmatpush1.msra.mxu0 %v2928
  %3063 = vmatprep.subr.mxu0 0.0
  %3064 = vmatpush2.msra.mxu0 0.0
  %3065 = vmatprep.subr.mxu0 0.0
  %3066 = vmatpush2.msra.mxu0 0.0
  %3067 = vmatprep.subr.mxu0 0.0
  %3068 = vmatpush2.msra.mxu0 0.0
  %3069 = vmatprep.subr.mxu0 0.0
  %3070 = vmatpush2.msra.mxu0 0.0
  %3071 = vmatprep.subr.mxu0 0.0
  %3072 = vmatpush2.msra.mxu0 0.0
  %3073 = vmatprep.subr.mxu0 0.0
  %3074 = vmatpush2.msra.mxu0 0.0
  %3075 = vmatprep.subr.mxu0 0.0
  %3076 = vmatpush2.msra.mxu0 0.0
  %3077 = vmatprep.subr.mxu0 0.0
  %3078 = vmatpush2.msra.mxu0 0.0
  %3079 = vmatprep.subr.mxu0 0.0
  %3080 = vmatpush2.msra.mxu0 0.0
  %3081 = vmatprep.subr.mxu0 0.0
  %3082 = vmatpush2.msra.mxu0 0.0
  %3083 = vmatprep.subr.mxu0 0.0
  %3084 = vmatpush2.msra.mxu0 0.0
  %3085 = vmatprep.subr.mxu0 0.0
  %3086 = vmatpush2.msra.mxu0 0.0
  %3087 = vmatprep.subr.mxu0 0.0
  %3088 = vmatpush2.msra.mxu0 0.0
  %3089 = vmatprep.subr.mxu0 0.0
  %3090 = vmatpush2.msra.mxu0 0.0
  %3091 = vmatprep.subr.mxu0 0.0
  %3092 = vmatpush2.msra.mxu0 0.0
  %3093 = vmatprep.subr.mxu0 0.0
  %3094 = vmatpush2.msra.mxu0 0.0
  %3095 = vmatprep.mubr.f32.mxu0 0.0
  %3096 = vmatmul.mubr.f32.gmra.mxu0 %v2958
  %v3097 = vpop.f32.mrf.mxu0
  %v3098 = vadd.f32 %v3027, %v3097
  %v3099 = vpop.f32.mrf.mxu0
  %v3100 = vadd.f32 %v3029, %v3099
  %3101 = vdwg.mxu0
  %3102 = vmatprep.subr.mxu0 %v2829
  %3103 = vmatpush1.msra.mxu0 %v2828
  %3104 = vmatprep.subr.mxu0 %v2823
  %3105 = vmatpush1.msra.mxu0 %v2822
  %3106 = vmatprep.subr.mxu0 %v2817
  %3107 = vmatpush1.msra.mxu0 %v2816
  %3108 = vmatprep.subr.mxu0 %v2811
  %3109 = vmatpush1.msra.mxu0 %v2810
  %3110 = vmatprep.subr.mxu0 %v2805
  %3111 = vmatpush1.msra.mxu0 %v2804
  %3112 = vmatprep.subr.mxu0 %v2799
  %3113 = vmatpush1.msra.mxu0 %v2798
  %3114 = vmatprep.subr.mxu0 %v2793
  %3115 = vmatpush1.msra.mxu0 %v2792
  %3116 = vmatprep.subr.mxu0 %v2787
  %3117 = vmatpush1.msra.mxu0 %v2786
  %3118 = vmatprep.subr.mxu0 %v2781
  %3119 = vmatpush1.msra.mxu0 %v2780
  %3120 = vmatprep.subr.mxu0 %v2775
  %3121 = vmatpush1.msra.mxu0 %v2774
  %3122 = vmatprep.subr.mxu0 %v2769
  %3123 = vmatpush1.msra.mxu0 %v2768
  %3124 = vmatprep.subr.mxu0 %v2763
  %3125 = vmatpush1.msra.mxu0 %v2762
  %3126 = vmatprep.subr.mxu0 %v2757
  %3127 = vmatpush1.msra.mxu0 %v2756
  %3128 = vmatprep.subr.mxu0 %v2751
  %3129 = vmatpush1.msra.mxu0 %v2750
  %3130 = vmatprep.subr.mxu0 %v2745
  %3131 = vmatpush1.msra.mxu0 %v2744
  %3132 = vmatprep.subr.mxu0 %v2739
  %3133 = vmatpush1.msra.mxu0 %v2738
  %3134 = vmatprep.subr.mxu0 %v2925
  %3135 = vmatpush2.msra.mxu0 %v2924
  %3136 = vmatprep.subr.mxu0 %v2919
  %3137 = vmatpush2.msra.mxu0 %v2918
  %3138 = vmatprep.subr.mxu0 %v2913
  %3139 = vmatpush2.msra.mxu0 %v2912
  %3140 = vmatprep.subr.mxu0 %v2907
  %3141 = vmatpush2.msra.mxu0 %v2906
  %3142 = vmatprep.subr.mxu0 %v2901
  %3143 = vmatpush2.msra.mxu0 %v2900
  %3144 = vmatprep.subr.mxu0 %v2895
  %3145 = vmatpush2.msra.mxu0 %v2894
  %3146 = vmatprep.subr.mxu0 %v2889
  %3147 = vmatpush2.msra.mxu0 %v2888
  %3148 = vmatprep.subr.mxu0 %v2883
  %3149 = vmatpush2.msra.mxu0 %v2882
  %3150 = vmatprep.subr.mxu0 %v2877
  %3151 = vmatpush2.msra.mxu0 %v2876
  %3152 = vmatprep.subr.mxu0 %v2871
  %3153 = vmatpush2.msra.mxu0 %v2870
  %3154 = vmatprep.subr.mxu0 %v2865
  %3155 = vmatpush2.msra.mxu0 %v2864
  %3156 = vmatprep.subr.mxu0 %v2859
  %3157 = vmatpush2.msra.mxu0 %v2858
  %3158 = vmatprep.subr.mxu0 %v2853
  %3159 = vmatpush2.msra.mxu0 %v2852
  %3160 = vmatprep.subr.mxu0 %v2847
  %3161 = vmatpush2.msra.mxu0 %v2846
  %3162 = vmatprep.subr.mxu0 %v2841
  %3163 = vmatpush2.msra.mxu0 %v2840
  %3164 = vmatprep.subr.mxu0 %v2835
  %3165 = vmatpush2.msra.mxu0 %v2834
  %3166 = vmatprep.mubr.f32.mxu0 %v2734
  %3167 = vmatmul.mubr.f32.gmra.mxu0 %v2733
  %v3168 = vpop.f32.mrf.mxu0
  %v3169 = vadd.f32 %v2955, %v3168
  %v3170 = vpop.f32.mrf.mxu0
  %v3171 = vadd.f32 %v2955, %v3170
  %3172 = vdwg.mxu0
  %3173 = vmatprep.subr.mxu0 0.0
  %3174 = vmatpush1.msra.mxu0 0.0
  %3175 = vmatprep.subr.mxu0 0.0
  %3176 = vmatpush1.msra.mxu0 0.0
  %3177 = vmatprep.subr.mxu0 0.0
  %3178 = vmatpush1.msra.mxu0 0.0
  %3179 = vmatprep.subr.mxu0 0.0
  %3180 = vmatpush1.msra.mxu0 0.0
  %3181 = vmatprep.subr.mxu0 0.0
  %3182 = vmatpush1.msra.mxu0 0.0
  %3183 = vmatprep.subr.mxu0 0.0
  %3184 = vmatpush1.msra.mxu0 0.0
  %3185 = vmatprep.subr.mxu0 0.0
  %3186 = vmatpush1.msra.mxu0 0.0
  %3187 = vmatprep.subr.mxu0 0.0
  %3188 = vmatpush1.msra.mxu0 0.0
  %3189 = vmatprep.subr.mxu0 0.0
  %3190 = vmatpush1.msra.mxu0 0.0
  %3191 = vmatprep.subr.mxu0 0.0
  %3192 = vmatpush1.msra.mxu0 0.0
  %3193 = vmatprep.subr.mxu0 0.0
  %3194 = vmatpush1.msra.mxu0 0.0
  %3195 = vmatprep.subr.mxu0 0.0
  %3196 = vmatpush1.msra.mxu0 0.0
  %3197 = vmatprep.subr.mxu0 %v2949
  %3198 = vmatpush1.msra.mxu0 %v2948
  %3199 = vmatprep.subr.mxu0 %v2943
  %3200 = vmatpush1.msra.mxu0 %v2942
  %3201 = vmatprep.subr.mxu0 %v2937
  %3202 = vmatpush1.msra.mxu0 %v2936
  %3203 = vmatprep.subr.mxu0 %v2931
  %3204 = vmatpush1.msra.mxu0 %v2930
  %3205 = vmatprep.subr.mxu0 0.0
  %3206 = vmatpush2.msra.mxu0 0.0
  %3207 = vmatprep.subr.mxu0 0.0
  %3208 = vmatpush2.msra.mxu0 0.0
  %3209 = vmatprep.subr.mxu0 0.0
  %3210 = vmatpush2.msra.mxu0 0.0
  %3211 = vmatprep.subr.mxu0 0.0
  %3212 = vmatpush2.msra.mxu0 0.0
  %3213 = vmatprep.subr.mxu0 0.0
  %3214 = vmatpush2.msra.mxu0 0.0
  %3215 = vmatprep.subr.mxu0 0.0
  %3216 = vmatpush2.msra.mxu0 0.0
  %3217 = vmatprep.subr.mxu0 0.0
  %3218 = vmatpush2.msra.mxu0 0.0
  %3219 = vmatprep.subr.mxu0 0.0
  %3220 = vmatpush2.msra.mxu0 0.0
  %3221 = vmatprep.subr.mxu0 0.0
  %3222 = vmatpush2.msra.mxu0 0.0
  %3223 = vmatprep.subr.mxu0 0.0
  %3224 = vmatpush2.msra.mxu0 0.0
  %3225 = vmatprep.subr.mxu0 0.0
  %3226 = vmatpush2.msra.mxu0 0.0
  %3227 = vmatprep.subr.mxu0 0.0
  %3228 = vmatpush2.msra.mxu0 0.0
  %3229 = vmatprep.subr.mxu0 0.0
  %3230 = vmatpush2.msra.mxu0 0.0
  %3231 = vmatprep.subr.mxu0 0.0
  %3232 = vmatpush2.msra.mxu0 0.0
  %3233 = vmatprep.subr.mxu0 0.0
  %3234 = vmatpush2.msra.mxu0 0.0
  %3235 = vmatprep.subr.mxu0 0.0
  %3236 = vmatpush2.msra.mxu0 0.0
  %3237 = vmatprep.mubr.f32.mxu0 0.0
  %3238 = vmatmul.mubr.f32.gmra.mxu0 %v2958
  %v3239 = vpop.f32.mrf.mxu0
  %v3240 = vadd.f32 %v3169, %v3239
  %v3241 = vpop.f32.mrf.mxu0
  %v3242 = vadd.f32 %v3171, %v3241
  %3243 = vdwg.mxu0
  %3244 = vmatprep.subr.mxu0 %v2831
  %3245 = vmatpush1.msra.mxu0 %v2830
  %3246 = vmatprep.subr.mxu0 %v2825
  %3247 = vmatpush1.msra.mxu0 %v2824
  %3248 = vmatprep.subr.mxu0 %v2819
  %3249 = vmatpush1.msra.mxu0 %v2818
  %3250 = vmatprep.subr.mxu0 %v2813
  %3251 = vmatpush1.msra.mxu0 %v2812
  %3252 = vmatprep.subr.mxu0 %v2807
  %3253 = vmatpush1.msra.mxu0 %v2806
  %3254 = vmatprep.subr.mxu0 %v2801
  %3255 = vmatpush1.msra.mxu0 %v2800
  %3256 = vmatprep.subr.mxu0 %v2795
  %3257 = vmatpush1.msra.mxu0 %v2794
  %3258 = vmatprep.subr.mxu0 %v2789
  %3259 = vmatpush1.msra.mxu0 %v2788
  %3260 = vmatprep.subr.mxu0 %v2783
  %3261 = vmatpush1.msra.mxu0 %v2782
  %3262 = vmatprep.subr.mxu0 %v2777
  %3263 = vmatpush1.msra.mxu0 %v2776
  %3264 = vmatprep.subr.mxu0 %v2771
  %3265 = vmatpush1.msra.mxu0 %v2770
  %3266 = vmatprep.subr.mxu0 %v2765
  %3267 = vmatpush1.msra.mxu0 %v2764
  %3268 = vmatprep.subr.mxu0 %v2759
  %3269 = vmatpush1.msra.mxu0 %v2758
  %3270 = vmatprep.subr.mxu0 %v2753
  %3271 = vmatpush1.msra.mxu0 %v2752
  %3272 = vmatprep.subr.mxu0 %v2747
  %3273 = vmatpush1.msra.mxu0 %v2746
  %3274 = vmatprep.subr.mxu0 %v2741
  %3275 = vmatpush1.msra.mxu0 %v2740
  %3276 = vmatprep.subr.mxu0 %v2927
  %3277 = vmatpush2.msra.mxu0 %v2926
  %3278 = vmatprep.subr.mxu0 %v2921
  %3279 = vmatpush2.msra.mxu0 %v2920
  %3280 = vmatprep.subr.mxu0 %v2915
  %3281 = vmatpush2.msra.mxu0 %v2914
  %3282 = vmatprep.subr.mxu0 %v2909
  %3283 = vmatpush2.msra.mxu0 %v2908
  %3284 = vmatprep.subr.mxu0 %v2903
  %3285 = vmatpush2.msra.mxu0 %v2902
  %3286 = vmatprep.subr.mxu0 %v2897
  %3287 = vmatpush2.msra.mxu0 %v2896
  %3288 = vmatprep.subr.mxu0 %v2891
  %3289 = vmatpush2.msra.mxu0 %v2890
  %3290 = vmatprep.subr.mxu0 %v2885
  %3291 = vmatpush2.msra.mxu0 %v2884
  %3292 = vmatprep.subr.mxu0 %v2879
  %3293 = vmatpush2.msra.mxu0 %v2878
  %3294 = vmatprep.subr.mxu0 %v2873
  %3295 = vmatpush2.msra.mxu0 %v2872
  %3296 = vmatprep.subr.mxu0 %v2867
  %3297 = vmatpush2.msra.mxu0 %v2866
  %3298 = vmatprep.subr.mxu0 %v2861
  %3299 = vmatpush2.msra.mxu0 %v2860
  %3300 = vmatprep.subr.mxu0 %v2855
  %3301 = vmatpush2.msra.mxu0 %v2854
  %3302 = vmatprep.subr.mxu0 %v2849
  %3303 = vmatpush2.msra.mxu0 %v2848
  %3304 = vmatprep.subr.mxu0 %v2843
  %3305 = vmatpush2.msra.mxu0 %v2842
  %3306 = vmatprep.subr.mxu0 %v2837
  %3307 = vmatpush2.msra.mxu0 %v2836
  %3308 = vmatprep.mubr.f32.mxu0 %v2734
  %3309 = vmatmul.mubr.f32.gmra.mxu0 %v2733
  %v3310 = vpop.f32.mrf.mxu0
  %v3311 = vadd.f32 %v2955, %v3310
  %v3312 = vpop.f32.mrf.mxu0
  %v3313 = vadd.f32 %v2955, %v3312
  %3314 = vdwg.mxu0
  %3315 = vmatprep.subr.mxu0 0.0
  %3316 = vmatpush1.msra.mxu0 0.0
  %3317 = vmatprep.subr.mxu0 0.0
  %3318 = vmatpush1.msra.mxu0 0.0
  %3319 = vmatprep.subr.mxu0 0.0
  %3320 = vmatpush1.msra.mxu0 0.0
  %3321 = vmatprep.subr.mxu0 0.0
  %3322 = vmatpush1.msra.mxu0 0.0
  %3323 = vmatprep.subr.mxu0 0.0
  %3324 = vmatpush1.msra.mxu0 0.0
  %3325 = vmatprep.subr.mxu0 0.0
  %3326 = vmatpush1.msra.mxu0 0.0
  %3327 = vmatprep.subr.mxu0 0.0
  %3328 = vmatpush1.msra.mxu0 0.0
  %3329 = vmatprep.subr.mxu0 0.0
  %3330 = vmatpush1.msra.mxu0 0.0
  %3331 = vmatprep.subr.mxu0 0.0
  %3332 = vmatpush1.msra.mxu0 0.0
  %3333 = vmatprep.subr.mxu0 0.0
  %3334 = vmatpush1.msra.mxu0 0.0
  %3335 = vmatprep.subr.mxu0 0.0
  %3336 = vmatpush1.msra.mxu0 0.0
  %3337 = vmatprep.subr.mxu0 0.0
  %3338 = vmatpush1.msra.mxu0 0.0
  %3339 = vmatprep.subr.mxu0 %v2951
  %3340 = vmatpush1.msra.mxu0 %v2950
  %3341 = vmatprep.subr.mxu0 %v2945
  %3342 = vmatpush1.msra.mxu0 %v2944
  %3343 = vmatprep.subr.mxu0 %v2939
  %3344 = vmatpush1.msra.mxu0 %v2938
  %3345 = vmatprep.subr.mxu0 %v2933
  %3346 = vmatpush1.msra.mxu0 %v2932
  %3347 = vmatprep.subr.mxu0 0.0
  %3348 = vmatpush2.msra.mxu0 0.0
  %3349 = vmatprep.subr.mxu0 0.0
  %3350 = vmatpush2.msra.mxu0 0.0
  %3351 = vmatprep.subr.mxu0 0.0
  %3352 = vmatpush2.msra.mxu0 0.0
  %3353 = vmatprep.subr.mxu0 0.0
  %3354 = vmatpush2.msra.mxu0 0.0
  %3355 = vmatprep.subr.mxu0 0.0
  %3356 = vmatpush2.msra.mxu0 0.0
  %3357 = vmatprep.subr.mxu0 0.0
  %3358 = vmatpush2.msra.mxu0 0.0
  %3359 = vmatprep.subr.mxu0 0.0
  %3360 = vmatpush2.msra.mxu0 0.0
  %3361 = vmatprep.subr.mxu0 0.0
  %3362 = vmatpush2.msra.mxu0 0.0
  %3363 = vmatprep.subr.mxu0 0.0
  %3364 = vmatpush2.msra.mxu0 0.0
  %3365 = vmatprep.subr.mxu0 0.0
  %3366 = vmatpush2.msra.mxu0 0.0
  %3367 = vmatprep.subr.mxu0 0.0
  %3368 = vmatpush2.msra.mxu0 0.0
  %3369 = vmatprep.subr.mxu0 0.0
  %3370 = vmatpush2.msra.mxu0 0.0
  %3371 = vmatprep.subr.mxu0 0.0
  %3372 = vmatpush2.msra.mxu0 0.0
  %3373 = vmatprep.subr.mxu0 0.0
  %3374 = vmatpush2.msra.mxu0 0.0
  %3375 = vmatprep.subr.mxu0 0.0
  %3376 = vmatpush2.msra.mxu0 0.0
  %3377 = vmatprep.subr.mxu0 0.0
  %3378 = vmatpush2.msra.mxu0 0.0
  %3379 = vmatprep.mubr.f32.mxu0 0.0
  %3380 = vmatmul.mubr.f32.gmra.mxu0 %v2958
  %v3381 = vpop.f32.mrf.mxu0
  %v3382 = vadd.f32 %v3311, %v3381
  %v3383 = vpop.f32.mrf.mxu0
  %v3384 = vadd.f32 %v3313, %v3383
  %3385 = vdwg.mxu0
  %v3386 = vmax.f32 %v3098, 0.0
  %v3387 = vmax.f32 %v3100, 0.0
  %v3388 = vmax.f32 %v3240, 0.0
  %v3389 = vmax.f32 %v3242, 0.0
  %v3390 = vmax.f32 %v3382, 0.0
  %v3391 = vmax.f32 %v3384, 0.0
  %vm3392 = vcmask 1043456
  %v3393 = vsel %vm3392, %v3386, -inf
  %v3394 = vrot.slane %v3393, 4
  %v3395 = vmax.f32 %v3393, %v3394
  %v3396 = vrot.slane %v3395, 2
  %v3397 = vmax.f32 %v3395, %v3396
  %v3398 = vrot.slane %v3397, 1
  %v3399 = vmax.f32 %v3397, %v3398
  %v3400 = vsel %vm3392, %v3387, -inf
  %v3401 = vrot.slane %v3400, 4
  %v3402 = vmax.f32 %v3400, %v3401
  %v3403 = vrot.slane %v3402, 2
  %v3404 = vmax.f32 %v3402, %v3403
  %v3405 = vrot.slane %v3404, 1
  %v3406 = vmax.f32 %v3404, %v3405
  %v3407 = vsel %vm3392, %v3388, -inf
  %v3408 = vrot.slane %v3407, 4
  %v3409 = vmax.f32 %v3407, %v3408
  %v3410 = vrot.slane %v3409, 2
  %v3411 = vmax.f32 %v3409, %v3410
  %v3412 = vrot.slane %v3411, 1
  %v3413 = vmax.f32 %v3411, %v3412
  %v3414 = vsel %vm3392, %v3389, -inf
  %v3415 = vrot.slane %v3414, 4
  %v3416 = vmax.f32 %v3414, %v3415
  %v3417 = vrot.slane %v3416, 2
  %v3418 = vmax.f32 %v3416, %v3417
  %v3419 = vrot.slane %v3418, 1
  %v3420 = vmax.f32 %v3418, %v3419
  %v3421 = vsel %vm3392, %v3390, -inf
  %v3422 = vrot.slane %v3421, 4
  %v3423 = vmax.f32 %v3421, %v3422
  %v3424 = vrot.slane %v3423, 2
  %v3425 = vmax.f32 %v3423, %v3424
  %v3426 = vrot.slane %v3425, 1
  %v3427 = vmax.f32 %v3425, %v3426
  %v3428 = vsel %vm3392, %v3391, -inf
  %v3429 = vrot.slane %v3428, 4
  %v3430 = vmax.f32 %v3428, %v3429
  %v3431 = vrot.slane %v3430, 2
  %v3432 = vmax.f32 %v3430, %v3431
  %v3433 = vrot.slane %v3432, 1
  %v3434 = vmax.f32 %v3432, %v3433
  %v3435 = vsub.f32 %v3386, %v3399
  %v3436 = vsub.f32 %v3387, %v3406
  %v3437 = vsub.f32 %v3388, %v3413
  %v3438 = vsub.f32 %v3389, %v3420
  %v3439 = vsub.f32 %v3390, %v3427
  %v3440 = vsub.f32 %v3391, %v3434
  %v3441 = vmul.f32 %v3435, 1.442695
  %v3442 = vpow.pop %v3441
  %v3443 = vmul.f32 %v3436, 1.442695
  %v3444 = vpow.pop %v3443
  %v3445 = vmul.f32 %v3437, 1.442695
  %v3446 = vpow.pop %v3445
  %v3447 = vmul.f32 %v3438, 1.442695
  %v3448 = vpow.pop %v3447
  %v3449 = vmul.f32 %v3439, 1.442695
  %v3450 = vpow.pop %v3449
  %v3451 = vmul.f32 %v3440, 1.442695
  %v3452 = vpow.pop %v3451
  %v3453 = vsel %vm3392, %v3442, 0.0
  %v3454 = vrot.slane %v3453, 4
  %v3455 = vadd.f32 %v3453, %v3454
  %v3456 = vrot.slane %v3455, 2
  %v3457 = vadd.f32 %v3455, %v3456
  %v3458 = vrot.slane %v3457, 1
  %v3459 = vadd.f32 %v3457, %v3458
  %v3460 = vsel %vm3392, %v3444, 0.0
  %v3461 = vrot.slane %v3460, 4
  %v3462 = vadd.f32 %v3460, %v3461
  %v3463 = vrot.slane %v3462, 2
  %v3464 = vadd.f32 %v3462, %v3463
  %v3465 = vrot.slane %v3464, 1
  %v3466 = vadd.f32 %v3464, %v3465
  %v3467 = vsel %vm3392, %v3446, 0.0
  %v3468 = vrot.slane %v3467, 4
  %v3469 = vadd.f32 %v3467, %v3468
  %v3470 = vrot.slane %v3469, 2
  %v3471 = vadd.f32 %v3469, %v3470
  %v3472 = vrot.slane %v3471, 1
  %v3473 = vadd.f32 %v3471, %v3472
  %v3474 = vsel %vm3392, %v3448, 0.0
  %v3475 = vrot.slane %v3474, 4
  %v3476 = vadd.f32 %v3474, %v3475
  %v3477 = vrot.slane %v3476, 2
  %v3478 = vadd.f32 %v3476, %v3477
  %v3479 = vrot.slane %v3478, 1
  %v3480 = vadd.f32 %v3478, %v3479
  %v3481 = vsel %vm3392, %v3450, 0.0
  %v3482 = vrot.slane %v3481, 4
  %v3483 = vadd.f32 %v3481, %v3482
  %v3484 = vrot.slane %v3483, 2
  %v3485 = vadd.f32 %v3483, %v3484
  %v3486 = vrot.slane %v3485, 1
  %v3487 = vadd.f32 %v3485, %v3486
  %v3488 = vsel %vm3392, %v3452, 0.0
  %v3489 = vrot.slane %v3488, 4
  %v3490 = vadd.f32 %v3488, %v3489
  %v3491 = vrot.slane %v3490, 2
  %v3492 = vadd.f32 %v3490, %v3491
  %v3493 = vrot.slane %v3492, 1
  %v3494 = vadd.f32 %v3492, %v3493
  %v3495 = vrcp.pop %v3459
  %v3496 = vrcp.pop %v3466
  %v3497 = vrcp.pop %v3473
  %v3498 = vrcp.pop %v3480
  %v3499 = vrcp.pop %v3487
  %v3500 = vrcp.pop %v3494
  %v3501 = vmul.f32 %v3442, %v3495
  %v3502 = vmul.f32 %v3444, %v3496
  %v3503 = vmul.f32 %v3446, %v3497
  %v3504 = vmul.f32 %v3448, %v3498
  %v3505 = vmul.f32 %v3450, %v3499
  %v3506 = vmul.f32 %v3452, %v3500
  %v3507 = vsel %vm3392, %v3501, 0.0
  %v3508 = vsel %vm3392, %v3502, 0.0
  %v3509 = vsel %vm3392, %v3503, 0.0
  %v3510 = vsel %vm3392, %v3504, 0.0
  %v3511 = vsel %vm3392, %v3505, 0.0
  %v3512 = vsel %vm3392, %v3506, 0.0
  %3513 = vst [vmem:[%s2] sm:$0xff] %v3507
  %3514 = vst [vmem:[%s2 + $0x8] sm:$0xff] %v3508
  %3515 = vst [vmem:[%s2 + $0x10] sm:$0xff] %v3509
  %3516 = vst [vmem:[%s2 + $0x18] sm:$0xff] %v3510
  %3517 = vst [vmem:[%s2 + $0x20] sm:$0xff] %v3511
  %3518 = vst [vmem:[%s2 + $0x28] sm:$0xff] %v3512
  // Predicated region
  $region10: #{perceptual_laserscan_conv_forward.1} parent=0 // pred_check
    _
  $region11: #{perceptual_laserscan_conv_forward.1} parent=0 // pred_check_branch
    %3520 = sbr.rel (0) target = $region13
  $region12: #{perceptual_laserscan_conv_forward.1} parent=0 // pred_region
    _
  $region13: #{perceptual_laserscan_conv_forward.1} parent=0 // pred_fallthru
    _
  // Predicated region
  $region14: #{perceptual_laserscan_conv_forward.1} parent=0 // pred_check
    _
  $region15: #{perceptual_laserscan_conv_forward.1} parent=0 // pred_check_branch
    %3522 = sbr.rel (0) target = $region17
  $region16: #{perceptual_laserscan_conv_forward.1} parent=0 // pred_region
    _
  $region17: #{perceptual_laserscan_conv_forward.1} parent=0 // pred_fallthru
    _

</llo_original>
